<compile_context>
chip_gen: v7x
topology: tpu7x:2x2x1
jax: 0.10.0
libtpu: 0.0.40
codegen_flags: <defaults>
</compile_context>

<pallas_src>
import jax
import jax.numpy as jnp
from jax import lax
from jax.experimental import pallas as pl
from jax.experimental.pallas import tpu as pltpu


_LANE = 128
_NEG = -1e9          # bias fill for padded class lanes -> softmax weight == 0


def _round_up(x, m):
    return (x + m - 1) // m * m


def _pad_last(a, target, fill=0.0):
    pad = target - a.shape[-1]
    if pad <= 0:
        return a
    return jnp.concatenate(
        [a, jnp.full(a.shape[:-1] + (pad,), fill, a.dtype)], axis=-1)


def _pad_rows(a, target):
    pad = target - a.shape[0]
    if pad <= 0:
        return a
    return jnp.concatenate([a, jnp.zeros((pad,) + a.shape[1:], a.dtype)], axis=0)


def _plan_tiles(B, S, H, HDp, CLp, CDp, n_hidden, resident_bytes, device_kind,
                override=None):
    """Pick TB sequences/tile (TM = TB*S rows) and an explicit VMEM limit."""
    is_v7 = "7" in device_kind           # 2 TensorCores, 64 MiB VMEM per core
    phys = (64 << 20) if is_v7 else (128 << 20)
    budget = phys - (16 << 20)           # headroom for compiler scratch

    def ws(t):                           # per-core working-set estimate (bytes)
        tm = t * S
        b = 2 * tm * H * 4                        # f32 input tile, double buffered
        b += 2 * tm * (CLp + CDp) * 2 * 2         # 4 bf16 output slabs, double buffered
        b += 2 * t * 128 * 4                      # packed per-sequence output
        b += 3 * tm * (CLp + CDp) * 4             # f32 logits / exp / probs temporaries
        if n_hidden > 0:
            b += 3 * tm * 2 * HDp * 4             # fused hidden activations + casts
        b += 2 * resident_bytes                   # weights & small tensors (conservative)
        return b

    # Hardware constraint is on TM (sublane dim of the f32 input block), not TB.
    cands = [t for t in range(1, B + 1)
             if B % t == 0 and ((t * S) % 8 == 0 or t == B)]
    if override is not None:
        assert override in cands, (
            "tb must divide B and give TM = tb*S % 8 == 0 (or tb == B)")
        assert ws(override) <= budget, "requested tile does not fit the VMEM budget"
        pick = override
    else:
        feas = [t for t in cands if ws(t) <= budget]
        if not feas:
            raise ValueError(
                "no tile fits the %d MiB VMEM budget (smallest candidate needs "
                "%d MiB)" % (budget >> 20, ws(min(cands)) >> 20))
        pick = max(feas)
        if is_v7 and B >= 2:
            two_step = [t for t in feas if t <= B // 2]
            if two_step:                 # >= 2 grid steps keeps both TCs busy
                pick = max(two_step)
    vmem_limit = int(min(phys - (8 << 20),
                         max(32 << 20, ws(pick) * 5 // 4 + (4 << 20))))
    return pick, vmem_limit


def make_gector_kernel(TB, S, H, HDp, CLp, CDp, n_hidden, n_params,
                       fuse_branches, incorrect_index):
    """Builds the Pallas kernel body (closure over static config)."""
    TM = TB * S
    ii = int(incorrect_index)

    def kernel(*refs):
        x_ref, mask_ref, labels_ref, dtags_ref, conf_ref = refs[:5]
        prm = refs[5:5 + n_params]
        (lg_lab_ref, lg_det_ref, pr_lab_ref, pr_det_ref,
         seq_ref) = refs[5 + n_params:]

        # Small per-token tensors are resident whole arrays; slice our TB rows.
        row0 = pl.program_id(0) * TB
        if TB % 8 == 0:
            row0 = pl.multiple_of(row0, 8)
        mask = mask_ref[pl.ds(row0, TB), :]        # (TB, S) f32 (0/1)
        labels = labels_ref[pl.ds(row0, TB), :]    # (TB, S) int32
        dtags = dtags_ref[pl.ds(row0, TB), :]      # (TB, S) int32

        # in-kernel bf16 cast (no wrapper-side HBM pass)
        x = x_ref[...].astype(jnp.bfloat16)        # (TM, H)

        # ---- fused TimeDistributed Linear stacks (bf16 MXU, f32 accumulate) ----
        # TODO(synk): predictor_dropout (nn.Dropout) omitted — RNG-dependent;
        # kernel reproduces eval-mode / p=0 semantics.
        if n_hidden > 0:
            w1, b1 = prm[0][...], prm[1][...]
            # Fused first layer of both branches: one (H -> 2*HDp) matmul.
            h = jnp.dot(x, w1, preferred_element_type=jnp.float32) + b1
            pi = 2
            if fuse_branches:
                # v6e/v7x: middle layers as one block-diagonal (2*HDp)-wide matmul.
                for _ in range(n_hidden - 1):
                    h = jnp.dot(h.astype(jnp.bfloat16), prm[pi][...],
                                preferred_element_type=jnp.float32) + prm[pi + 1][...]
                    pi += 2
                h_lab, h_det = h[:, :HDp], h[:, HDp:]
            else:
                # v5e: 128-wide per-branch matmuls already fill the MXU tile.
                h_lab, h_det = h[:, :HDp], h[:, HDp:]
                for _ in range(n_hidden - 1):
                    h_lab = jnp.dot(h_lab.astype(jnp.bfloat16), prm[pi][...],
                                    preferred_element_type=jnp.float32) + prm[pi + 1][...]
                    h_det = jnp.dot(h_det.astype(jnp.bfloat16), prm[pi + 2][...],
                                    preferred_element_type=jnp.float32) + prm[pi + 3][...]
                    pi += 4
            logits_lab = jnp.dot(h_lab.astype(jnp.bfloat16), prm[pi][...],
                                 preferred_element_type=jnp.float32) + prm[pi + 1][...]
            logits_det = jnp.dot(h_det.astype(jnp.bfloat16), prm[pi + 2][...],
                                 preferred_element_type=jnp.float32) + prm[pi + 3][...]
        else:
            wf, bfp = prm[0][...], prm[1][...]
            z = jnp.dot(x, wf, preferred_element_type=jnp.float32) + bfp
            logits_lab, logits_det = z[:, :CLp], z[:, CLp:]

        # ---- shared softmax / log-sum-exp statistics (one pass per branch) ----
        def stats3(logits2, cp):
            lg3 = logits2.reshape(TB, S, cp)
            m = jnp.max(lg3, axis=-1, keepdims=True)
            e = jnp.exp(lg3 - m)
            s = jnp.sum(e, axis=-1, keepdims=True)
            # approx reciprocal (EUP) only for the returned probabilities.
            probs = e * pl.reciprocal(s, approx=True)
            lse = jnp.log(s) + m
            return lg3, probs, lse

        lg3_lab, pr3_lab, lse_lab = stats3(logits_lab, CLp)
        lg3_det, pr3_det, lse_det = stats3(logits_det, CDp)

        # lane-dense bf16 stores, already in (TB, S, C_pad) layout
        lg_lab_ref[...] = lg3_lab.astype(jnp.bfloat16)
        lg_det_ref[...] = lg3_det.astype(jnp.bfloat16)
        pr_lab_ref[...] = (pr3_lab + conf_ref[...]).astype(jnp.bfloat16)
        pr_det_ref[...] = pr3_det.astype(jnp.bfloat16)

        # ---- AllenNLP sequence_cross_entropy_with_logits (average="batch") ----
        # target-logit gather: select + reduce, no log-prob tensor / one-hot.
        def seq_nll(lg3, lse3, tgt, cp):
            cls3 = lax.broadcasted_iota(jnp.int32, (TB, S, cp), 2)
            picked = jnp.sum(jnp.where(cls3 == tgt[:, :, None], lg3, 0.0),
                             axis=-1)                              # (TB, S)
            return (jnp.sum(lse3, axis=-1) - picked) * mask        # (TB, S)

        nll = (seq_nll(lg3_lab, lse_lab, labels, CLp)
               + seq_nll(lg3_det, lse_det, dtags, CDp))
        wsum = jnp.sum(mask, axis=-1, keepdims=True)               # (TB, 1)
        lossnum = jnp.sum(nll, axis=-1, keepdims=True) / (wsum + 1e-13)
        nonempty = (wsum > 0.0).astype(jnp.float32)                # (TB, 1)

        # ---- per-sequence max error probability (exact log-domain, f32) ----
        errlog = jnp.sum(lg3_det[:, :, ii:ii + 1] - lse_det, axis=-1)  # (TB, S)
        err = jnp.exp(errlog) * mask
        maxerr = jnp.max(err, axis=-1, keepdims=True)              # (TB, 1)

        # pack the three per-sequence scalars into one lane-dense store
        lane = lax.broadcasted_iota(jnp.int32, (TB, 1, 128), 2)
        seq_ref[...] = (jnp.where(lane == 0, maxerr[:, :, None], 0.0)
                        + jnp.where(lane == 1, lossnum[:, :, None], 0.0)
                        + jnp.where(lane == 2, nonempty[:, :, None], 0.0))

    return kernel


def gector_decode(encoded_text, mask, labels, d_tags, lab_params, det_params,
                  *, confidence, incorrect_index, tb=None):
    """Wrapper: pads/fuses params, calls pallas_call, returns the decode dict."""
    B, S, H = encoded_text.shape
    n_hidden = len(lab_params) - 1
    C_LAB = lab_params[-1][0].shape[1]
    C_DET = det_params[-1][0].shape[1]
    CLp = _round_up(C_LAB, _LANE)
    CDp = _round_up(C_DET, _LANE)
    bf16 = jnp.bfloat16

    kind = jax.devices()[0].device_kind.lower()
    # 256-wide MXU chips (v6e / v7x / newer) benefit from fusing both branches'
    # middle hidden layers into one block-diagonal matmul; 128-wide chips don't.
    fuse_branches = not any(t in kind for t in ("v2", "v3", "v4", "v5"))

    flat_params = []
    if n_hidden > 0:
        HD = lab_params[0][0].shape[1]
        HDp = _round_up(HD, _LANE)
        w1l, b1l = lab_params[0]
        w1d, b1d = det_params[0]
        # Fused first hidden layer for both branches (split offsets 128-aligned).
        w1 = jnp.concatenate([_pad_last(w1l, HDp), _pad_last(w1d, HDp)], axis=1)
        b1 = jnp.concatenate([_pad_last(b1l[None, :], HDp),
                              _pad_last(b1d[None, :], HDp)], axis=1)
        flat_params += [w1.astype(bf16), b1.astype(jnp.float32)]
        for li in range(1, n_hidden):
            (wl, bl), (wd, bd) = lab_params[li], det_params[li]
            wl_p = _pad_last(_pad_rows(wl, HDp), HDp)
            wd_p = _pad_last(_pad_rows(wd, HDp), HDp)
            bl_p = _pad_last(bl[None, :], HDp)
            bd_p = _pad_last(bd[None, :], HDp)
            if fuse_branches:
                wbd = jnp.zeros((2 * HDp, 2 * HDp), jnp.float32)
                wbd = wbd.at[:HDp, :HDp].set(wl_p).at[HDp:, HDp:].set(wd_p)
                bbd = jnp.concatenate([bl_p, bd_p], axis=1)
                flat_params += [wbd.astype(bf16), bbd.astype(jnp.float32)]
            else:
                flat_params += [wl_p.astype(bf16), bl_p.astype(jnp.float32),
                                wd_p.astype(bf16), bd_p.astype(jnp.float32)]
        for (w, b), cp in ((lab_params[-1], CLp), (det_params[-1], CDp)):
            flat_params += [
                _pad_last(_pad_rows(w, HDp), cp).astype(bf16),
                _pad_last(b[None, :], cp, _NEG).astype(jnp.float32)]
    else:
        HDp = 0
        (wl, bl), (wd, bd) = lab_params[-1], det_params[-1]
        wf = jnp.concatenate([_pad_last(wl, CLp), _pad_last(wd, CDp)], axis=1)
        bf_full = jnp.concatenate([_pad_last(bl[None, :], CLp, _NEG),
                                   _pad_last(bd[None, :], CDp, _NEG)], axis=1)
        flat_params += [wf.astype(bf16), bf_full.astype(jnp.float32)]

    # confidence offset vector (class 0 of label probabilities)
    conf_vec = jnp.zeros((1, 1, CLp), jnp.float32)
    if float(confidence) != 0.0:
        conf_vec = conf_vec.at[0, 0, 0].set(jnp.float32(confidence))

    resident_bytes = int(sum(int(p.size) * p.dtype.itemsize for p in flat_params))
    resident_bytes += int(3 * B * S * 4 + conf_vec.size * 4)

    TB, vmem_limit = _plan_tiles(B, S, H, HDp, CLp, CDp, n_hidden,
                                 resident_bytes, kind, override=tb)
    TM = TB * S
    n_params = len(flat_params)

    kernel = make_gector_kernel(TB, S, H, HDp, CLp, CDp, n_hidden, n_params,
                                fuse_branches, int(incorrect_index))

    inputs = [encoded_text.reshape(B * S, H).astype(jnp.float32),  # f32, cast in-kernel
              mask.astype(jnp.float32),
              labels.astype(jnp.int32),
              d_tags.astype(jnp.int32),
              conf_vec] + flat_params

    out_shape = (
        jax.ShapeDtypeStruct((B, S, CLp), bf16),          # logits_labels (padded)
        jax.ShapeDtypeStruct((B, S, CDp), bf16),          # logits_d_tags (padded)
        jax.ShapeDtypeStruct((B, S, CLp), bf16),          # probs_labels (padded)
        jax.ShapeDtypeStruct((B, S, CDp), bf16),          # probs_d_tags (padded)
        jax.ShapeDtypeStruct((B, 1, 128), jnp.float32),   # [maxerr, lossnum, nonempty]
    )
    out_specs = (
        pl.BlockSpec((TB, S, CLp), lambda i: (i, 0, 0)),
        pl.BlockSpec((TB, S, CDp), lambda i: (i, 0, 0)),
        pl.BlockSpec((TB, S, CLp), lambda i: (i, 0, 0)),
        pl.BlockSpec((TB, S, CDp), lambda i: (i, 0, 0)),
        pl.BlockSpec((TB, 1, 128), lambda i: (i, 0, 0)),
    )
    cparams = pltpu.CompilerParams(dimension_semantics=("parallel",),
                                   vmem_limit_bytes=int(vmem_limit))

    def _call(single_buffer_residents):
        def resident(arr):
            imap = (lambda i, _nd=arr.ndim: (0,) * _nd)
            if single_buffer_residents:
                return pl.BlockSpec(arr.shape, imap,
                                    pipeline_mode=pl.Buffered(1))
            return pl.BlockSpec(arr.shape, imap)

        in_specs = ([pl.BlockSpec((TM, H), lambda i: (i, 0))]
                    + [resident(a) for a in inputs[1:]])
        return pl.pallas_call(
            kernel,
            grid=(B // TB,),
            in_specs=in_specs,
            out_specs=out_specs,
            out_shape=out_shape,
            compiler_params=cparams,
        )(*inputs)

    try:
        # weights / small tensors single-buffered (constant index_map)
        outs = _call(True)
    except Exception:
        # fallback: default double buffering if Buffered(1) is rejected
        outs = _call(False)

    lg_lab, lg_det, pr_lab, pr_det, seq = outs
    loss = jnp.sum(seq[:, 0, 1]) / (jnp.sum(seq[:, 0, 2]) + 1e-13)
    # The padded bf16 slabs could be consumed directly by downstream code; the
    # slice+upcast below restores the module's exact (B, S, C) f32 interface
    # in a single fused XLA op per slab.
    return {
        'logits_labels': lg_lab[:, :, :C_LAB].astype(jnp.float32),
        'logits_d_tags': lg_det[:, :, :C_DET].astype(jnp.float32),
        'class_probabilities_labels': pr_lab[:, :, :C_LAB].astype(jnp.float32),
        'class_probabilities_d_tags': pr_det[:, :, :C_DET].astype(jnp.float32),
        'max_error_probability': seq[:, 0, 0],
        'loss': loss,
    }


def ref_decode(x, mask, labels, d_tags, lab_params, det_params, *, confidence,
               incorrect_index):
    """Pure-JAX reference mirroring GECToR.decode() (bf16 matmul inputs)."""
    def bfr(a):
        return a.astype(jnp.bfloat16).astype(jnp.float32)

    def branch(h, prms):
        for (w, b) in prms:
            h = bfr(h) @ bfr(w) + b
        return h

    logits_lab = branch(x, lab_params)
    logits_d = branch(x, det_params)
    p_lab = jax.nn.softmax(logits_lab, axis=-1)
    p_d = jax.nn.softmax(logits_d, axis=-1)
    if confidence > 0:
        p_lab = p_lab.at[..., 0].add(confidence)
    err = p_d[..., incorrect_index] * mask
    max_err = err.max(axis=-1)

    def ce(logits, tgt, m):
        lp = jax.nn.log_softmax(logits, axis=-1)
        nll = -jnp.take_along_axis(lp, tgt[..., None], axis=-1)[..., 0] * m
        wsum = m.sum(-1)
        per_batch = nll.sum(-1) / (wsum + 1e-13)
        nonempty = (wsum > 0).astype(jnp.float32).sum() + 1e-13
        return per_batch.sum() / nonempty

    loss = ce(logits_lab, labels, mask) + ce(logits_d, d_tags, mask)
    return logits_lab, logits_d, p_lab, p_d, max_err, loss


if __name__ == "__main__":
    # Small shapes consistent with the module's forward.
    B, S = 16, 8                # batch, seq_len (B chosen so the grid has 2 tiles)
    H = 32                      # encoder.get_output_dim()
    HIDDEN_LAYERS = 1
    HIDDEN_DIM = 32
    NUM_LABELS = 24             # labels_namespace vocab size
    NUM_DETECT = 4              # detect_namespace vocab size
    INCORRECT_INDEX = 1
    CONFIDENCE = 0.2

    key = jax.random.PRNGKey(0)
    keys = jax.random.split(key, 20)

    encoded_text = jax.random.normal(keys[0], (B, S, H), dtype=jnp.float32)
    # mask: varying padded tails, including one fully-empty sequence
    lens = jax.random.randint(keys[15], (B,), 1, S + 1)
    lens = lens.at[3].set(0)
    mask = (jnp.arange(S)[None, :] < lens[:, None]).astype(jnp.float32)
    labels = jax.random.randint(keys[1], (B, S), 0, NUM_LABELS, dtype=jnp.int32)
    d_tags = jax.random.randint(keys[2], (B, S), 0, NUM_DETECT, dtype=jnp.int32)

    def lin(kw, kb, fan_in, fan_out):
        scale = 1.0 / jnp.sqrt(jnp.float32(fan_in))
        w = jax.random.uniform(kw, (fan_in, fan_out), jnp.float32, -scale, scale)
        b = jax.random.uniform(kb, (fan_out,), jnp.float32, -scale, scale)
        return w, b

    # labels branch: hidden layers + projection
    lab_params = [lin(keys[3], keys[4], H, HIDDEN_DIM)]
    lab_params += [lin(keys[5], keys[6], HIDDEN_DIM, HIDDEN_DIM)
                   for _ in range(HIDDEN_LAYERS - 1)]
    lab_params += [lin(keys[7], keys[8], H if HIDDEN_LAYERS == 0 else HIDDEN_DIM,
                       NUM_LABELS)]
    # detect branch: hidden layers + projection
    det_params = [lin(keys[9], keys[10], H, HIDDEN_DIM)]
    det_params += [lin(keys[11], keys[12], HIDDEN_DIM, HIDDEN_DIM)
                   for _ in range(HIDDEN_LAYERS - 1)]
    det_params += [lin(keys[13], keys[14], H if HIDDEN_LAYERS == 0 else HIDDEN_DIM,
                       NUM_DETECT)]

    out = gector_decode(encoded_text, mask, labels, d_tags, lab_params,
                        det_params, confidence=CONFIDENCE,
                        incorrect_index=INCORRECT_INDEX,
                        tb=8)                      # force a 2-tile grid
    jax.block_until_ready(out)

    ref = ref_decode(encoded_text, mask, labels, d_tags, lab_params, det_params,
                     confidence=CONFIDENCE, incorrect_index=INCORRECT_INDEX)
    names = ['logits_labels', 'logits_d_tags', 'class_probabilities_labels',
             'class_probabilities_d_tags', 'max_error_probability', 'loss']
    # big slabs are bf16-rounded in the kernel -> slightly looser tolerance
    tols = {'logits_labels': (1e-2, 2e-2),
            'logits_d_tags': (1e-2, 2e-2),
            'class_probabilities_labels': (1e-2, 2e-2),
            'class_probabilities_d_tags': (1e-2, 2e-2),
            'max_error_probability': (5e-3, 5e-3),
            'loss': (5e-3, 5e-3)}
    for name, r in zip(names, ref):
        got = out[name]
        rt, at = tols[name]
        assert jnp.allclose(got, r, rtol=rt, atol=at), (
            f"mismatch in {name}: max abs err "
            f"{float(jnp.max(jnp.abs(got.astype(jnp.float32) - r)))}")

    print("KERNEL_OK")
</pallas_src>

<mosaic_0001>
module attributes {stable_mosaic.version = 11 : i64} {
  func.func @kernel(%arg0: i32, %arg1: memref<64x32xf32, #tpu.memory_space<vmem>>, %arg2: memref<16x8xf32, #tpu.memory_space<vmem>>, %arg3: memref<16x8xi32, #tpu.memory_space<vmem>>, %arg4: memref<16x8xi32, #tpu.memory_space<vmem>>, %arg5: memref<1x1x128xf32, #tpu.memory_space<vmem>>, %arg6: memref<32x256xbf16, #tpu.memory_space<vmem>>, %arg7: memref<1x256xf32, #tpu.memory_space<vmem>>, %arg8: memref<128x128xbf16, #tpu.memory_space<vmem>>, %arg9: memref<1x128xf32, #tpu.memory_space<vmem>>, %arg10: memref<128x128xbf16, #tpu.memory_space<vmem>>, %arg11: memref<1x128xf32, #tpu.memory_space<vmem>>, %arg12: memref<8x8x128xbf16, #tpu.memory_space<vmem>>, %arg13: memref<8x8x128xbf16, #tpu.memory_space<vmem>>, %arg14: memref<8x8x128xbf16, #tpu.memory_space<vmem>>, %arg15: memref<8x8x128xbf16, #tpu.memory_space<vmem>>, %arg16: memref<8x1x128xf32, #tpu.memory_space<vmem>>) attributes {dimension_semantics = [#tpu.dimension_semantics<parallel>], iteration_bounds = array<i64: 2>, scalar_prefetch = 0 : i64, scratch_operands = 0 : i64, tpu.core_type = #tpu.core_type<tc>, window_params = [{transform_indices = @transform_0, window_bounds = array<i64: 64, 32>}, {pipeline_mode = #tpu.pipeline_mode<synchronous>, transform_indices = @transform_1, window_bounds = array<i64: 16, 8>}, {pipeline_mode = #tpu.pipeline_mode<synchronous>, transform_indices = @transform_2, window_bounds = array<i64: 16, 8>}, {pipeline_mode = #tpu.pipeline_mode<synchronous>, transform_indices = @transform_3, window_bounds = array<i64: 16, 8>}, {pipeline_mode = #tpu.pipeline_mode<synchronous>, transform_indices = @transform_4, window_bounds = array<i64: 1, 1, 128>}, {pipeline_mode = #tpu.pipeline_mode<synchronous>, transform_indices = @transform_5, window_bounds = array<i64: 32, 256>}, {pipeline_mode = #tpu.pipeline_mode<synchronous>, transform_indices = @transform_6, window_bounds = array<i64: 1, 256>}, {pipeline_mode = #tpu.pipeline_mode<synchronous>, transform_indices = @transform_7, window_bounds = array<i64: 128, 128>}, {pipeline_mode = #tpu.pipeline_mode<synchronous>, transform_indices = @transform_8, window_bounds = array<i64: 1, 128>}, {pipeline_mode = #tpu.pipeline_mode<synchronous>, transform_indices = @transform_9, window_bounds = array<i64: 128, 128>}, {pipeline_mode = #tpu.pipeline_mode<synchronous>, transform_indices = @transform_10, window_bounds = array<i64: 1, 128>}, {transform_indices = @transform_11, window_bounds = array<i64: 8, 8, 128>}, {transform_indices = @transform_12, window_bounds = array<i64: 8, 8, 128>}, {transform_indices = @transform_13, window_bounds = array<i64: 8, 8, 128>}, {transform_indices = @transform_14, window_bounds = array<i64: 8, 8, 128>}, {transform_indices = @transform_15, window_bounds = array<i64: 8, 1, 128>}]} {
    %c8_i32 = arith.constant 8 : i32
    %0 = arith.muli %arg0, %c8_i32 : i32
    %1 = tpu.assume_multiple %0, 8 : i32
    %2 = arith.index_cast %1 : i32 to index
    %c0 = arith.constant 0 : index
    %3 = vector.load %arg2[%2, %c0] : memref<16x8xf32, #tpu.memory_space<vmem>>, vector<8x8xf32>
    %4 = arith.index_cast %1 : i32 to index
    %c0_0 = arith.constant 0 : index
    %5 = vector.load %arg3[%4, %c0_0] : memref<16x8xi32, #tpu.memory_space<vmem>>, vector<8x8xi32>
    %6 = arith.index_cast %1 : i32 to index
    %c0_1 = arith.constant 0 : index
    %7 = vector.load %arg4[%6, %c0_1] : memref<16x8xi32, #tpu.memory_space<vmem>>, vector<8x8xi32>
    %c0_2 = arith.constant 0 : index
    %c0_3 = arith.constant 0 : index
    %8 = vector.load %arg1[%c0_2, %c0_3] : memref<64x32xf32, #tpu.memory_space<vmem>>, vector<64x32xf32>
    %9 = arith.truncf %8 : vector<64x32xf32> to vector<64x32xbf16>
    %c0_4 = arith.constant 0 : index
    %c0_5 = arith.constant 0 : index
    %10 = vector.load %arg6[%c0_4, %c0_5] : memref<32x256xbf16, #tpu.memory_space<vmem>>, vector<32x256xbf16>
    %c0_6 = arith.constant 0 : index
    %c0_7 = arith.constant 0 : index
    %11 = vector.load %arg7[%c0_6, %c0_7] : memref<1x256xf32, #tpu.memory_space<vmem>>, vector<1x256xf32>
    %cst = arith.constant dense<0.000000e+00> : vector<64x256xf32>
    %12 = tpu.matmul %9, %10, %cst {dimension_numbers = #tpu.dot_dimension_numbers<[1], [0], [0], [1], [0, 0, 1, 1], [], []>} : vector<64x32xbf16>, vector<32x256xbf16>, vector<64x256xf32> -> vector<64x256xf32>
    %13 = vector.broadcast %11 : vector<1x256xf32> to vector<64x256xf32>
    %14 = arith.addf %12, %13 : vector<64x256xf32>
    %15 = vector.extract_strided_slice %14 {offsets = [0, 0], sizes = [64, 128], strides = [1, 1]} : vector<64x256xf32> to vector<64x128xf32>
    %16 = vector.extract_strided_slice %14 {offsets = [0, 128], sizes = [64, 128], strides = [1, 1]} : vector<64x256xf32> to vector<64x128xf32>
    %17 = arith.truncf %15 : vector<64x128xf32> to vector<64x128xbf16>
    %c0_8 = arith.constant 0 : index
    %c0_9 = arith.constant 0 : index
    %18 = vector.load %arg8[%c0_8, %c0_9] : memref<128x128xbf16, #tpu.memory_space<vmem>>, vector<128x128xbf16>
    %cst_10 = arith.constant dense<0.000000e+00> : vector<64x128xf32>
    %19 = tpu.matmul %17, %18, %cst_10 {dimension_numbers = #tpu.dot_dimension_numbers<[1], [0], [0], [1], [0, 0, 1, 1], [], []>} : vector<64x128xbf16>, vector<128x128xbf16>, vector<64x128xf32> -> vector<64x128xf32>
    %c0_11 = arith.constant 0 : index
    %c0_12 = arith.constant 0 : index
    %20 = vector.load %arg9[%c0_11, %c0_12] : memref<1x128xf32, #tpu.memory_space<vmem>>, vector<1x128xf32>
    %21 = vector.broadcast %20 : vector<1x128xf32> to vector<64x128xf32>
    %22 = arith.addf %19, %21 : vector<64x128xf32>
    %23 = arith.truncf %16 : vector<64x128xf32> to vector<64x128xbf16>
    %c0_13 = arith.constant 0 : index
    %c0_14 = arith.constant 0 : index
    %24 = vector.load %arg10[%c0_13, %c0_14] : memref<128x128xbf16, #tpu.memory_space<vmem>>, vector<128x128xbf16>
    %cst_15 = arith.constant dense<0.000000e+00> : vector<64x128xf32>
    %25 = tpu.matmul %23, %24, %cst_15 {dimension_numbers = #tpu.dot_dimension_numbers<[1], [0], [0], [1], [0, 0, 1, 1], [], []>} : vector<64x128xbf16>, vector<128x128xbf16>, vector<64x128xf32> -> vector<64x128xf32>
    %c0_16 = arith.constant 0 : index
    %c0_17 = arith.constant 0 : index
    %26 = vector.load %arg11[%c0_16, %c0_17] : memref<1x128xf32, #tpu.memory_space<vmem>>, vector<1x128xf32>
    %27 = vector.broadcast %26 : vector<1x128xf32> to vector<64x128xf32>
    %28 = arith.addf %25, %27 : vector<64x128xf32>
    %29 = vector.shape_cast %22 : vector<64x128xf32> to vector<8x8x128xf32>
    %cst_18 = arith.constant dense<0xFF800000> : vector<8x8xf32>
    %30 = vector.multi_reduction <maximumf>, %29, %cst_18 [2] : vector<8x8x128xf32> to vector<8x8xf32>
    %31 = vector.shape_cast %30 : vector<8x8xf32> to vector<8x8x1xf32>
    %32 = vector.broadcast %31 : vector<8x8x1xf32> to vector<8x8x128xf32>
    %33 = arith.subf %29, %32 : vector<8x8x128xf32>
    %34 = math.exp %33 : vector<8x8x128xf32>
    %cst_19 = arith.constant dense<0.000000e+00> : vector<8x8xf32>
    %35 = vector.multi_reduction <add>, %34, %cst_19 [2] : vector<8x8x128xf32> to vector<8x8xf32>
    %36 = vector.shape_cast %35 : vector<8x8xf32> to vector<8x8x1xf32>
    %37 = tpu.reciprocal %36 {approx = true} : vector<8x8x1xf32> -> vector<8x8x1xf32>
    %38 = vector.broadcast %37 : vector<8x8x1xf32> to vector<8x8x128xf32>
    %39 = arith.mulf %34, %38 : vector<8x8x128xf32>
    %40 = math.log %36 : vector<8x8x1xf32>
    %41 = arith.addf %40, %31 : vector<8x8x1xf32>
    %42 = vector.shape_cast %28 : vector<64x128xf32> to vector<8x8x128xf32>
    %cst_20 = arith.constant dense<0xFF800000> : vector<8x8xf32>
    %43 = vector.multi_reduction <maximumf>, %42, %cst_20 [2] : vector<8x8x128xf32> to vector<8x8xf32>
    %44 = vector.shape_cast %43 : vector<8x8xf32> to vector<8x8x1xf32>
    %45 = vector.broadcast %44 : vector<8x8x1xf32> to vector<8x8x128xf32>
    %46 = arith.subf %42, %45 : vector<8x8x128xf32>
    %47 = math.exp %46 : vector<8x8x128xf32>
    %cst_21 = arith.constant dense<0.000000e+00> : vector<8x8xf32>
    %48 = vector.multi_reduction <add>, %47, %cst_21 [2] : vector<8x8x128xf32> to vector<8x8xf32>
    %49 = vector.shape_cast %48 : vector<8x8xf32> to vector<8x8x1xf32>
    %50 = tpu.reciprocal %49 {approx = true} : vector<8x8x1xf32> -> vector<8x8x1xf32>
    %51 = vector.broadcast %50 : vector<8x8x1xf32> to vector<8x8x128xf32>
    %52 = arith.mulf %47, %51 : vector<8x8x128xf32>
    %53 = math.log %49 : vector<8x8x1xf32>
    %54 = arith.addf %53, %44 : vector<8x8x1xf32>
    %55 = arith.truncf %29 : vector<8x8x128xf32> to vector<8x8x128xbf16>
    %c0_22 = arith.constant 0 : index
    %c0_23 = arith.constant 0 : index
    %c0_24 = arith.constant 0 : index
    %56 = vector.load %arg12[%c0_22, %c0_23, %c0_24] : memref<8x8x128xbf16, #tpu.memory_space<vmem>>, vector<8x8x128xbf16>
    tpu.vector_store %arg12[%c0_22, %c0_23, %c0_24], %55 {strides = array<i32>} : memref<8x8x128xbf16, #tpu.memory_space<vmem>>, vector<8x8x128xbf16>,
    %57 = arith.truncf %42 : vector<8x8x128xf32> to vector<8x8x128xbf16>
    %c0_25 = arith.constant 0 : index
    %c0_26 = arith.constant 0 : index
    %c0_27 = arith.constant 0 : index
    %58 = vector.load %arg13[%c0_25, %c0_26, %c0_27] : memref<8x8x128xbf16, #tpu.memory_space<vmem>>, vector<8x8x128xbf16>
    tpu.vector_store %arg13[%c0_25, %c0_26, %c0_27], %57 {strides = array<i32>} : memref<8x8x128xbf16, #tpu.memory_space<vmem>>, vector<8x8x128xbf16>,
    %c0_28 = arith.constant 0 : index
    %c0_29 = arith.constant 0 : index
    %c0_30 = arith.constant 0 : index
    %59 = vector.load %arg5[%c0_28, %c0_29, %c0_30] : memref<1x1x128xf32, #tpu.memory_space<vmem>>, vector<1x1x128xf32>
    %60 = vector.broadcast %59 : vector<1x1x128xf32> to vector<8x8x128xf32>
    %61 = arith.addf %39, %60 : vector<8x8x128xf32>
    %62 = arith.truncf %61 : vector<8x8x128xf32> to vector<8x8x128xbf16>
    %c0_31 = arith.constant 0 : index
    %c0_32 = arith.constant 0 : index
    %c0_33 = arith.constant 0 : index
    %63 = vector.load %arg14[%c0_31, %c0_32, %c0_33] : memref<8x8x128xbf16, #tpu.memory_space<vmem>>, vector<8x8x128xbf16>
    tpu.vector_store %arg14[%c0_31, %c0_32, %c0_33], %62 {strides = array<i32>} : memref<8x8x128xbf16, #tpu.memory_space<vmem>>, vector<8x8x128xbf16>,
    %64 = arith.truncf %52 : vector<8x8x128xf32> to vector<8x8x128xbf16>
    %c0_34 = arith.constant 0 : index
    %c0_35 = arith.constant 0 : index
    %c0_36 = arith.constant 0 : index
    %65 = vector.load %arg15[%c0_34, %c0_35, %c0_36] : memref<8x8x128xbf16, #tpu.memory_space<vmem>>, vector<8x8x128xbf16>
    tpu.vector_store %arg15[%c0_34, %c0_35, %c0_36], %64 {strides = array<i32>} : memref<8x8x128xbf16, #tpu.memory_space<vmem>>, vector<8x8x128xbf16>,
    %66 = tpu.iota {dimensions = array<i32: 2>} : vector<8x8x128xi32>
    %67 = vector.shape_cast %5 : vector<8x8xi32> to vector<8x8x1xi32>
    %68 = vector.broadcast %67 : vector<8x8x1xi32> to vector<8x8x128xi32>
    %69 = arith.cmpi eq, %66, %68 : vector<8x8x128xi32>
    %cst_37 = arith.constant 0.000000e+00 : f32
    %70 = vector.broadcast %cst_37 : f32 to vector<8x8x128xf32>
    %71 = arith.select %69, %29, %70 : vector<8x8x128xi1>, vector<8x8x128xf32>
    %cst_38 = arith.constant dense<0.000000e+00> : vector<8x8xf32>
    %72 = vector.multi_reduction <add>, %71, %cst_38 [2] : vector<8x8x128xf32> to vector<8x8xf32>
    %cst_39 = arith.constant dense<0.000000e+00> : vector<8x8xf32>
    %73 = vector.multi_reduction <add>, %41, %cst_39 [2] : vector<8x8x1xf32> to vector<8x8xf32>
    %74 = arith.subf %73, %72 : vector<8x8xf32>
    %75 = arith.mulf %74, %3 : vector<8x8xf32>
    %76 = tpu.iota {dimensions = array<i32: 2>} : vector<8x8x128xi32>
    %77 = vector.shape_cast %7 : vector<8x8xi32> to vector<8x8x1xi32>
    %78 = vector.broadcast %77 : vector<8x8x1xi32> to vector<8x8x128xi32>
    %79 = arith.cmpi eq, %76, %78 : vector<8x8x128xi32>
    %cst_40 = arith.constant 0.000000e+00 : f32
    %80 = vector.broadcast %cst_40 : f32 to vector<8x8x128xf32>
    %81 = arith.select %79, %42, %80 : vector<8x8x128xi1>, vector<8x8x128xf32>
    %cst_41 = arith.constant dense<0.000000e+00> : vector<8x8xf32>
    %82 = vector.multi_reduction <add>, %81, %cst_41 [2] : vector<8x8x128xf32> to vector<8x8xf32>
    %cst_42 = arith.constant dense<0.000000e+00> : vector<8x8xf32>
    %83 = vector.multi_reduction <add>, %54, %cst_42 [2] : vector<8x8x1xf32> to vector<8x8xf32>
    %84 = arith.subf %83, %82 : vector<8x8xf32>
    %85 = arith.mulf %84, %3 : vector<8x8xf32>
    %86 = arith.addf %75, %85 : vector<8x8xf32>
    %cst_43 = arith.constant dense<0.000000e+00> : vector<8xf32>
    %87 = vector.multi_reduction <add>, %3, %cst_43 [1] : vector<8x8xf32> to vector<8xf32>
    %88 = vector.shape_cast %87 : vector<8xf32> to vector<8x1xf32>
    %cst_44 = arith.constant dense<0.000000e+00> : vector<8xf32>
    %89 = vector.multi_reduction <add>, %86, %cst_44 [1] : vector<8x8xf32> to vector<8xf32>
    %90 = vector.shape_cast %89 : vector<8xf32> to vector<8x1xf32>
    %cst_45 = arith.constant 9.99999982E-14 : f32
    %91 = vector.broadcast %cst_45 : f32 to vector<8x1xf32>
    %92 = arith.addf %88, %91 : vector<8x1xf32>
    %93 = arith.divf %90, %92 : vector<8x1xf32>
    %cst_46 = arith.constant 0.000000e+00 : f32
    %94 = vector.broadcast %cst_46 : f32 to vector<8x1xf32>
    %95 = arith.cmpf ogt, %88, %94 : vector<8x1xf32>
    %96 = arith.extui %95 : vector<8x1xi1> to vector<8x1xi32>
    %97 = arith.sitofp %96 : vector<8x1xi32> to vector<8x1xf32>
    %98 = vector.extract_strided_slice %42 {offsets = [0, 0, 1], sizes = [8, 8, 1], strides = [1, 1, 1]} : vector<8x8x128xf32> to vector<8x8x1xf32>
    %99 = arith.subf %98, %54 : vector<8x8x1xf32>
    %cst_47 = arith.constant dense<0.000000e+00> : vector<8x8xf32>
    %100 = vector.multi_reduction <add>, %99, %cst_47 [2] : vector<8x8x1xf32> to vector<8x8xf32>
    %101 = math.exp %100 : vector<8x8xf32>
    %102 = arith.mulf %101, %3 : vector<8x8xf32>
    %cst_48 = arith.constant dense<0xFF800000> : vector<8xf32>
    %103 = vector.multi_reduction <maximumf>, %102, %cst_48 [1] : vector<8x8xf32> to vector<8xf32>
    %104 = vector.shape_cast %103 : vector<8xf32> to vector<8x1xf32>
    %105 = tpu.iota {dimensions = array<i32: 2>} : vector<8x1x128xi32>
    %c0_i32 = arith.constant 0 : i32
    %106 = vector.broadcast %c0_i32 : i32 to vector<8x1x128xi32>
    %107 = arith.cmpi eq, %105, %106 : vector<8x1x128xi32>
    %108 = vector.shape_cast %104 : vector<8x1xf32> to vector<8x1x1xf32>
    %cst_49 = arith.constant 0.000000e+00 : f32
    %109 = vector.shape_cast %108 : vector<8x1x1xf32> to vector<8x1x1xf32>
    %110 = vector.broadcast %109 : vector<8x1x1xf32> to vector<8x1x128xf32>
    %111 = vector.broadcast %cst_49 : f32 to vector<8x1x128xf32>
    %112 = arith.select %107, %110, %111 : vector<8x1x128xi1>, vector<8x1x128xf32>
    %c1_i32 = arith.constant 1 : i32
    %113 = vector.broadcast %c1_i32 : i32 to vector<8x1x128xi32>
    %114 = arith.cmpi eq, %105, %113 : vector<8x1x128xi32>
    %115 = vector.shape_cast %93 : vector<8x1xf32> to vector<8x1x1xf32>
    %cst_50 = arith.constant 0.000000e+00 : f32
    %116 = vector.shape_cast %115 : vector<8x1x1xf32> to vector<8x1x1xf32>
    %117 = vector.broadcast %116 : vector<8x1x1xf32> to vector<8x1x128xf32>
    %118 = vector.broadcast %cst_50 : f32 to vector<8x1x128xf32>
    %119 = arith.select %114, %117, %118 : vector<8x1x128xi1>, vector<8x1x128xf32>
    %120 = arith.addf %112, %119 : vector<8x1x128xf32>
    %c2_i32 = arith.constant 2 : i32
    %121 = vector.broadcast %c2_i32 : i32 to vector<8x1x128xi32>
    %122 = arith.cmpi eq, %105, %121 : vector<8x1x128xi32>
    %123 = vector.shape_cast %97 : vector<8x1xf32> to vector<8x1x1xf32>
    %cst_51 = arith.constant 0.000000e+00 : f32
    %124 = vector.shape_cast %123 : vector<8x1x1xf32> to vector<8x1x1xf32>
    %125 = vector.broadcast %124 : vector<8x1x1xf32> to vector<8x1x128xf32>
    %126 = vector.broadcast %cst_51 : f32 to vector<8x1x128xf32>
    %127 = arith.select %122, %125, %126 : vector<8x1x128xi1>, vector<8x1x128xf32>
    %128 = arith.addf %120, %127 : vector<8x1x128xf32>
    %c0_52 = arith.constant 0 : index
    %c0_53 = arith.constant 0 : index
    %c0_54 = arith.constant 0 : index
    %129 = vector.load %arg16[%c0_52, %c0_53, %c0_54] : memref<8x1x128xf32, #tpu.memory_space<vmem>>, vector<8x1x128xf32>
    tpu.vector_store %arg16[%c0_52, %c0_53, %c0_54], %128 {strides = array<i32>} : memref<8x1x128xf32, #tpu.memory_space<vmem>>, vector<8x1x128xf32>,
    return
  }
  func.func @transform_0(%arg0: i32) -> (i32, i32) {
    %c0_i32 = arith.constant 0 : i32
    %c0_i32_0 = arith.constant 0 : i32
    return %arg0, %c0_i32 : i32, i32
  }
  func.func @transform_1(%arg0: i32) -> (i32, i32) {
    %c0_i32 = arith.constant 0 : i32
    %c0_i32_0 = arith.constant 0 : i32
    %c0_i32_1 = arith.constant 0 : i32
    return %c0_i32, %c0_i32_0 : i32, i32
  }
  func.func @transform_2(%arg0: i32) -> (i32, i32) {
    %c0_i32 = arith.constant 0 : i32
    %c0_i32_0 = arith.constant 0 : i32
    %c0_i32_1 = arith.constant 0 : i32
    return %c0_i32, %c0_i32_0 : i32, i32
  }
  func.func @transform_3(%arg0: i32) -> (i32, i32) {
    %c0_i32 = arith.constant 0 : i32
    %c0_i32_0 = arith.constant 0 : i32
    %c0_i32_1 = arith.constant 0 : i32
    return %c0_i32, %c0_i32_0 : i32, i32
  }
  func.func @transform_4(%arg0: i32) -> (i32, i32, i32) {
    %c0_i32 = arith.constant 0 : i32
    %c0_i32_0 = arith.constant 0 : i32
    %c0_i32_1 = arith.constant 0 : i32
    %c0_i32_2 = arith.constant 0 : i32
    return %c0_i32, %c0_i32_0, %c0_i32_1 : i32, i32, i32
  }
  func.func @transform_5(%arg0: i32) -> (i32, i32) {
    %c0_i32 = arith.constant 0 : i32
    %c0_i32_0 = arith.constant 0 : i32
    %c0_i32_1 = arith.constant 0 : i32
    return %c0_i32, %c0_i32_0 : i32, i32
  }
  func.func @transform_6(%arg0: i32) -> (i32, i32) {
    %c0_i32 = arith.constant 0 : i32
    %c0_i32_0 = arith.constant 0 : i32
    %c0_i32_1 = arith.constant 0 : i32
    return %c0_i32, %c0_i32_0 : i32, i32
  }
  func.func @transform_7(%arg0: i32) -> (i32, i32) {
    %c0_i32 = arith.constant 0 : i32
    %c0_i32_0 = arith.constant 0 : i32
    %c0_i32_1 = arith.constant 0 : i32
    return %c0_i32, %c0_i32_0 : i32, i32
  }
  func.func @transform_8(%arg0: i32) -> (i32, i32) {
    %c0_i32 = arith.constant 0 : i32
    %c0_i32_0 = arith.constant 0 : i32
    %c0_i32_1 = arith.constant 0 : i32
    return %c0_i32, %c0_i32_0 : i32, i32
  }
  func.func @transform_9(%arg0: i32) -> (i32, i32) {
    %c0_i32 = arith.constant 0 : i32
    %c0_i32_0 = arith.constant 0 : i32
    %c0_i32_1 = arith.constant 0 : i32
    return %c0_i32, %c0_i32_0 : i32, i32
  }
  func.func @transform_10(%arg0: i32) -> (i32, i32) {
    %c0_i32 = arith.constant 0 : i32
    %c0_i32_0 = arith.constant 0 : i32
    %c0_i32_1 = arith.constant 0 : i32
    return %c0_i32, %c0_i32_0 : i32, i32
  }
  func.func @transform_11(%arg0: i32) -> (i32, i32, i32) {
    %c0_i32 = arith.constant 0 : i32
    %c0_i32_0 = arith.constant 0 : i32
    %c0_i32_1 = arith.constant 0 : i32
    return %arg0, %c0_i32, %c0_i32_0 : i32, i32, i32
  }
  func.func @transform_12(%arg0: i32) -> (i32, i32, i32) {
    %c0_i32 = arith.constant 0 : i32
    %c0_i32_0 = arith.constant 0 : i32
    %c0_i32_1 = arith.constant 0 : i32
    return %arg0, %c0_i32, %c0_i32_0 : i32, i32, i32
  }
  func.func @transform_13(%arg0: i32) -> (i32, i32, i32) {
    %c0_i32 = arith.constant 0 : i32
    %c0_i32_0 = arith.constant 0 : i32
    %c0_i32_1 = arith.constant 0 : i32
    return %arg0, %c0_i32, %c0_i32_0 : i32, i32, i32
  }
  func.func @transform_14(%arg0: i32) -> (i32, i32, i32) {
    %c0_i32 = arith.constant 0 : i32
    %c0_i32_0 = arith.constant 0 : i32
    %c0_i32_1 = arith.constant 0 : i32
    return %arg0, %c0_i32, %c0_i32_0 : i32, i32, i32
  }
  func.func @transform_15(%arg0: i32) -> (i32, i32, i32) {
    %c0_i32 = arith.constant 0 : i32
    %c0_i32_0 = arith.constant 0 : i32
    %c0_i32_1 = arith.constant 0 : i32
    return %arg0, %c0_i32, %c0_i32_0 : i32, i32, i32
  }
}

module attributes {stable_mosaic.version = 11 : i64} {
  func.func @kernel(%arg0: i32, %arg1: memref<64x32xf32, #tpu.memory_space<vmem>>, %arg2: memref<16x8xf32, #tpu.memory_space<vmem>>, %arg3: memref<16x8xi32, #tpu.memory_space<vmem>>, %arg4: memref<16x8xi32, #tpu.memory_space<vmem>>, %arg5: memref<1x1x128xf32, #tpu.memory_space<vmem>>, %arg6: memref<32x256xbf16, #tpu.memory_space<vmem>>, %arg7: memref<1x256xf32, #tpu.memory_space<vmem>>, %arg8: memref<128x128xbf16, #tpu.memory_space<vmem>>, %arg9: memref<1x128xf32, #tpu.memory_space<vmem>>, %arg10: memref<128x128xbf16, #tpu.memory_space<vmem>>, %arg11: memref<1x128xf32, #tpu.memory_space<vmem>>, %arg12: memref<8x8x128xbf16, #tpu.memory_space<vmem>>, %arg13: memref<8x8x128xbf16, #tpu.memory_space<vmem>>, %arg14: memref<8x8x128xbf16, #tpu.memory_space<vmem>>, %arg15: memref<8x8x128xbf16, #tpu.memory_space<vmem>>, %arg16: memref<8x1x128xf32, #tpu.memory_space<vmem>>) attributes {dimension_semantics = [#tpu.dimension_semantics<parallel>], iteration_bounds = array<i64: 2>, scalar_prefetch = 0 : i64, scratch_operands = 0 : i64, tpu.core_type = #tpu.core_type<tc>, window_params = [{transform_indices = @transform_0, window_bounds = array<i64: 64, 32>}, {pipeline_mode = #tpu.pipeline_mode<synchronous>, transform_indices = @transform_1, window_bounds = array<i64: 16, 8>}, {pipeline_mode = #tpu.pipeline_mode<synchronous>, transform_indices = @transform_2, window_bounds = array<i64: 16, 8>}, {pipeline_mode = #tpu.pipeline_mode<synchronous>, transform_indices = @transform_3, window_bounds = array<i64: 16, 8>}, {pipeline_mode = #tpu.pipeline_mode<synchronous>, transform_indices = @transform_4, window_bounds = array<i64: 1, 1, 128>}, {pipeline_mode = #tpu.pipeline_mode<synchronous>, transform_indices = @transform_5, window_bounds = array<i64: 32, 256>}, {pipeline_mode = #tpu.pipeline_mode<synchronous>, transform_indices = @transform_6, window_bounds = array<i64: 1, 256>}, {pipeline_mode = #tpu.pipeline_mode<synchronous>, transform_indices = @transform_7, window_bounds = array<i64: 128, 128>}, {pipeline_mode = #tpu.pipeline_mode<synchronous>, transform_indices = @transform_8, window_bounds = array<i64: 1, 128>}, {pipeline_mode = #tpu.pipeline_mode<synchronous>, transform_indices = @transform_9, window_bounds = array<i64: 128, 128>}, {pipeline_mode = #tpu.pipeline_mode<synchronous>, transform_indices = @transform_10, window_bounds = array<i64: 1, 128>}, {transform_indices = @transform_11, window_bounds = array<i64: 8, 8, 128>}, {transform_indices = @transform_12, window_bounds = array<i64: 8, 8, 128>}, {transform_indices = @transform_13, window_bounds = array<i64: 8, 8, 128>}, {transform_indices = @transform_14, window_bounds = array<i64: 8, 8, 128>}, {transform_indices = @transform_15, window_bounds = array<i64: 8, 1, 128>}]} {
    %c8_i32 = arith.constant 8 : i32
    %0 = arith.muli %arg0, %c8_i32 : i32
    %1 = tpu.assume_multiple %0, 8 : i32
    %2 = arith.index_cast %1 : i32 to index
    %c0 = arith.constant 0 : index
    %3 = vector.load %arg2[%2, %c0] : memref<16x8xf32, #tpu.memory_space<vmem>>, vector<8x8xf32>
    %4 = arith.index_cast %1 : i32 to index
    %c0_0 = arith.constant 0 : index
    %5 = vector.load %arg3[%4, %c0_0] : memref<16x8xi32, #tpu.memory_space<vmem>>, vector<8x8xi32>
    %6 = arith.index_cast %1 : i32 to index
    %c0_1 = arith.constant 0 : index
    %7 = vector.load %arg4[%6, %c0_1] : memref<16x8xi32, #tpu.memory_space<vmem>>, vector<8x8xi32>
    %c0_2 = arith.constant 0 : index
    %c0_3 = arith.constant 0 : index
    %8 = vector.load %arg1[%c0_2, %c0_3] : memref<64x32xf32, #tpu.memory_space<vmem>>, vector<64x32xf32>
    %9 = arith.truncf %8 : vector<64x32xf32> to vector<64x32xbf16>
    %c0_4 = arith.constant 0 : index
    %c0_5 = arith.constant 0 : index
    %10 = vector.load %arg6[%c0_4, %c0_5] : memref<32x256xbf16, #tpu.memory_space<vmem>>, vector<32x256xbf16>
    %c0_6 = arith.constant 0 : index
    %c0_7 = arith.constant 0 : index
    %11 = vector.load %arg7[%c0_6, %c0_7] : memref<1x256xf32, #tpu.memory_space<vmem>>, vector<1x256xf32>
    %cst = arith.constant dense<0.000000e+00> : vector<64x256xf32>
    %12 = tpu.matmul %9, %10, %cst {dimension_numbers = #tpu.dot_dimension_numbers<[1], [0], [0], [1], [0, 0, 1, 1], [], []>} : vector<64x32xbf16>, vector<32x256xbf16>, vector<64x256xf32> -> vector<64x256xf32>
    %13 = vector.broadcast %11 : vector<1x256xf32> to vector<64x256xf32>
    %14 = arith.addf %12, %13 : vector<64x256xf32>
    %15 = vector.extract_strided_slice %14 {offsets = [0, 0], sizes = [64, 128], strides = [1, 1]} : vector<64x256xf32> to vector<64x128xf32>
    %16 = vector.extract_strided_slice %14 {offsets = [0, 128], sizes = [64, 128], strides = [1, 1]} : vector<64x256xf32> to vector<64x128xf32>
    %17 = arith.truncf %15 : vector<64x128xf32> to vector<64x128xbf16>
    %c0_8 = arith.constant 0 : index
    %c0_9 = arith.constant 0 : index
    %18 = vector.load %arg8[%c0_8, %c0_9] : memref<128x128xbf16, #tpu.memory_space<vmem>>, vector<128x128xbf16>
    %cst_10 = arith.constant dense<0.000000e+00> : vector<64x128xf32>
    %19 = tpu.matmul %17, %18, %cst_10 {dimension_numbers = #tpu.dot_dimension_numbers<[1], [0], [0], [1], [0, 0, 1, 1], [], []>} : vector<64x128xbf16>, vector<128x128xbf16>, vector<64x128xf32> -> vector<64x128xf32>
    %c0_11 = arith.constant 0 : index
    %c0_12 = arith.constant 0 : index
    %20 = vector.load %arg9[%c0_11, %c0_12] : memref<1x128xf32, #tpu.memory_space<vmem>>, vector<1x128xf32>
    %21 = vector.broadcast %20 : vector<1x128xf32> to vector<64x128xf32>
    %22 = arith.addf %19, %21 : vector<64x128xf32>
    %23 = arith.truncf %16 : vector<64x128xf32> to vector<64x128xbf16>
    %c0_13 = arith.constant 0 : index
    %c0_14 = arith.constant 0 : index
    %24 = vector.load %arg10[%c0_13, %c0_14] : memref<128x128xbf16, #tpu.memory_space<vmem>>, vector<128x128xbf16>
    %cst_15 = arith.constant dense<0.000000e+00> : vector<64x128xf32>
    %25 = tpu.matmul %23, %24, %cst_15 {dimension_numbers = #tpu.dot_dimension_numbers<[1], [0], [0], [1], [0, 0, 1, 1], [], []>} : vector<64x128xbf16>, vector<128x128xbf16>, vector<64x128xf32> -> vector<64x128xf32>
    %c0_16 = arith.constant 0 : index
    %c0_17 = arith.constant 0 : index
    %26 = vector.load %arg11[%c0_16, %c0_17] : memref<1x128xf32, #tpu.memory_space<vmem>>, vector<1x128xf32>
    %27 = vector.broadcast %26 : vector<1x128xf32> to vector<64x128xf32>
    %28 = arith.addf %25, %27 : vector<64x128xf32>
    %29 = vector.shape_cast %22 : vector<64x128xf32> to vector<8x8x128xf32>
    %cst_18 = arith.constant dense<0xFF800000> : vector<8x8xf32>
    %30 = vector.multi_reduction <maximumf>, %29, %cst_18 [2] : vector<8x8x128xf32> to vector<8x8xf32>
    %31 = vector.shape_cast %30 : vector<8x8xf32> to vector<8x8x1xf32>
    %32 = vector.broadcast %31 : vector<8x8x1xf32> to vector<8x8x128xf32>
    %33 = arith.subf %29, %32 : vector<8x8x128xf32>
    %34 = math.exp %33 : vector<8x8x128xf32>
    %cst_19 = arith.constant dense<0.000000e+00> : vector<8x8xf32>
    %35 = vector.multi_reduction <add>, %34, %cst_19 [2] : vector<8x8x128xf32> to vector<8x8xf32>
    %36 = vector.shape_cast %35 : vector<8x8xf32> to vector<8x8x1xf32>
    %37 = tpu.reciprocal %36 {approx = true} : vector<8x8x1xf32> -> vector<8x8x1xf32>
    %38 = vector.broadcast %37 : vector<8x8x1xf32> to vector<8x8x128xf32>
    %39 = arith.mulf %34, %38 : vector<8x8x128xf32>
    %40 = math.log %36 : vector<8x8x1xf32>
    %41 = arith.addf %40, %31 : vector<8x8x1xf32>
    %42 = vector.shape_cast %28 : vector<64x128xf32> to vector<8x8x128xf32>
    %cst_20 = arith.constant dense<0xFF800000> : vector<8x8xf32>
    %43 = vector.multi_reduction <maximumf>, %42, %cst_20 [2] : vector<8x8x128xf32> to vector<8x8xf32>
    %44 = vector.shape_cast %43 : vector<8x8xf32> to vector<8x8x1xf32>
    %45 = vector.broadcast %44 : vector<8x8x1xf32> to vector<8x8x128xf32>
    %46 = arith.subf %42, %45 : vector<8x8x128xf32>
    %47 = math.exp %46 : vector<8x8x128xf32>
    %cst_21 = arith.constant dense<0.000000e+00> : vector<8x8xf32>
    %48 = vector.multi_reduction <add>, %47, %cst_21 [2] : vector<8x8x128xf32> to vector<8x8xf32>
    %49 = vector.shape_cast %48 : vector<8x8xf32> to vector<8x8x1xf32>
    %50 = tpu.reciprocal %49 {approx = true} : vector<8x8x1xf32> -> vector<8x8x1xf32>
    %51 = vector.broadcast %50 : vector<8x8x1xf32> to vector<8x8x128xf32>
    %52 = arith.mulf %47, %51 : vector<8x8x128xf32>
    %53 = math.log %49 : vector<8x8x1xf32>
    %54 = arith.addf %53, %44 : vector<8x8x1xf32>
    %55 = arith.truncf %29 : vector<8x8x128xf32> to vector<8x8x128xbf16>
    %c0_22 = arith.constant 0 : index
    %c0_23 = arith.constant 0 : index
    %c0_24 = arith.constant 0 : index
    %56 = vector.load %arg12[%c0_22, %c0_23, %c0_24] : memref<8x8x128xbf16, #tpu.memory_space<vmem>>, vector<8x8x128xbf16>
    tpu.vector_store %arg12[%c0_22, %c0_23, %c0_24], %55 {strides = array<i32>} : memref<8x8x128xbf16, #tpu.memory_space<vmem>>, vector<8x8x128xbf16>,
    %57 = arith.truncf %42 : vector<8x8x128xf32> to vector<8x8x128xbf16>
    %c0_25 = arith.constant 0 : index
    %c0_26 = arith.constant 0 : index
    %c0_27 = arith.constant 0 : index
    %58 = vector.load %arg13[%c0_25, %c0_26, %c0_27] : memref<8x8x128xbf16, #tpu.memory_space<vmem>>, vector<8x8x128xbf16>
    tpu.vector_store %arg13[%c0_25, %c0_26, %c0_27], %57 {strides = array<i32>} : memref<8x8x128xbf16, #tpu.memory_space<vmem>>, vector<8x8x128xbf16>,
    %c0_28 = arith.constant 0 : index
    %c0_29 = arith.constant 0 : index
    %c0_30 = arith.constant 0 : index
    %59 = vector.load %arg5[%c0_28, %c0_29, %c0_30] : memref<1x1x128xf32, #tpu.memory_space<vmem>>, vector<1x1x128xf32>
    %60 = vector.broadcast %59 : vector<1x1x128xf32> to vector<8x8x128xf32>
    %61 = arith.addf %39, %60 : vector<8x8x128xf32>
    %62 = arith.truncf %61 : vector<8x8x128xf32> to vector<8x8x128xbf16>
    %c0_31 = arith.constant 0 : index
    %c0_32 = arith.constant 0 : index
    %c0_33 = arith.constant 0 : index
    %63 = vector.load %arg14[%c0_31, %c0_32, %c0_33] : memref<8x8x128xbf16, #tpu.memory_space<vmem>>, vector<8x8x128xbf16>
    tpu.vector_store %arg14[%c0_31, %c0_32, %c0_33], %62 {strides = array<i32>} : memref<8x8x128xbf16, #tpu.memory_space<vmem>>, vector<8x8x128xbf16>,
    %64 = arith.truncf %52 : vector<8x8x128xf32> to vector<8x8x128xbf16>
    %c0_34 = arith.constant 0 : index
    %c0_35 = arith.constant 0 : index
    %c0_36 = arith.constant 0 : index
    %65 = vector.load %arg15[%c0_34, %c0_35, %c0_36] : memref<8x8x128xbf16, #tpu.memory_space<vmem>>, vector<8x8x128xbf16>
    tpu.vector_store %arg15[%c0_34, %c0_35, %c0_36], %64 {strides = array<i32>} : memref<8x8x128xbf16, #tpu.memory_space<vmem>>, vector<8x8x128xbf16>,
    %66 = tpu.iota {dimensions = array<i32: 2>} : vector<8x8x128xi32>
    %67 = vector.shape_cast %5 : vector<8x8xi32> to vector<8x8x1xi32>
    %68 = vector.broadcast %67 : vector<8x8x1xi32> to vector<8x8x128xi32>
    %69 = arith.cmpi eq, %66, %68 : vector<8x8x128xi32>
    %cst_37 = arith.constant 0.000000e+00 : f32
    %70 = vector.broadcast %cst_37 : f32 to vector<8x8x128xf32>
    %71 = arith.select %69, %29, %70 : vector<8x8x128xi1>, vector<8x8x128xf32>
    %cst_38 = arith.constant dense<0.000000e+00> : vector<8x8xf32>
    %72 = vector.multi_reduction <add>, %71, %cst_38 [2] : vector<8x8x128xf32> to vector<8x8xf32>
    %cst_39 = arith.constant dense<0.000000e+00> : vector<8x8xf32>
    %73 = vector.multi_reduction <add>, %41, %cst_39 [2] : vector<8x8x1xf32> to vector<8x8xf32>
    %74 = arith.subf %73, %72 : vector<8x8xf32>
    %75 = arith.mulf %74, %3 : vector<8x8xf32>
    %76 = tpu.iota {dimensions = array<i32: 2>} : vector<8x8x128xi32>
    %77 = vector.shape_cast %7 : vector<8x8xi32> to vector<8x8x1xi32>
    %78 = vector.broadcast %77 : vector<8x8x1xi32> to vector<8x8x128xi32>
    %79 = arith.cmpi eq, %76, %78 : vector<8x8x128xi32>
    %cst_40 = arith.constant 0.000000e+00 : f32
    %80 = vector.broadcast %cst_40 : f32 to vector<8x8x128xf32>
    %81 = arith.select %79, %42, %80 : vector<8x8x128xi1>, vector<8x8x128xf32>
    %cst_41 = arith.constant dense<0.000000e+00> : vector<8x8xf32>
    %82 = vector.multi_reduction <add>, %81, %cst_41 [2] : vector<8x8x128xf32> to vector<8x8xf32>
    %cst_42 = arith.constant dense<0.000000e+00> : vector<8x8xf32>
    %83 = vector.multi_reduction <add>, %54, %cst_42 [2] : vector<8x8x1xf32> to vector<8x8xf32>
    %84 = arith.subf %83, %82 : vector<8x8xf32>
    %85 = arith.mulf %84, %3 : vector<8x8xf32>
    %86 = arith.addf %75, %85 : vector<8x8xf32>
    %cst_43 = arith.constant dense<0.000000e+00> : vector<8xf32>
    %87 = vector.multi_reduction <add>, %3, %cst_43 [1] : vector<8x8xf32> to vector<8xf32>
    %88 = vector.shape_cast %87 : vector<8xf32> to vector<8x1xf32>
    %cst_44 = arith.constant dense<0.000000e+00> : vector<8xf32>
    %89 = vector.multi_reduction <add>, %86, %cst_44 [1] : vector<8x8xf32> to vector<8xf32>
    %90 = vector.shape_cast %89 : vector<8xf32> to vector<8x1xf32>
    %cst_45 = arith.constant 9.99999982E-14 : f32
    %91 = vector.broadcast %cst_45 : f32 to vector<8x1xf32>
    %92 = arith.addf %88, %91 : vector<8x1xf32>
    %93 = arith.divf %90, %92 : vector<8x1xf32>
    %cst_46 = arith.constant 0.000000e+00 : f32
    %94 = vector.broadcast %cst_46 : f32 to vector<8x1xf32>
    %95 = arith.cmpf ogt, %88, %94 : vector<8x1xf32>
    %96 = arith.extui %95 : vector<8x1xi1> to vector<8x1xi32>
    %97 = arith.sitofp %96 : vector<8x1xi32> to vector<8x1xf32>
    %98 = vector.extract_strided_slice %42 {offsets = [0, 0, 1], sizes = [8, 8, 1], strides = [1, 1, 1]} : vector<8x8x128xf32> to vector<8x8x1xf32>
    %99 = arith.subf %98, %54 : vector<8x8x1xf32>
    %cst_47 = arith.constant dense<0.000000e+00> : vector<8x8xf32>
    %100 = vector.multi_reduction <add>, %99, %cst_47 [2] : vector<8x8x1xf32> to vector<8x8xf32>
    %101 = math.exp %100 : vector<8x8xf32>
    %102 = arith.mulf %101, %3 : vector<8x8xf32>
    %cst_48 = arith.constant dense<0xFF800000> : vector<8xf32>
    %103 = vector.multi_reduction <maximumf>, %102, %cst_48 [1] : vector<8x8xf32> to vector<8xf32>
    %104 = vector.shape_cast %103 : vector<8xf32> to vector<8x1xf32>
    %105 = tpu.iota {dimensions = array<i32: 2>} : vector<8x1x128xi32>
    %c0_i32 = arith.constant 0 : i32
    %106 = vector.broadcast %c0_i32 : i32 to vector<8x1x128xi32>
    %107 = arith.cmpi eq, %105, %106 : vector<8x1x128xi32>
    %108 = vector.shape_cast %104 : vector<8x1xf32> to vector<8x1x1xf32>
    %cst_49 = arith.constant 0.000000e+00 : f32
    %109 = vector.shape_cast %108 : vector<8x1x1xf32> to vector<8x1x1xf32>
    %110 = vector.broadcast %109 : vector<8x1x1xf32> to vector<8x1x128xf32>
    %111 = vector.broadcast %cst_49 : f32 to vector<8x1x128xf32>
    %112 = arith.select %107, %110, %111 : vector<8x1x128xi1>, vector<8x1x128xf32>
    %c1_i32 = arith.constant 1 : i32
    %113 = vector.broadcast %c1_i32 : i32 to vector<8x1x128xi32>
    %114 = arith.cmpi eq, %105, %113 : vector<8x1x128xi32>
    %115 = vector.shape_cast %93 : vector<8x1xf32> to vector<8x1x1xf32>
    %cst_50 = arith.constant 0.000000e+00 : f32
    %116 = vector.shape_cast %115 : vector<8x1x1xf32> to vector<8x1x1xf32>
    %117 = vector.broadcast %116 : vector<8x1x1xf32> to vector<8x1x128xf32>
    %118 = vector.broadcast %cst_50 : f32 to vector<8x1x128xf32>
    %119 = arith.select %114, %117, %118 : vector<8x1x128xi1>, vector<8x1x128xf32>
    %120 = arith.addf %112, %119 : vector<8x1x128xf32>
    %c2_i32 = arith.constant 2 : i32
    %121 = vector.broadcast %c2_i32 : i32 to vector<8x1x128xi32>
    %122 = arith.cmpi eq, %105, %121 : vector<8x1x128xi32>
    %123 = vector.shape_cast %97 : vector<8x1xf32> to vector<8x1x1xf32>
    %cst_51 = arith.constant 0.000000e+00 : f32
    %124 = vector.shape_cast %123 : vector<8x1x1xf32> to vector<8x1x1xf32>
    %125 = vector.broadcast %124 : vector<8x1x1xf32> to vector<8x1x128xf32>
    %126 = vector.broadcast %cst_51 : f32 to vector<8x1x128xf32>
    %127 = arith.select %122, %125, %126 : vector<8x1x128xi1>, vector<8x1x128xf32>
    %128 = arith.addf %120, %127 : vector<8x1x128xf32>
    %c0_52 = arith.constant 0 : index
    %c0_53 = arith.constant 0 : index
    %c0_54 = arith.constant 0 : index
    %129 = vector.load %arg16[%c0_52, %c0_53, %c0_54] : memref<8x1x128xf32, #tpu.memory_space<vmem>>, vector<8x1x128xf32>
    tpu.vector_store %arg16[%c0_52, %c0_53, %c0_54], %128 {strides = array<i32>} : memref<8x1x128xf32, #tpu.memory_space<vmem>>, vector<8x1x128xf32>,
    return
  }
  func.func @transform_0(%arg0: i32) -> (i32, i32) {
    %c0_i32 = arith.constant 0 : i32
    %c0_i32_0 = arith.constant 0 : i32
    return %arg0, %c0_i32 : i32, i32
  }
  func.func @transform_1(%arg0: i32) -> (i32, i32) {
    %c0_i32 = arith.constant 0 : i32
    %c0_i32_0 = arith.constant 0 : i32
    %c0_i32_1 = arith.constant 0 : i32
    return %c0_i32, %c0_i32_0 : i32, i32
  }
  func.func @transform_2(%arg0: i32) -> (i32, i32) {
    %c0_i32 = arith.constant 0 : i32
    %c0_i32_0 = arith.constant 0 : i32
    %c0_i32_1 = arith.constant 0 : i32
    return %c0_i32, %c0_i32_0 : i32, i32
  }
  func.func @transform_3(%arg0: i32) -> (i32, i32) {
    %c0_i32 = arith.constant 0 : i32
    %c0_i32_0 = arith.constant 0 : i32
    %c0_i32_1 = arith.constant 0 : i32
    return %c0_i32, %c0_i32_0 : i32, i32
  }
  func.func @transform_4(%arg0: i32) -> (i32, i32, i32) {
    %c0_i32 = arith.constant 0 : i32
    %c0_i32_0 = arith.constant 0 : i32
    %c0_i32_1 = arith.constant 0 : i32
    %c0_i32_2 = arith.constant 0 : i32
    return %c0_i32, %c0_i32_0, %c0_i32_1 : i32, i32, i32
  }
  func.func @transform_5(%arg0: i32) -> (i32, i32) {
    %c0_i32 = arith.constant 0 : i32
    %c0_i32_0 = arith.constant 0 : i32
    %c0_i32_1 = arith.constant 0 : i32
    return %c0_i32, %c0_i32_0 : i32, i32
  }
  func.func @transform_6(%arg0: i32) -> (i32, i32) {
    %c0_i32 = arith.constant 0 : i32
    %c0_i32_0 = arith.constant 0 : i32
    %c0_i32_1 = arith.constant 0 : i32
    return %c0_i32, %c0_i32_0 : i32, i32
  }
  func.func @transform_7(%arg0: i32) -> (i32, i32) {
    %c0_i32 = arith.constant 0 : i32
    %c0_i32_0 = arith.constant 0 : i32
    %c0_i32_1 = arith.constant 0 : i32
    return %c0_i32, %c0_i32_0 : i32, i32
  }
  func.func @transform_8(%arg0: i32) -> (i32, i32) {
    %c0_i32 = arith.constant 0 : i32
    %c0_i32_0 = arith.constant 0 : i32
    %c0_i32_1 = arith.constant 0 : i32
    return %c0_i32, %c0_i32_0 : i32, i32
  }
  func.func @transform_9(%arg0: i32) -> (i32, i32) {
    %c0_i32 = arith.constant 0 : i32
    %c0_i32_0 = arith.constant 0 : i32
    %c0_i32_1 = arith.constant 0 : i32
    return %c0_i32, %c0_i32_0 : i32, i32
  }
  func.func @transform_10(%arg0: i32) -> (i32, i32) {
    %c0_i32 = arith.constant 0 : i32
    %c0_i32_0 = arith.constant 0 : i32
    %c0_i32_1 = arith.constant 0 : i32
    return %c0_i32, %c0_i32_0 : i32, i32
  }
  func.func @transform_11(%arg0: i32) -> (i32, i32, i32) {
    %c0_i32 = arith.constant 0 : i32
    %c0_i32_0 = arith.constant 0 : i32
    %c0_i32_1 = arith.constant 0 : i32
    return %arg0, %c0_i32, %c0_i32_0 : i32, i32, i32
  }
  func.func @transform_12(%arg0: i32) -> (i32, i32, i32) {
    %c0_i32 = arith.constant 0 : i32
    %c0_i32_0 = arith.constant 0 : i32
    %c0_i32_1 = arith.constant 0 : i32
    return %arg0, %c0_i32, %c0_i32_0 : i32, i32, i32
  }
  func.func @transform_13(%arg0: i32) -> (i32, i32, i32) {
    %c0_i32 = arith.constant 0 : i32
    %c0_i32_0 = arith.constant 0 : i32
    %c0_i32_1 = arith.constant 0 : i32
    return %arg0, %c0_i32, %c0_i32_0 : i32, i32, i32
  }
  func.func @transform_14(%arg0: i32) -> (i32, i32, i32) {
    %c0_i32 = arith.constant 0 : i32
    %c0_i32_0 = arith.constant 0 : i32
    %c0_i32_1 = arith.constant 0 : i32
    return %arg0, %c0_i32, %c0_i32_0 : i32, i32, i32
  }
  func.func @transform_15(%arg0: i32) -> (i32, i32, i32) {
    %c0_i32 = arith.constant 0 : i32
    %c0_i32_0 = arith.constant 0 : i32
    %c0_i32_1 = arith.constant 0 : i32
    return %arg0, %c0_i32, %c0_i32_0 : i32, i32, i32
  }
}

</mosaic_0001>

<llo_original>
// kernel: tpu_custom_call.1
$region0: #{tpu_custom_call.1}
  #allocation0 [shape = 'u32[]', space=smem, size = 0x4, offset = 0x4, fixed_abs, tag = 'smem constant byte address 0x4 - core index']
  #allocation1 [shape = 'u32[144,128]{1,0:T(1,128)}', space=vmem, size = 0x12000, scoped, tag = 'internal scratch']
  %s0 = inlined_call_operand.vmem [shape: f32[128,32], index: 0, kind: input, shape index: {}]
  %s1 = inlined_call_operand.vmem [shape: f32[16,8], index: 1, kind: input, shape index: {}]
  %s2 = inlined_call_operand.vmem [shape: s32[16,8], index: 2, kind: input, shape index: {}]
  %s3 = inlined_call_operand.vmem [shape: s32[16,8], index: 3, kind: input, shape index: {}]
  %s4 = inlined_call_operand.vmem [shape: f32[1,1,128], index: 4, kind: input, shape index: {}]
  %s5 = inlined_call_operand.vmem [shape: bf16[32,256], index: 5, kind: input, shape index: {}]
  %s6 = inlined_call_operand.vmem [shape: f32[1,256], index: 6, kind: input, shape index: {}]
  %s7 = inlined_call_operand.vmem [shape: bf16[128,128], index: 7, kind: input, shape index: {}]
  %s8 = inlined_call_operand.vmem [shape: f32[1,128], index: 8, kind: input, shape index: {}]
  %s9 = inlined_call_operand.vmem [shape: bf16[128,128], index: 9, kind: input, shape index: {}]
  %s10 = inlined_call_operand.vmem [shape: f32[1,128], index: 10, kind: input, shape index: {}]
  %s11 = inlined_call_operand.hbm [shape: bf16[16,8,128], index: 11, kind: output, shape index: {0}]
  %s12 = inlined_call_operand.hbm [shape: bf16[16,8,128], index: 12, kind: output, shape index: {1}]
  %s13 = inlined_call_operand.hbm [shape: bf16[16,8,128], index: 13, kind: output, shape index: {2}]
  %s14 = inlined_call_operand.hbm [shape: bf16[16,8,128], index: 14, kind: output, shape index: {3}]
  %s15 = inlined_call_operand.hbm [shape: f32[16,1,128], index: 15, kind: output, shape index: {4}]
  %16 = xla_tuple %s11, %s12, %s13, %s14, %s15
  %s17 = sld [smem:[#allocation0]]
  $region109: #{tpu_custom_call.1} parent=0
    _
  %s19 = ssub.s32 1, %s17
  %s20 = scalar_select 0, %s19, %s17
  $region1: #{tpu_custom_call.1} parent=0
    #allocation2 [shape = 'u8[32768]{0}', space=vmem, size = 0x8000, scoped, tag = 'output window, operand 0']
    #allocation3 [shape = 's32[2]{0}', space=sflag, size = 0x8, scoped, tag = 'scoped memory for tpu_custom_call.1']
    #allocation4 [shape = 'u8[32768]{0}', space=vmem, size = 0x8000, scoped, tag = 'output window, operand 1']
    #allocation5 [shape = 's32[2]{0}', space=sflag, size = 0x8, scoped, tag = 'scoped memory for tpu_custom_call.1']
    #allocation6 [shape = 'u8[32768]{0}', space=vmem, size = 0x8000, scoped, tag = 'output window, operand 2']
    #allocation7 [shape = 'u8[32768]{0}', space=vmem, size = 0x8000, scoped, tag = 'output window, operand 3']
    #allocation8 [shape = 's32[2]{0}', space=sflag, size = 0x8, scoped, tag = 'scoped memory for tpu_custom_call.1']
    #allocation9 [shape = 'u8[8192]{0}', space=vmem, size = 0x2000, scoped, tag = 'output window, operand 4']
    %21 = vsyncpa [#allocation3], 0
    %s22 = scalar_lea.sflag [#allocation3], 1
    %23 = vsyncpa %s22, 0
    %24 = vsyncpa [#allocation5], 0
    %s25 = scalar_lea.sflag [#allocation5], 1
    %26 = vsyncpa %s25, 0
    %27 = vsyncpa [#allocation8], 0
    %s28 = scalar_lea.sflag [#allocation8], 1
    %29 = vsyncpa %s28, 0
    loop: start=0, step=1, limit=4
    $region2: #{tpu_custom_call.1} parent=1 // loop_pre_header
      _
    $region3: #{tpu_custom_call.1} parent=1 // loop_header
      %s31 = sphi 0, %s35
      %p32 = scmp.ge.s32.totalorder %s31, 4
      %s41 = sphi 0, %s43
      %s44 = sphi 0, %s41
      %s45 = sphi 0, %s44
      %s61 = sphi 0, %s45
      %s65 = sphi 0, %s65
      %s67 = sphi 0, %s65
      %s68 = sphi 0, %s67
      %s82 = sphi 0, %s68
      %s86 = sphi 0, %s86
      %s88 = sphi 0, %s86
      %s89 = sphi 0, %s88
      %s103 = sphi 0, %s89
      %s107 = sphi 0, %s107
      %s109 = sphi 0, %s107
      %s110 = sphi 0, %s109
      %s124 = sphi 0, %s110
      %s128 = sphi 0, %s128
      %s130 = sphi 0, %s128
      %s131 = sphi 0, %s130
      %s145 = sphi 0, %s131
      %s149 = sphi 0, %s149
      %s151 = sphi 0, %s149
      %s152 = sphi 0, %s151
      %s166 = sphi 0, %s152
      %s170 = sphi 0, %s170
      %s172 = sphi 0, %s170
      %s173 = sphi 0, %s172
      %s187 = sphi 0, %s173
      %s191 = sphi 0, %s191
      %s193 = sphi 0, %s191
      %s194 = sphi 0, %s193
      %s208 = sphi 0, %s194
      %s212 = sphi 0, %s212
      %s214 = sphi 0, %s212
      %s215 = sphi 0, %s214
      %s229 = sphi 0, %s215
      %s233 = sphi 0, %s233
      %s235 = sphi 0, %s233
      %s236 = sphi 0, %s235
      %s250 = sphi 0, %s236
      %s254 = sphi 0, %s254
      %s256 = sphi 0, %s254
      %s257 = sphi 0, %s256
      %s271 = sphi 0, %s257
      %s277 = sphi 0, %s279
      %s280 = sphi 0, %s277
      %s281 = sphi 0, %s280
      %s297 = sphi 0, %s281
      %s303 = sphi 0, %s305
      %s306 = sphi 0, %s303
      %s307 = sphi 0, %s306
      %s323 = sphi 0, %s307
      %s329 = sphi 0, %s331
      %s332 = sphi 0, %s329
      %s333 = sphi 0, %s332
      %s349 = sphi 0, %s333
      %s355 = sphi 0, %s357
      %s358 = sphi 0, %s355
      %s359 = sphi 0, %s358
      %s375 = sphi 0, %s359
      %s381 = sphi 0, %s383
      %s384 = sphi 0, %s381
      %s385 = sphi 0, %s384
      %s401 = sphi 0, %s385
    $region4: #{tpu_custom_call.1} parent=1 // loop_header_branch
      %34 = sbr.rel (%p32) target = $region8
    $region5: #{tpu_custom_call.1} parent=1 // loop_body
      %s36 = ssub.s32 %s31, 1
      %s37 = ssub.s32 %s31, 2
      %s38 = sadd.s32 %s31, 1
      %s39 = ssub.s32 %s31, %s38
      %p40 = scmp.eq.s32.totalorder %s39, 0
      %s42 = sadd.s32 %s41, 1
      %s43 = scalar_select %p40, %s41, %s42
      %p46 = pneg %p40
      %p47 = scmp.eq.s32.totalorder %s31, 1
      %p48 = por %p46, %p47
      %p49 = scmp.ne.s32.totalorder %s41, %s44
      %p50 = scmp.eq.s32.totalorder %s31, 0
      %p51 = por %p49, %p50
      %p52 = scmp.ne.s32.totalorder %s41, %s44
      %p53 = scmp.eq.s32.totalorder %s36, 1
      %p54 = por %p52, %p53
      %p55 = scmp.ne.s32.totalorder %s44, %s45
      %p56 = scmp.eq.s32.totalorder %s36, 0
      %p57 = por %p55, %p56
      %p58 = scmp.ne.s32.totalorder %s44, %s45
      %p59 = scmp.eq.s32.totalorder %s37, 1
      %p60 = por %p58, %p59
      %p62 = scmp.ne.s32.totalorder %s45, %s61
      %p63 = scmp.eq.s32.totalorder %s37, 0
      %p64 = por %p62, %p63
      %s66 = sadd.s32 %s65, 1
      %p69 = scmp.eq.s32.totalorder %s31, 1
      %p70 = scmp.ne.s32.totalorder %s65, %s67
      %p71 = scmp.eq.s32.totalorder %s31, 0
      %p72 = por %p70, %p71
      %p73 = scmp.ne.s32.totalorder %s65, %s67
      %p74 = scmp.eq.s32.totalorder %s36, 1
      %p75 = por %p73, %p74
      %p76 = scmp.ne.s32.totalorder %s67, %s68
      %p77 = scmp.eq.s32.totalorder %s36, 0
      %p78 = por %p76, %p77
      %p79 = scmp.ne.s32.totalorder %s67, %s68
      %p80 = scmp.eq.s32.totalorder %s37, 1
      %p81 = por %p79, %p80
      %p83 = scmp.ne.s32.totalorder %s68, %s82
      %p84 = scmp.eq.s32.totalorder %s37, 0
      %p85 = por %p83, %p84
      %s87 = sadd.s32 %s86, 1
      %p90 = scmp.eq.s32.totalorder %s31, 1
      %p91 = scmp.ne.s32.totalorder %s86, %s88
      %p92 = scmp.eq.s32.totalorder %s31, 0
      %p93 = por %p91, %p92
      %p94 = scmp.ne.s32.totalorder %s86, %s88
      %p95 = scmp.eq.s32.totalorder %s36, 1
      %p96 = por %p94, %p95
      %p97 = scmp.ne.s32.totalorder %s88, %s89
      %p98 = scmp.eq.s32.totalorder %s36, 0
      %p99 = por %p97, %p98
      %p100 = scmp.ne.s32.totalorder %s88, %s89
      %p101 = scmp.eq.s32.totalorder %s37, 1
      %p102 = por %p100, %p101
      %p104 = scmp.ne.s32.totalorder %s89, %s103
      %p105 = scmp.eq.s32.totalorder %s37, 0
      %p106 = por %p104, %p105
      %s108 = sadd.s32 %s107, 1
      %p111 = scmp.eq.s32.totalorder %s31, 1
      %p112 = scmp.ne.s32.totalorder %s107, %s109
      %p113 = scmp.eq.s32.totalorder %s31, 0
      %p114 = por %p112, %p113
      %p115 = scmp.ne.s32.totalorder %s107, %s109
      %p116 = scmp.eq.s32.totalorder %s36, 1
      %p117 = por %p115, %p116
      %p118 = scmp.ne.s32.totalorder %s109, %s110
      %p119 = scmp.eq.s32.totalorder %s36, 0
      %p120 = por %p118, %p119
      %p121 = scmp.ne.s32.totalorder %s109, %s110
      %p122 = scmp.eq.s32.totalorder %s37, 1
      %p123 = por %p121, %p122
      %p125 = scmp.ne.s32.totalorder %s110, %s124
      %p126 = scmp.eq.s32.totalorder %s37, 0
      %p127 = por %p125, %p126
      %s129 = sadd.s32 %s128, 1
      %p132 = scmp.eq.s32.totalorder %s31, 1
      %p133 = scmp.ne.s32.totalorder %s128, %s130
      %p134 = scmp.eq.s32.totalorder %s31, 0
      %p135 = por %p133, %p134
      %p136 = scmp.ne.s32.totalorder %s128, %s130
      %p137 = scmp.eq.s32.totalorder %s36, 1
      %p138 = por %p136, %p137
      %p139 = scmp.ne.s32.totalorder %s130, %s131
      %p140 = scmp.eq.s32.totalorder %s36, 0
      %p141 = por %p139, %p140
      %p142 = scmp.ne.s32.totalorder %s130, %s131
      %p143 = scmp.eq.s32.totalorder %s37, 1
      %p144 = por %p142, %p143
      %p146 = scmp.ne.s32.totalorder %s131, %s145
      %p147 = scmp.eq.s32.totalorder %s37, 0
      %p148 = por %p146, %p147
      %s150 = sadd.s32 %s149, 1
      %p153 = scmp.eq.s32.totalorder %s31, 1
      %p154 = scmp.ne.s32.totalorder %s149, %s151
      %p155 = scmp.eq.s32.totalorder %s31, 0
      %p156 = por %p154, %p155
      %p157 = scmp.ne.s32.totalorder %s149, %s151
      %p158 = scmp.eq.s32.totalorder %s36, 1
      %p159 = por %p157, %p158
      %p160 = scmp.ne.s32.totalorder %s151, %s152
      %p161 = scmp.eq.s32.totalorder %s36, 0
      %p162 = por %p160, %p161
      %p163 = scmp.ne.s32.totalorder %s151, %s152
      %p164 = scmp.eq.s32.totalorder %s37, 1
      %p165 = por %p163, %p164
      %p167 = scmp.ne.s32.totalorder %s152, %s166
      %p168 = scmp.eq.s32.totalorder %s37, 0
      %p169 = por %p167, %p168
      %s171 = sadd.s32 %s170, 1
      %p174 = scmp.eq.s32.totalorder %s31, 1
      %p175 = scmp.ne.s32.totalorder %s170, %s172
      %p176 = scmp.eq.s32.totalorder %s31, 0
      %p177 = por %p175, %p176
      %p178 = scmp.ne.s32.totalorder %s170, %s172
      %p179 = scmp.eq.s32.totalorder %s36, 1
      %p180 = por %p178, %p179
      %p181 = scmp.ne.s32.totalorder %s172, %s173
      %p182 = scmp.eq.s32.totalorder %s36, 0
      %p183 = por %p181, %p182
      %p184 = scmp.ne.s32.totalorder %s172, %s173
      %p185 = scmp.eq.s32.totalorder %s37, 1
      %p186 = por %p184, %p185
      %p188 = scmp.ne.s32.totalorder %s173, %s187
      %p189 = scmp.eq.s32.totalorder %s37, 0
      %p190 = por %p188, %p189
      %s192 = sadd.s32 %s191, 1
      %p195 = scmp.eq.s32.totalorder %s31, 1
      %p196 = scmp.ne.s32.totalorder %s191, %s193
      %p197 = scmp.eq.s32.totalorder %s31, 0
      %p198 = por %p196, %p197
      %p199 = scmp.ne.s32.totalorder %s191, %s193
      %p200 = scmp.eq.s32.totalorder %s36, 1
      %p201 = por %p199, %p200
      %p202 = scmp.ne.s32.totalorder %s193, %s194
      %p203 = scmp.eq.s32.totalorder %s36, 0
      %p204 = por %p202, %p203
      %p205 = scmp.ne.s32.totalorder %s193, %s194
      %p206 = scmp.eq.s32.totalorder %s37, 1
      %p207 = por %p205, %p206
      %p209 = scmp.ne.s32.totalorder %s194, %s208
      %p210 = scmp.eq.s32.totalorder %s37, 0
      %p211 = por %p209, %p210
      %s213 = sadd.s32 %s212, 1
      %p216 = scmp.eq.s32.totalorder %s31, 1
      %p217 = scmp.ne.s32.totalorder %s212, %s214
      %p218 = scmp.eq.s32.totalorder %s31, 0
      %p219 = por %p217, %p218
      %p220 = scmp.ne.s32.totalorder %s212, %s214
      %p221 = scmp.eq.s32.totalorder %s36, 1
      %p222 = por %p220, %p221
      %p223 = scmp.ne.s32.totalorder %s214, %s215
      %p224 = scmp.eq.s32.totalorder %s36, 0
      %p225 = por %p223, %p224
      %p226 = scmp.ne.s32.totalorder %s214, %s215
      %p227 = scmp.eq.s32.totalorder %s37, 1
      %p228 = por %p226, %p227
      %p230 = scmp.ne.s32.totalorder %s215, %s229
      %p231 = scmp.eq.s32.totalorder %s37, 0
      %p232 = por %p230, %p231
      %s234 = sadd.s32 %s233, 1
      %p237 = scmp.eq.s32.totalorder %s31, 1
      %p238 = scmp.ne.s32.totalorder %s233, %s235
      %p239 = scmp.eq.s32.totalorder %s31, 0
      %p240 = por %p238, %p239
      %p241 = scmp.ne.s32.totalorder %s233, %s235
      %p242 = scmp.eq.s32.totalorder %s36, 1
      %p243 = por %p241, %p242
      %p244 = scmp.ne.s32.totalorder %s235, %s236
      %p245 = scmp.eq.s32.totalorder %s36, 0
      %p246 = por %p244, %p245
      %p247 = scmp.ne.s32.totalorder %s235, %s236
      %p248 = scmp.eq.s32.totalorder %s37, 1
      %p249 = por %p247, %p248
      %p251 = scmp.ne.s32.totalorder %s236, %s250
      %p252 = scmp.eq.s32.totalorder %s37, 0
      %p253 = por %p251, %p252
      %s255 = sadd.s32 %s254, 1
      %p258 = scmp.eq.s32.totalorder %s31, 1
      %p259 = scmp.ne.s32.totalorder %s254, %s256
      %p260 = scmp.eq.s32.totalorder %s31, 0
      %p261 = por %p259, %p260
      %p262 = scmp.ne.s32.totalorder %s254, %s256
      %p263 = scmp.eq.s32.totalorder %s36, 1
      %p264 = por %p262, %p263
      %p265 = scmp.ne.s32.totalorder %s256, %s257
      %p266 = scmp.eq.s32.totalorder %s36, 0
      %p267 = por %p265, %p266
      %p268 = scmp.ne.s32.totalorder %s256, %s257
      %p269 = scmp.eq.s32.totalorder %s37, 1
      %p270 = por %p268, %p269
      %p272 = scmp.ne.s32.totalorder %s257, %s271
      %p273 = scmp.eq.s32.totalorder %s37, 0
      %p274 = por %p272, %p273
      %s275 = ssub.s32 %s31, %s38
      %p276 = scmp.eq.s32.totalorder %s275, 0
      %s278 = sadd.s32 %s277, 1
      %s279 = scalar_select %p276, %s277, %s278
      %p282 = pneg %p276
      %p283 = scmp.eq.s32.totalorder %s31, 1
      %p284 = por %p282, %p283
      %p285 = scmp.ne.s32.totalorder %s277, %s280
      %p286 = scmp.eq.s32.totalorder %s31, 0
      %p287 = por %p285, %p286
      %p288 = scmp.ne.s32.totalorder %s277, %s280
      %p289 = scmp.eq.s32.totalorder %s36, 1
      %p290 = por %p288, %p289
      %p291 = scmp.ne.s32.totalorder %s280, %s281
      %p292 = scmp.eq.s32.totalorder %s36, 0
      %p293 = por %p291, %p292
      %p294 = scmp.ne.s32.totalorder %s280, %s281
      %p295 = scmp.eq.s32.totalorder %s37, 1
      %p296 = por %p294, %p295
      %p298 = scmp.ne.s32.totalorder %s281, %s297
      %p299 = scmp.eq.s32.totalorder %s37, 0
      %p300 = por %p298, %p299
      %s301 = ssub.s32 %s31, %s38
      %p302 = scmp.eq.s32.totalorder %s301, 0
      %s304 = sadd.s32 %s303, 1
      %s305 = scalar_select %p302, %s303, %s304
      %p308 = pneg %p302
      %p309 = scmp.eq.s32.totalorder %s31, 1
      %p310 = por %p308, %p309
      %p311 = scmp.ne.s32.totalorder %s303, %s306
      %p312 = scmp.eq.s32.totalorder %s31, 0
      %p313 = por %p311, %p312
      %p314 = scmp.ne.s32.totalorder %s303, %s306
      %p315 = scmp.eq.s32.totalorder %s36, 1
      %p316 = por %p314, %p315
      %p317 = scmp.ne.s32.totalorder %s306, %s307
      %p318 = scmp.eq.s32.totalorder %s36, 0
      %p319 = por %p317, %p318
      %p320 = scmp.ne.s32.totalorder %s306, %s307
      %p321 = scmp.eq.s32.totalorder %s37, 1
      %p322 = por %p320, %p321
      %p324 = scmp.ne.s32.totalorder %s307, %s323
      %p325 = scmp.eq.s32.totalorder %s37, 0
      %p326 = por %p324, %p325
      %s327 = ssub.s32 %s31, %s38
      %p328 = scmp.eq.s32.totalorder %s327, 0
      %s330 = sadd.s32 %s329, 1
      %s331 = scalar_select %p328, %s329, %s330
      %p334 = pneg %p328
      %p335 = scmp.eq.s32.totalorder %s31, 1
      %p336 = por %p334, %p335
      %p337 = scmp.ne.s32.totalorder %s329, %s332
      %p338 = scmp.eq.s32.totalorder %s31, 0
      %p339 = por %p337, %p338
      %p340 = scmp.ne.s32.totalorder %s329, %s332
      %p341 = scmp.eq.s32.totalorder %s36, 1
      %p342 = por %p340, %p341
      %p343 = scmp.ne.s32.totalorder %s332, %s333
      %p344 = scmp.eq.s32.totalorder %s36, 0
      %p345 = por %p343, %p344
      %p346 = scmp.ne.s32.totalorder %s332, %s333
      %p347 = scmp.eq.s32.totalorder %s37, 1
      %p348 = por %p346, %p347
      %p350 = scmp.ne.s32.totalorder %s333, %s349
      %p351 = scmp.eq.s32.totalorder %s37, 0
      %p352 = por %p350, %p351
      %s353 = ssub.s32 %s31, %s38
      %p354 = scmp.eq.s32.totalorder %s353, 0
      %s356 = sadd.s32 %s355, 1
      %s357 = scalar_select %p354, %s355, %s356
      %p360 = pneg %p354
      %p361 = scmp.eq.s32.totalorder %s31, 1
      %p362 = por %p360, %p361
      %p363 = scmp.ne.s32.totalorder %s355, %s358
      %p364 = scmp.eq.s32.totalorder %s31, 0
      %p365 = por %p363, %p364
      %p366 = scmp.ne.s32.totalorder %s355, %s358
      %p367 = scmp.eq.s32.totalorder %s36, 1
      %p368 = por %p366, %p367
      %p369 = scmp.ne.s32.totalorder %s358, %s359
      %p370 = scmp.eq.s32.totalorder %s36, 0
      %p371 = por %p369, %p370
      %p372 = scmp.ne.s32.totalorder %s358, %s359
      %p373 = scmp.eq.s32.totalorder %s37, 1
      %p374 = por %p372, %p373
      %p376 = scmp.ne.s32.totalorder %s359, %s375
      %p377 = scmp.eq.s32.totalorder %s37, 0
      %p378 = por %p376, %p377
      %s379 = ssub.s32 %s31, %s38
      %p380 = scmp.eq.s32.totalorder %s379, 0
      %s382 = sadd.s32 %s381, 1
      %s383 = scalar_select %p380, %s381, %s382
      %p386 = pneg %p380
      %p387 = scmp.eq.s32.totalorder %s31, 1
      %p388 = por %p386, %p387
      %p389 = scmp.ne.s32.totalorder %s381, %s384
      %p390 = scmp.eq.s32.totalorder %s31, 0
      %p391 = por %p389, %p390
      %p392 = scmp.ne.s32.totalorder %s381, %s384
      %p393 = scmp.eq.s32.totalorder %s36, 1
      %p394 = por %p392, %p393
      %p395 = scmp.ne.s32.totalorder %s384, %s385
      %p396 = scmp.eq.s32.totalorder %s36, 0
      %p397 = por %p395, %p396
      %p398 = scmp.ne.s32.totalorder %s384, %s385
      %p399 = scmp.eq.s32.totalorder %s37, 1
      %p400 = por %p398, %p399
      %p402 = scmp.ne.s32.totalorder %s385, %s401
      %p403 = scmp.eq.s32.totalorder %s37, 0
      %p404 = por %p402, %p403
      %p405 = scmp.le.s32.totalorder 1, %s31
      %p406 = scmp.lt.s32.totalorder %s31, 3
      %p407 = pnand %p405, %p406
      %p408 = pneg %p407
      // Predicated region
      $region9: #{tpu_custom_call.1} parent=5 // pred_check
        _
      $region10: #{tpu_custom_call.1} parent=5 // pred_check_branch
        %410 = sbr.rel (%p407) target = $region12
      $region11: #{tpu_custom_call.1} parent=5 // pred_region
        %s411 = ssub.s32 %s31, 1
        // Predicated region
        $region13: #{tpu_custom_call.1} parent=11 // pred_check
          %p412 = pneg %p78
        $region14: #{tpu_custom_call.1} parent=11 // pred_check_branch
          %414 = sbr.rel (%p412) target = $region16
        $region15: #{tpu_custom_call.1} parent=11 // pred_region
          _
        $region16: #{tpu_custom_call.1} parent=11 // pred_fallthru
          _
        // Predicated region
        $region17: #{tpu_custom_call.1} parent=11 // pred_check
          %p415 = pneg %p99
        $region18: #{tpu_custom_call.1} parent=11 // pred_check_branch
          %417 = sbr.rel (%p415) target = $region20
        $region19: #{tpu_custom_call.1} parent=11 // pred_region
          _
        $region20: #{tpu_custom_call.1} parent=11 // pred_fallthru
          _
        // Predicated region
        $region21: #{tpu_custom_call.1} parent=11 // pred_check
          %p418 = pneg %p120
        $region22: #{tpu_custom_call.1} parent=11 // pred_check_branch
          %420 = sbr.rel (%p418) target = $region24
        $region23: #{tpu_custom_call.1} parent=11 // pred_region
          _
        $region24: #{tpu_custom_call.1} parent=11 // pred_fallthru
          _
        // Predicated region
        $region25: #{tpu_custom_call.1} parent=11 // pred_check
          %p421 = pneg %p141
        $region26: #{tpu_custom_call.1} parent=11 // pred_check_branch
          %423 = sbr.rel (%p421) target = $region28
        $region27: #{tpu_custom_call.1} parent=11 // pred_region
          _
        $region28: #{tpu_custom_call.1} parent=11 // pred_fallthru
          _
        // Predicated region
        $region29: #{tpu_custom_call.1} parent=11 // pred_check
          %p424 = pneg %p162
        $region30: #{tpu_custom_call.1} parent=11 // pred_check_branch
          %426 = sbr.rel (%p424) target = $region32
        $region31: #{tpu_custom_call.1} parent=11 // pred_region
          _
        $region32: #{tpu_custom_call.1} parent=11 // pred_fallthru
          _
        // Predicated region
        $region33: #{tpu_custom_call.1} parent=11 // pred_check
          %p427 = pneg %p183
        $region34: #{tpu_custom_call.1} parent=11 // pred_check_branch
          %429 = sbr.rel (%p427) target = $region36
        $region35: #{tpu_custom_call.1} parent=11 // pred_region
          _
        $region36: #{tpu_custom_call.1} parent=11 // pred_fallthru
          _
        // Predicated region
        $region37: #{tpu_custom_call.1} parent=11 // pred_check
          %p430 = pneg %p204
        $region38: #{tpu_custom_call.1} parent=11 // pred_check_branch
          %432 = sbr.rel (%p430) target = $region40
        $region39: #{tpu_custom_call.1} parent=11 // pred_region
          _
        $region40: #{tpu_custom_call.1} parent=11 // pred_fallthru
          _
        // Predicated region
        $region41: #{tpu_custom_call.1} parent=11 // pred_check
          %p433 = pneg %p225
        $region42: #{tpu_custom_call.1} parent=11 // pred_check_branch
          %435 = sbr.rel (%p433) target = $region44
        $region43: #{tpu_custom_call.1} parent=11 // pred_region
          _
        $region44: #{tpu_custom_call.1} parent=11 // pred_fallthru
          _
        // Predicated region
        $region45: #{tpu_custom_call.1} parent=11 // pred_check
          %p436 = pneg %p246
        $region46: #{tpu_custom_call.1} parent=11 // pred_check_branch
          %438 = sbr.rel (%p436) target = $region48
        $region47: #{tpu_custom_call.1} parent=11 // pred_region
          _
        $region48: #{tpu_custom_call.1} parent=11 // pred_fallthru
          _
        // Predicated region
        $region49: #{tpu_custom_call.1} parent=11 // pred_check
          %p439 = pneg %p267
        $region50: #{tpu_custom_call.1} parent=11 // pred_check_branch
          %441 = sbr.rel (%p439) target = $region52
        $region51: #{tpu_custom_call.1} parent=11 // pred_region
          _
        $region52: #{tpu_custom_call.1} parent=11 // pred_fallthru
          _
      $region12: #{tpu_custom_call.1} parent=5 // pred_fallthru
        _
      %p442 = scmp.lt.s32.totalorder %s31, 2
      // Predicated region
      $region53: #{tpu_custom_call.1} parent=5 // pred_check
        %p443 = pneg %p442
      $region54: #{tpu_custom_call.1} parent=5 // pred_check_branch
        %445 = sbr.rel (%p443) target = $region56
      $region55: #{tpu_custom_call.1} parent=5 // pred_region
        // Predicated region
        $region57: #{tpu_custom_call.1} parent=55 // pred_check
          %p446 = pneg %p51
        $region58: #{tpu_custom_call.1} parent=55 // pred_check_branch
          %448 = sbr.rel (%p446) target = $region60
        $region59: #{tpu_custom_call.1} parent=55 // pred_region
          %s449 = smul.u32 8, %s31
          %p450 = scmp.lt.s32.totalorder %s449, 15
          %s451 = scalar_select %p450, %s449, 15
          %s452 = smul.addr %s451, 8
          %s453 = scalar_lea.vmem %s0, %s452
          %s454 = smul.u32 8, %s31
        $region60: #{tpu_custom_call.1} parent=55 // pred_fallthru
          _
      $region56: #{tpu_custom_call.1} parent=5 // pred_fallthru
        _
      %p455 = scmp.le.s32.totalorder 1, %s31
      %p456 = scmp.lt.s32.totalorder %s31, 3
      %p457 = pnand %p455, %p456
      %p458 = pneg %p457
      // Predicated region
      $region61: #{tpu_custom_call.1} parent=5 // pred_check
        _
      $region62: #{tpu_custom_call.1} parent=5 // pred_check_branch
        %460 = sbr.rel (%p457) target = $region64
      $region63: #{tpu_custom_call.1} parent=5 // pred_region
        %s461 = ssub.s32 %s31, 1
        %s462 = smul.u32 8, %s36
        %p463 = scmp.lt.s32.totalorder %s462, 15
        %s464 = scalar_select %p463, %s462, 15
        %s465 = smul.addr %s464, 8
        %s466 = scalar_lea.vmem %s0, %s465
        %p467 = pneg %p57
        %p468 = pneg %p54
        %p469 = pneg %p78
        %p470 = pneg %p75
        %p471 = pneg %p99
        %p472 = pneg %p96
        %p473 = pneg %p120
        %p474 = pneg %p117
        %p475 = pneg %p141
        %p476 = pneg %p138
        %p477 = pneg %p162
        %p478 = pneg %p159
        %p479 = pneg %p183
        %p480 = pneg %p180
        %p481 = pneg %p204
        %p482 = pneg %p201
        %p483 = pneg %p225
        %p484 = pneg %p222
        %p485 = pneg %p246
        %p486 = pneg %p243
        %p487 = pneg %p267
        %p488 = pneg %p264
        %p489 = pneg %p293
        %p490 = pneg %p290
        %s491 = sand.u32 %s280, 1
        %s492 = scalar_lea.sflag [#allocation3], %s491
        %s493 = sand.u32 %s280, 1
        %s494 = smul.addr %s493, 32
        %s495 = scalar_lea.vmem [#allocation2], %s494
        %p496 = pneg %p319
        %p497 = pneg %p316
        %s498 = sand.u32 %s36, 1
        %s499 = scalar_lea.sflag [#allocation5], %s498
        %s500 = sand.u32 %s306, 1
        %s501 = smul.addr %s500, 32
        %s502 = scalar_lea.vmem [#allocation4], %s501
        %p503 = pneg %p345
        %p504 = pneg %p342
        %s505 = sand.u32 %s36, 1
        %s506 = scalar_lea.sflag [#allocation5], %s505
        %s507 = sand.u32 %s332, 1
        %s508 = smul.addr %s507, 32
        %s509 = scalar_lea.vmem [#allocation6], %s508
        %p510 = pneg %p371
        %p511 = pneg %p368
        %s512 = sand.u32 %s36, 1
        %s513 = scalar_lea.sflag [#allocation8], %s512
        %s514 = sand.u32 %s358, 1
        %s515 = smul.addr %s514, 32
        %s516 = scalar_lea.vmem [#allocation7], %s515
        %p517 = pneg %p397
        %p518 = pneg %p394
        %s519 = sand.u32 %s36, 1
        %s520 = scalar_lea.sflag [#allocation8], %s519
        %s521 = sand.u32 %s384, 1
        %s522 = smul.addr %s521, 8
        %s523 = scalar_lea.vmem [#allocation9], %s522
        %s524 = smul.u32 8, %s36
        %p525 = scmp.lt.s32.totalorder %s524, 15
        %s526 = scalar_select %p525, %s524, 15
        %s527 = smul.addr %s526, 8
        %s528 = scalar_lea.vmem %s0, %s527
        %s529 = smul.u32 8, %s36
        %s530 = smul.u32 8, %s36
        %s531 = smul.u32 8, %s36
        %s532 = smul.u32 8, %s36
        %s533 = smul.u32 8, %s36
        %s534 = smul.u32 8, %s36
        %s536 = smul.u32 %s36, 8
        %s537 = scalar_lea.vmem %s1, %s536
        %v538 = vld [vmem:[%s537] sm:$0xff]
        %s539 = scalar_lea.vmem %s2, %s536
        %v540 = vld [vmem:[%s539] sm:$0xff]
        %s541 = scalar_lea.vmem %s3, %s536
        %v542 = vld [vmem:[%s541] sm:$0xff]
        %v543 = vld [vmem:[%s528] sm:$0xff]
        %v544 = vld [vmem:[%s528 + $0x8] sm:$0xff]
        %v545 = vld [vmem:[%s528 + $0x10] sm:$0xff]
        %v546 = vld [vmem:[%s528 + $0x18] sm:$0xff]
        %v547 = vld [vmem:[%s528 + $0x20] sm:$0xff]
        %v548 = vld [vmem:[%s528 + $0x28] sm:$0xff]
        %v549 = vld [vmem:[%s528 + $0x30] sm:$0xff]
        %v550 = vld [vmem:[%s528 + $0x38] sm:$0xff]
        %v551 = vpack.c.bf16 %v544, %v543
        %v552 = vpack.c.bf16 %v546, %v545
        %v553 = vpack.c.bf16 %v548, %v547
        %v554 = vpack.c.bf16 %v550, %v549
        %v555 = vld [vmem:[%s5] sm:$0xff]
        %v556 = vld [vmem:[%s5 + $0x8] sm:$0xff]
        %v557 = vld [vmem:[%s5 + $0x10] sm:$0xff]
        %v558 = vld [vmem:[%s5 + $0x18] sm:$0xff]
        %v559 = vld [vmem:[%s6] sm:$0x3]
        %v561 = vlaneseq
        %v562 = vshrl.u32 %v561, 7
        %v563 = vsub.s32 0, %v562
        %v564 = vrot.slane %v559, %v563
        %v565 = vlaneseq
        %v566 = vshrl.u32 %v565, 7
        %v567 = vsub.s32 1, %v566
        %v568 = vrot.slane %v559, %v567
        %v575 = vunpack.c.l.b16 %v555
        %v576 = vunpack.c.h.b16 %v555
        %v577 = vunpack.c.l.b16 %v556
        %v578 = vunpack.c.h.b16 %v556
        %v579 = vunpack.c.l.b16 %v557
        %v580 = vunpack.c.h.b16 %v557
        %v581 = vunpack.c.l.b16 %v558
        %v582 = vunpack.c.h.b16 %v558
        %v583 = vpack.c.b16 %v577, %v575
        %v584 = vpack.c.b16 %v578, %v576
        %v585 = vpack.c.b16 %v581, %v579
        %v586 = vpack.c.b16 %v582, %v580
        %vm591 = vcmask 261120
        %v593 = vsel %vm591, %v551, 0
        %v596 = vsel %vm591, %v552, 0
        %v599 = vsel %vm591, %v553, 0
        %v602 = vsel %vm591, %v554, 0
        %604 = vmatprep.subr.bf16.mxu0 %v584
        %605 = vmatpush1.bf16.msra.mxu0 %v583
        %606 = vmatprep.subr.bf16.mxu0 %v586
        %607 = vmatpush1.bf16.msra.mxu0 %v585
        %608 = vmatprep.subr.bf16.mxu0 0
        %609 = vmatpush1.bf16.msra.mxu0 0
        %610 = vmatprep.subr.bf16.mxu0 0
        %611 = vmatpush1.bf16.msra.mxu0 0
        %612 = vmatprep.subr.bf16.mxu0 0
        %613 = vmatpush1.bf16.msra.mxu0 0
        %614 = vmatprep.subr.bf16.mxu0 0
        %615 = vmatpush1.bf16.msra.mxu0 0
        %616 = vmatprep.subr.bf16.mxu0 0
        %617 = vmatpush1.bf16.msra.mxu0 0
        %618 = vmatprep.subr.bf16.mxu0 0
        %619 = vmatpush1.bf16.msra.mxu0 0
        %620 = vmatprep.subr.bf16.mxu0 0
        %621 = vmatpush1.bf16.msra.mxu0 0
        %622 = vmatprep.subr.bf16.mxu0 0
        %623 = vmatpush1.bf16.msra.mxu0 0
        %624 = vmatprep.subr.bf16.mxu0 0
        %625 = vmatpush1.bf16.msra.mxu0 0
        %626 = vmatprep.subr.bf16.mxu0 0
        %627 = vmatpush1.bf16.msra.mxu0 0
        %628 = vmatprep.subr.bf16.mxu0 0
        %629 = vmatpush1.bf16.msra.mxu0 0
        %630 = vmatprep.subr.bf16.mxu0 0
        %631 = vmatpush1.bf16.msra.mxu0 0
        %632 = vmatprep.subr.bf16.mxu0 0
        %633 = vmatpush1.bf16.msra.mxu0 0
        %634 = vmatprep.subr.bf16.mxu0 0
        %635 = vmatpush1.bf16.msra.mxu0 0
        %636 = vmatprep.mubr.bf16.mxu0 0
        %637 = vmatmul.mubr.bf16.gmra.mrb[0].mxu0 %v593
        %v638 = vpop.f32.mrb[0].mxu0
        %v639 = vadd.f32 %v564, %v638
        %v640 = vpop.f32.mrb[0].mxu0
        %v641 = vadd.f32 %v568, %v640
        %v642 = vpop.f32.mrb[0].mxu0
        %v643 = vadd.f32 %v564, %v642
        %v644 = vpop.f32.mrb[0].mxu0
        %v645 = vadd.f32 %v568, %v644
        %646 = vmatprep.mubr.bf16.mxu0 0
        %647 = vmatmul.mubr.bf16.gmra.mrb[0].mxu0 %v596
        %v648 = vpop.f32.mrb[0].mxu0
        %v649 = vadd.f32 %v564, %v648
        %v650 = vpop.f32.mrb[0].mxu0
        %v651 = vadd.f32 %v568, %v650
        %v652 = vpop.f32.mrb[0].mxu0
        %v653 = vadd.f32 %v564, %v652
        %v654 = vpop.f32.mrb[0].mxu0
        %v655 = vadd.f32 %v568, %v654
        %656 = vmatprep.mubr.bf16.mxu0 0
        %657 = vmatmul.mubr.bf16.gmra.mrb[0].mxu0 %v599
        %v658 = vpop.f32.mrb[0].mxu0
        %v659 = vadd.f32 %v564, %v658
        %v660 = vpop.f32.mrb[0].mxu0
        %v661 = vadd.f32 %v568, %v660
        %v662 = vpop.f32.mrb[0].mxu0
        %v663 = vadd.f32 %v564, %v662
        %v664 = vpop.f32.mrb[0].mxu0
        %v665 = vadd.f32 %v568, %v664
        %666 = vmatprep.mubr.bf16.mxu0 0
        %667 = vmatmul.mubr.bf16.gmra.mrb[0].mxu0 %v602
        %v668 = vpop.f32.mrb[0].mxu0
        %v669 = vadd.f32 %v564, %v668
        %v670 = vpop.f32.mrb[0].mxu0
        %v671 = vadd.f32 %v568, %v670
        %v672 = vpop.f32.mrb[0].mxu0
        %v673 = vadd.f32 %v564, %v672
        %v674 = vpop.f32.mrb[0].mxu0
        %v675 = vadd.f32 %v568, %v674
        %676 = vdwg.mxu0
        %v677 = vpack.c.bf16 %v643, %v639
        %v678 = vpack.c.bf16 %v653, %v649
        %v679 = vpack.c.bf16 %v663, %v659
        %v680 = vpack.c.bf16 %v673, %v669
        %v681 = vld [vmem:[%s7] sm:$0xf]
        %v682 = vld [vmem:[%s7 + $0x4] sm:$0xf]
        %v683 = vld [vmem:[%s7 + $0x8] sm:$0xf]
        %v684 = vld [vmem:[%s7 + $0xc] sm:$0xf]
        %v685 = vld [vmem:[%s7 + $0x10] sm:$0xf]
        %v686 = vld [vmem:[%s7 + $0x14] sm:$0xf]
        %v687 = vld [vmem:[%s7 + $0x18] sm:$0xf]
        %v688 = vld [vmem:[%s7 + $0x1c] sm:$0xf]
        %v689 = vld [vmem:[%s7 + $0x20] sm:$0xf]
        %v690 = vld [vmem:[%s7 + $0x24] sm:$0xf]
        %v691 = vld [vmem:[%s7 + $0x28] sm:$0xf]
        %v692 = vld [vmem:[%s7 + $0x2c] sm:$0xf]
        %v693 = vld [vmem:[%s7 + $0x30] sm:$0xf]
        %v694 = vld [vmem:[%s7 + $0x34] sm:$0xf]
        %v695 = vld [vmem:[%s7 + $0x38] sm:$0xf]
        %v696 = vld [vmem:[%s7 + $0x3c] sm:$0xf]
        %v697 = vld [vmem:[%s8] sm:$0x1]
        %v699 = vlaneseq
        %v700 = vshrl.u32 %v699, 7
        %v701 = vsub.s32 0, %v700
        %v702 = vrot.slane %v697, %v701
        %v720 = vunpack.c.l.b16 %v681
        %v721 = vunpack.c.l.b16 %v682
        %v722 = vunpack.c.l.b16 %v683
        %v723 = vunpack.c.l.b16 %v684
        %v724 = vunpack.c.l.b16 %v685
        %v725 = vunpack.c.l.b16 %v686
        %v726 = vunpack.c.l.b16 %v687
        %v727 = vunpack.c.l.b16 %v688
        %v728 = vunpack.c.l.b16 %v689
        %v729 = vunpack.c.l.b16 %v690
        %v730 = vunpack.c.l.b16 %v691
        %v731 = vunpack.c.l.b16 %v692
        %v732 = vunpack.c.l.b16 %v693
        %v733 = vunpack.c.l.b16 %v694
        %v734 = vunpack.c.l.b16 %v695
        %v735 = vunpack.c.l.b16 %v696
        %v736 = vpack.c.b16 %v721, %v720
        %v737 = vpack.c.b16 %v723, %v722
        %v738 = vpack.c.b16 %v725, %v724
        %v739 = vpack.c.b16 %v727, %v726
        %v740 = vpack.c.b16 %v729, %v728
        %v741 = vpack.c.b16 %v731, %v730
        %v742 = vpack.c.b16 %v733, %v732
        %v743 = vpack.c.b16 %v735, %v734
        %752 = vmatprep.subr.bf16.mxu0 0
        %753 = vmatpush1.bf16.msra.mxu0 %v736
        %754 = vmatprep.subr.bf16.mxu0 0
        %755 = vmatpush1.bf16.msra.mxu0 %v737
        %756 = vmatprep.subr.bf16.mxu0 0
        %757 = vmatpush1.bf16.msra.mxu0 %v738
        %758 = vmatprep.subr.bf16.mxu0 0
        %759 = vmatpush1.bf16.msra.mxu0 %v739
        %760 = vmatprep.subr.bf16.mxu0 0
        %761 = vmatpush1.bf16.msra.mxu0 %v740
        %762 = vmatprep.subr.bf16.mxu0 0
        %763 = vmatpush1.bf16.msra.mxu0 %v741
        %764 = vmatprep.subr.bf16.mxu0 0
        %765 = vmatpush1.bf16.msra.mxu0 %v742
        %766 = vmatprep.subr.bf16.mxu0 0
        %767 = vmatpush1.bf16.msra.mxu0 %v743
        %768 = vmatprep.subr.bf16.mxu0 0
        %769 = vmatpush1.bf16.msra.mxu0 0
        %770 = vmatprep.subr.bf16.mxu0 0
        %771 = vmatpush1.bf16.msra.mxu0 0
        %772 = vmatprep.subr.bf16.mxu0 0
        %773 = vmatpush1.bf16.msra.mxu0 0
        %774 = vmatprep.subr.bf16.mxu0 0
        %775 = vmatpush1.bf16.msra.mxu0 0
        %776 = vmatprep.subr.bf16.mxu0 0
        %777 = vmatpush1.bf16.msra.mxu0 0
        %778 = vmatprep.subr.bf16.mxu0 0
        %779 = vmatpush1.bf16.msra.mxu0 0
        %780 = vmatprep.subr.bf16.mxu0 0
        %781 = vmatpush1.bf16.msra.mxu0 0
        %782 = vmatprep.subr.bf16.mxu0 0
        %783 = vmatpush1.bf16.msra.mxu0 0
        %784 = vmatprep.mubr.bf16.mxu0 0
        %785 = vmatmul.mubr.bf16.gmra.mrb[0].mxu0 %v677
        %v786 = vpop.f32.mrb[0].mxu0
        %v787 = vadd.f32 %v702, %v786
        %v788 = vpop.f32.mrb[0].mxu0
        %v789 = vpop.f32.mrb[0].mxu0
        %v790 = vadd.f32 %v702, %v789
        %v791 = vpop.f32.mrb[0].mxu0
        %792 = vmatprep.mubr.bf16.mxu0 0
        %793 = vmatmul.mubr.bf16.gmra.mrb[0].mxu0 %v678
        %v794 = vpop.f32.mrb[0].mxu0
        %v795 = vadd.f32 %v702, %v794
        %v796 = vpop.f32.mrb[0].mxu0
        %v797 = vpop.f32.mrb[0].mxu0
        %v798 = vadd.f32 %v702, %v797
        %v799 = vpop.f32.mrb[0].mxu0
        %800 = vmatprep.mubr.bf16.mxu0 0
        %801 = vmatmul.mubr.bf16.gmra.mrb[0].mxu0 %v679
        %v802 = vpop.f32.mrb[0].mxu0
        %v803 = vadd.f32 %v702, %v802
        %v804 = vpop.f32.mrb[0].mxu0
        %v805 = vpop.f32.mrb[0].mxu0
        %v806 = vadd.f32 %v702, %v805
        %v807 = vpop.f32.mrb[0].mxu0
        %808 = vmatprep.mubr.bf16.mxu0 0
        %809 = vmatmul.mubr.bf16.gmra.mrb[0].mxu0 %v680
        %v810 = vpop.f32.mrb[0].mxu0
        %v811 = vadd.f32 %v702, %v810
        %v812 = vpop.f32.mrb[0].mxu0
        %v813 = vpop.f32.mrb[0].mxu0
        %v814 = vadd.f32 %v702, %v813
        %v815 = vpop.f32.mrb[0].mxu0
        %816 = vdwg.mxu0
        %v817 = vpack.c.bf16 %v645, %v641
        %v818 = vpack.c.bf16 %v655, %v651
        %v819 = vpack.c.bf16 %v665, %v661
        %v820 = vpack.c.bf16 %v675, %v671
        %v821 = vld [vmem:[%s9] sm:$0xf]
        %v822 = vld [vmem:[%s9 + $0x4] sm:$0xf]
        %v823 = vld [vmem:[%s9 + $0x8] sm:$0xf]
        %v824 = vld [vmem:[%s9 + $0xc] sm:$0xf]
        %v825 = vld [vmem:[%s9 + $0x10] sm:$0xf]
        %v826 = vld [vmem:[%s9 + $0x14] sm:$0xf]
        %v827 = vld [vmem:[%s9 + $0x18] sm:$0xf]
        %v828 = vld [vmem:[%s9 + $0x1c] sm:$0xf]
        %v829 = vld [vmem:[%s9 + $0x20] sm:$0xf]
        %v830 = vld [vmem:[%s9 + $0x24] sm:$0xf]
        %v831 = vld [vmem:[%s9 + $0x28] sm:$0xf]
        %v832 = vld [vmem:[%s9 + $0x2c] sm:$0xf]
        %v833 = vld [vmem:[%s9 + $0x30] sm:$0xf]
        %v834 = vld [vmem:[%s9 + $0x34] sm:$0xf]
        %v835 = vld [vmem:[%s9 + $0x38] sm:$0xf]
        %v836 = vld [vmem:[%s9 + $0x3c] sm:$0xf]
        %v837 = vld [vmem:[%s10] sm:$0x1]
        %v839 = vlaneseq
        %v840 = vshrl.u32 %v839, 7
        %v841 = vsub.s32 0, %v840
        %v842 = vrot.slane %v837, %v841
        %v860 = vunpack.c.l.b16 %v821
        %v861 = vunpack.c.l.b16 %v822
        %v862 = vunpack.c.l.b16 %v823
        %v863 = vunpack.c.l.b16 %v824
        %v864 = vunpack.c.l.b16 %v825
        %v865 = vunpack.c.l.b16 %v826
        %v866 = vunpack.c.l.b16 %v827
        %v867 = vunpack.c.l.b16 %v828
        %v868 = vunpack.c.l.b16 %v829
        %v869 = vunpack.c.l.b16 %v830
        %v870 = vunpack.c.l.b16 %v831
        %v871 = vunpack.c.l.b16 %v832
        %v872 = vunpack.c.l.b16 %v833
        %v873 = vunpack.c.l.b16 %v834
        %v874 = vunpack.c.l.b16 %v835
        %v875 = vunpack.c.l.b16 %v836
        %v876 = vpack.c.b16 %v861, %v860
        %v877 = vpack.c.b16 %v863, %v862
        %v878 = vpack.c.b16 %v865, %v864
        %v879 = vpack.c.b16 %v867, %v866
        %v880 = vpack.c.b16 %v869, %v868
        %v881 = vpack.c.b16 %v871, %v870
        %v882 = vpack.c.b16 %v873, %v872
        %v883 = vpack.c.b16 %v875, %v874
        %892 = vmatprep.subr.bf16.mxu0 0
        %893 = vmatpush1.bf16.msra.mxu0 %v876
        %894 = vmatprep.subr.bf16.mxu0 0
        %895 = vmatpush1.bf16.msra.mxu0 %v877
        %896 = vmatprep.subr.bf16.mxu0 0
        %897 = vmatpush1.bf16.msra.mxu0 %v878
        %898 = vmatprep.subr.bf16.mxu0 0
        %899 = vmatpush1.bf16.msra.mxu0 %v879
        %900 = vmatprep.subr.bf16.mxu0 0
        %901 = vmatpush1.bf16.msra.mxu0 %v880
        %902 = vmatprep.subr.bf16.mxu0 0
        %903 = vmatpush1.bf16.msra.mxu0 %v881
        %904 = vmatprep.subr.bf16.mxu0 0
        %905 = vmatpush1.bf16.msra.mxu0 %v882
        %906 = vmatprep.subr.bf16.mxu0 0
        %907 = vmatpush1.bf16.msra.mxu0 %v883
        %908 = vmatprep.subr.bf16.mxu0 0
        %909 = vmatpush1.bf16.msra.mxu0 0
        %910 = vmatprep.subr.bf16.mxu0 0
        %911 = vmatpush1.bf16.msra.mxu0 0
        %912 = vmatprep.subr.bf16.mxu0 0
        %913 = vmatpush1.bf16.msra.mxu0 0
        %914 = vmatprep.subr.bf16.mxu0 0
        %915 = vmatpush1.bf16.msra.mxu0 0
        %916 = vmatprep.subr.bf16.mxu0 0
        %917 = vmatpush1.bf16.msra.mxu0 0
        %918 = vmatprep.subr.bf16.mxu0 0
        %919 = vmatpush1.bf16.msra.mxu0 0
        %920 = vmatprep.subr.bf16.mxu0 0
        %921 = vmatpush1.bf16.msra.mxu0 0
        %922 = vmatprep.subr.bf16.mxu0 0
        %923 = vmatpush1.bf16.msra.mxu0 0
        %924 = vmatprep.mubr.bf16.mxu0 0
        %925 = vmatmul.mubr.bf16.gmra.mrb[0].mxu0 %v817
        %v926 = vpop.f32.mrb[0].mxu0
        %v927 = vadd.f32 %v842, %v926
        %v928 = vpop.f32.mrb[0].mxu0
        %v929 = vpop.f32.mrb[0].mxu0
        %v930 = vadd.f32 %v842, %v929
        %v931 = vpop.f32.mrb[0].mxu0
        %932 = vmatprep.mubr.bf16.mxu0 0
        %933 = vmatmul.mubr.bf16.gmra.mrb[0].mxu0 %v818
        %v934 = vpop.f32.mrb[0].mxu0
        %v935 = vadd.f32 %v842, %v934
        %v936 = vpop.f32.mrb[0].mxu0
        %v937 = vpop.f32.mrb[0].mxu0
        %v938 = vadd.f32 %v842, %v937
        %v939 = vpop.f32.mrb[0].mxu0
        %940 = vmatprep.mubr.bf16.mxu0 0
        %941 = vmatmul.mubr.bf16.gmra.mrb[0].mxu0 %v819
        %v942 = vpop.f32.mrb[0].mxu0
        %v943 = vadd.f32 %v842, %v942
        %v944 = vpop.f32.mrb[0].mxu0
        %v945 = vpop.f32.mrb[0].mxu0
        %v946 = vadd.f32 %v842, %v945
        %v947 = vpop.f32.mrb[0].mxu0
        %948 = vmatprep.mubr.bf16.mxu0 0
        %949 = vmatmul.mubr.bf16.gmra.mrb[0].mxu0 %v820
        %v950 = vpop.f32.mrb[0].mxu0
        %v951 = vadd.f32 %v842, %v950
        %v952 = vpop.f32.mrb[0].mxu0
        %v953 = vpop.f32.mrb[0].mxu0
        %v954 = vadd.f32 %v842, %v953
        %v955 = vpop.f32.mrb[0].mxu0
        %956 = vdwg.mxu0
        %957 = vmax.xlane.f32.xlu0 %v787
        %v958 = vpop.xlane.xlu0 %957
        %959 = vmax.xlane.f32.xlu0 %v790
        %v960 = vpop.xlane.xlu0 %959
        %961 = vmax.xlane.f32.xlu0 %v795
        %v962 = vpop.xlane.xlu0 %961
        %963 = vmax.xlane.f32.xlu0 %v798
        %v964 = vpop.xlane.xlu0 %963
        %965 = vmax.xlane.f32.xlu0 %v803
        %v966 = vpop.xlane.xlu0 %965
        %967 = vmax.xlane.f32.xlu0 %v806
        %v968 = vpop.xlane.xlu0 %967
        %969 = vmax.xlane.f32.xlu0 %v811
        %v970 = vpop.xlane.xlu0 %969
        %971 = vmax.xlane.f32.xlu0 %v814
        %v972 = vpop.xlane.xlu0 %971
        %v973 = vsub.f32 %v787, %v958
        %v974 = vsub.f32 %v790, %v960
        %v975 = vsub.f32 %v795, %v962
        %v976 = vsub.f32 %v798, %v964
        %v977 = vsub.f32 %v803, %v966
        %v978 = vsub.f32 %v806, %v968
        %v979 = vsub.f32 %v811, %v970
        %v980 = vsub.f32 %v814, %v972
        %v981 = vmul.f32 %v973, 1.442695
        %v982 = vpow.pop %v981
        %v983 = vmul.f32 %v974, 1.442695
        %v984 = vpow.pop %v983
        %v985 = vmul.f32 %v975, 1.442695
        %v986 = vpow.pop %v985
        %v987 = vmul.f32 %v976, 1.442695
        %v988 = vpow.pop %v987
        %v989 = vmul.f32 %v977, 1.442695
        %v990 = vpow.pop %v989
        %v991 = vmul.f32 %v978, 1.442695
        %v992 = vpow.pop %v991
        %v993 = vmul.f32 %v979, 1.442695
        %v994 = vpow.pop %v993
        %v995 = vmul.f32 %v980, 1.442695
        %v996 = vpow.pop %v995
        %997 = vadd.xlane.f32.xlu0 %v982
        %v998 = vpop.xlane.xlu0 %997
        %999 = vadd.xlane.f32.xlu0 %v984
        %v1000 = vpop.xlane.xlu0 %999
        %1001 = vadd.xlane.f32.xlu0 %v986
        %v1002 = vpop.xlane.xlu0 %1001
        %1003 = vadd.xlane.f32.xlu0 %v988
        %v1004 = vpop.xlane.xlu0 %1003
        %1005 = vadd.xlane.f32.xlu0 %v990
        %v1006 = vpop.xlane.xlu0 %1005
        %1007 = vadd.xlane.f32.xlu0 %v992
        %v1008 = vpop.xlane.xlu0 %1007
        %1009 = vadd.xlane.f32.xlu0 %v994
        %v1010 = vpop.xlane.xlu0 %1009
        %1011 = vadd.xlane.f32.xlu0 %v996
        %v1012 = vpop.xlane.xlu0 %1011
        %v1013 = vrcp.pop %v998
        %v1014 = vrcp.pop %v1000
        %v1015 = vrcp.pop %v1002
        %v1016 = vrcp.pop %v1004
        %v1017 = vrcp.pop %v1006
        %v1018 = vrcp.pop %v1008
        %v1019 = vrcp.pop %v1010
        %v1020 = vrcp.pop %v1012
        %v1021 = vmul.f32 %v982, %v1013
        %v1022 = vmul.f32 %v984, %v1014
        %v1023 = vmul.f32 %v986, %v1015
        %v1024 = vmul.f32 %v988, %v1016
        %v1025 = vmul.f32 %v990, %v1017
        %v1026 = vmul.f32 %v992, %v1018
        %v1027 = vmul.f32 %v994, %v1019
        %v1028 = vmul.f32 %v996, %v1020
        %v1029 = vlog2.pop %v998
        %v1030 = vmul.f32 %v1029, 0.6931472
        %v1031 = vlog2.pop %v1000
        %v1032 = vmul.f32 %v1031, 0.6931472
        %v1033 = vlog2.pop %v1002
        %v1034 = vmul.f32 %v1033, 0.6931472
        %v1035 = vlog2.pop %v1004
        %v1036 = vmul.f32 %v1035, 0.6931472
        %v1037 = vlog2.pop %v1006
        %v1038 = vmul.f32 %v1037, 0.6931472
        %v1039 = vlog2.pop %v1008
        %v1040 = vmul.f32 %v1039, 0.6931472
        %v1041 = vlog2.pop %v1010
        %v1042 = vmul.f32 %v1041, 0.6931472
        %v1043 = vlog2.pop %v1012
        %v1044 = vmul.f32 %v1043, 0.6931472
        %v1045 = vadd.f32 %v1030, %v958
        %v1046 = vadd.f32 %v1032, %v960
        %v1047 = vadd.f32 %v1034, %v962
        %v1048 = vadd.f32 %v1036, %v964
        %v1049 = vadd.f32 %v1038, %v966
        %v1050 = vadd.f32 %v1040, %v968
        %v1051 = vadd.f32 %v1042, %v970
        %v1052 = vadd.f32 %v1044, %v972
        %1053 = vmax.xlane.f32.xlu0 %v927
        %v1054 = vpop.xlane.xlu0 %1053
        %1055 = vmax.xlane.f32.xlu0 %v930
        %v1056 = vpop.xlane.xlu0 %1055
        %1057 = vmax.xlane.f32.xlu0 %v935
        %v1058 = vpop.xlane.xlu0 %1057
        %1059 = vmax.xlane.f32.xlu0 %v938
        %v1060 = vpop.xlane.xlu0 %1059
        %1061 = vmax.xlane.f32.xlu0 %v943
        %v1062 = vpop.xlane.xlu0 %1061
        %1063 = vmax.xlane.f32.xlu0 %v946
        %v1064 = vpop.xlane.xlu0 %1063
        %1065 = vmax.xlane.f32.xlu0 %v951
        %v1066 = vpop.xlane.xlu0 %1065
        %1067 = vmax.xlane.f32.xlu0 %v954
        %v1068 = vpop.xlane.xlu0 %1067
        %v1069 = vsub.f32 %v927, %v1054
        %v1070 = vsub.f32 %v930, %v1056
        %v1071 = vsub.f32 %v935, %v1058
        %v1072 = vsub.f32 %v938, %v1060
        %v1073 = vsub.f32 %v943, %v1062
        %v1074 = vsub.f32 %v946, %v1064
        %v1075 = vsub.f32 %v951, %v1066
        %v1076 = vsub.f32 %v954, %v1068
        %v1077 = vmul.f32 %v1069, 1.442695
        %v1078 = vpow.pop %v1077
        %v1079 = vmul.f32 %v1070, 1.442695
        %v1080 = vpow.pop %v1079
        %v1081 = vmul.f32 %v1071, 1.442695
        %v1082 = vpow.pop %v1081
        %v1083 = vmul.f32 %v1072, 1.442695
        %v1084 = vpow.pop %v1083
        %v1085 = vmul.f32 %v1073, 1.442695
        %v1086 = vpow.pop %v1085
        %v1087 = vmul.f32 %v1074, 1.442695
        %v1088 = vpow.pop %v1087
        %v1089 = vmul.f32 %v1075, 1.442695
        %v1090 = vpow.pop %v1089
        %v1091 = vmul.f32 %v1076, 1.442695
        %v1092 = vpow.pop %v1091
        %1093 = vadd.xlane.f32.xlu0 %v1078
        %v1094 = vpop.xlane.xlu0 %1093
        %1095 = vadd.xlane.f32.xlu0 %v1080
        %v1096 = vpop.xlane.xlu0 %1095
        %1097 = vadd.xlane.f32.xlu0 %v1082
        %v1098 = vpop.xlane.xlu0 %1097
        %1099 = vadd.xlane.f32.xlu0 %v1084
        %v1100 = vpop.xlane.xlu0 %1099
        %1101 = vadd.xlane.f32.xlu0 %v1086
        %v1102 = vpop.xlane.xlu0 %1101
        %1103 = vadd.xlane.f32.xlu0 %v1088
        %v1104 = vpop.xlane.xlu0 %1103
        %1105 = vadd.xlane.f32.xlu0 %v1090
        %v1106 = vpop.xlane.xlu0 %1105
        %1107 = vadd.xlane.f32.xlu0 %v1092
        %v1108 = vpop.xlane.xlu0 %1107
        %v1109 = vrcp.pop %v1094
        %v1110 = vrcp.pop %v1096
        %v1111 = vrcp.pop %v1098
        %v1112 = vrcp.pop %v1100
        %v1113 = vrcp.pop %v1102
        %v1114 = vrcp.pop %v1104
        %v1115 = vrcp.pop %v1106
        %v1116 = vrcp.pop %v1108
        %v1117 = vmul.f32 %v1078, %v1109
        %v1118 = vmul.f32 %v1080, %v1110
        %v1119 = vmul.f32 %v1082, %v1111
        %v1120 = vmul.f32 %v1084, %v1112
        %v1121 = vmul.f32 %v1086, %v1113
        %v1122 = vmul.f32 %v1088, %v1114
        %v1123 = vmul.f32 %v1090, %v1115
        %v1124 = vmul.f32 %v1092, %v1116
        %v1125 = vlog2.pop %v1094
        %v1126 = vmul.f32 %v1125, 0.6931472
        %v1127 = vlog2.pop %v1096
        %v1128 = vmul.f32 %v1127, 0.6931472
        %v1129 = vlog2.pop %v1098
        %v1130 = vmul.f32 %v1129, 0.6931472
        %v1131 = vlog2.pop %v1100
        %v1132 = vmul.f32 %v1131, 0.6931472
        %v1133 = vlog2.pop %v1102
        %v1134 = vmul.f32 %v1133, 0.6931472
        %v1135 = vlog2.pop %v1104
        %v1136 = vmul.f32 %v1135, 0.6931472
        %v1137 = vlog2.pop %v1106
        %v1138 = vmul.f32 %v1137, 0.6931472
        %v1139 = vlog2.pop %v1108
        %v1140 = vmul.f32 %v1139, 0.6931472
        %v1141 = vadd.f32 %v1126, %v1054
        %v1142 = vadd.f32 %v1128, %v1056
        %v1143 = vadd.f32 %v1130, %v1058
        %v1144 = vadd.f32 %v1132, %v1060
        %v1145 = vadd.f32 %v1134, %v1062
        %v1146 = vadd.f32 %v1136, %v1064
        %v1147 = vadd.f32 %v1138, %v1066
        %v1148 = vadd.f32 %v1140, %v1068
        %v1149 = vpack.c.bf16 %v787, %v787
        %v1150 = vpack.c.bf16 %v790, %v790
        %v1151 = vpack.c.bf16 %v795, %v795
        %v1152 = vpack.c.bf16 %v798, %v798
        %v1153 = vpack.c.bf16 %v803, %v803
        %v1154 = vpack.c.bf16 %v806, %v806
        %v1155 = vpack.c.bf16 %v811, %v811
        %v1156 = vpack.c.bf16 %v814, %v814
        %1157 = vst [vmem:[%s495] sm:$0xf] %v1149
        %1158 = vst [vmem:[%s495 + $0x4] sm:$0xf] %v1150
        %1159 = vst [vmem:[%s495 + $0x8] sm:$0xf] %v1151
        %1160 = vst [vmem:[%s495 + $0xc] sm:$0xf] %v1152
        %1161 = vst [vmem:[%s495 + $0x10] sm:$0xf] %v1153
        %1162 = vst [vmem:[%s495 + $0x14] sm:$0xf] %v1154
        %1163 = vst [vmem:[%s495 + $0x18] sm:$0xf] %v1155
        %1164 = vst [vmem:[%s495 + $0x1c] sm:$0xf] %v1156
        %v1165 = vpack.c.bf16 %v927, %v927
        %v1166 = vpack.c.bf16 %v930, %v930
        %v1167 = vpack.c.bf16 %v935, %v935
        %v1168 = vpack.c.bf16 %v938, %v938
        %v1169 = vpack.c.bf16 %v943, %v943
        %v1170 = vpack.c.bf16 %v946, %v946
        %v1171 = vpack.c.bf16 %v951, %v951
        %v1172 = vpack.c.bf16 %v954, %v954
        %1173 = vst [vmem:[%s502] sm:$0xf] %v1165
        %1174 = vst [vmem:[%s502 + $0x4] sm:$0xf] %v1166
        %1175 = vst [vmem:[%s502 + $0x8] sm:$0xf] %v1167
        %1176 = vst [vmem:[%s502 + $0xc] sm:$0xf] %v1168
        %1177 = vst [vmem:[%s502 + $0x10] sm:$0xf] %v1169
        %1178 = vst [vmem:[%s502 + $0x14] sm:$0xf] %v1170
        %1179 = vst [vmem:[%s502 + $0x18] sm:$0xf] %v1171
        %1180 = vst [vmem:[%s502 + $0x1c] sm:$0xf] %v1172
        %v1181 = vld [vmem:[%s4] sm:$0x1]
        %v1183 = vlaneseq
        %v1184 = vshrl.u32 %v1183, 7
        %v1185 = vsub.s32 0, %v1184
        %v1186 = vrot.slane %v1181, %v1185
        %v1188 = vadd.f32 %v1021, %v1186
        %v1189 = vadd.f32 %v1022, %v1186
        %v1190 = vadd.f32 %v1023, %v1186
        %v1191 = vadd.f32 %v1024, %v1186
        %v1192 = vadd.f32 %v1025, %v1186
        %v1193 = vadd.f32 %v1026, %v1186
        %v1194 = vadd.f32 %v1027, %v1186
        %v1195 = vadd.f32 %v1028, %v1186
        %v1196 = vpack.c.bf16 %v1188, %v1188
        %v1197 = vpack.c.bf16 %v1189, %v1189
        %v1198 = vpack.c.bf16 %v1190, %v1190
        %v1199 = vpack.c.bf16 %v1191, %v1191
        %v1200 = vpack.c.bf16 %v1192, %v1192
        %v1201 = vpack.c.bf16 %v1193, %v1193
        %v1202 = vpack.c.bf16 %v1194, %v1194
        %v1203 = vpack.c.bf16 %v1195, %v1195
        %1204 = vst [vmem:[%s509] sm:$0xf] %v1196
        %1205 = vst [vmem:[%s509 + $0x4] sm:$0xf] %v1197
        %1206 = vst [vmem:[%s509 + $0x8] sm:$0xf] %v1198
        %1207 = vst [vmem:[%s509 + $0xc] sm:$0xf] %v1199
        %1208 = vst [vmem:[%s509 + $0x10] sm:$0xf] %v1200
        %1209 = vst [vmem:[%s509 + $0x14] sm:$0xf] %v1201
        %1210 = vst [vmem:[%s509 + $0x18] sm:$0xf] %v1202
        %1211 = vst [vmem:[%s509 + $0x1c] sm:$0xf] %v1203
        %v1212 = vpack.c.bf16 %v1117, %v1117
        %v1213 = vpack.c.bf16 %v1118, %v1118
        %v1214 = vpack.c.bf16 %v1119, %v1119
        %v1215 = vpack.c.bf16 %v1120, %v1120
        %v1216 = vpack.c.bf16 %v1121, %v1121
        %v1217 = vpack.c.bf16 %v1122, %v1122
        %v1218 = vpack.c.bf16 %v1123, %v1123
        %v1219 = vpack.c.bf16 %v1124, %v1124
        %1220 = vst [vmem:[%s516] sm:$0xf] %v1212
        %1221 = vst [vmem:[%s516 + $0x4] sm:$0xf] %v1213
        %1222 = vst [vmem:[%s516 + $0x8] sm:$0xf] %v1214
        %1223 = vst [vmem:[%s516 + $0xc] sm:$0xf] %v1215
        %1224 = vst [vmem:[%s516 + $0x10] sm:$0xf] %v1216
        %1225 = vst [vmem:[%s516 + $0x14] sm:$0xf] %v1217
        %1226 = vst [vmem:[%s516 + $0x18] sm:$0xf] %v1218
        %1227 = vst [vmem:[%s516 + $0x1c] sm:$0xf] %v1219
        %v1228 = vlaneseq
        %v1229 = vand.u32 %v1228, 127
        %v1230 = vlaneseq
        %v1231 = vshrl.u32 %v1230, 7
        %v1232 = vsub.s32 0, %v1231
        %v1233 = vrot.slane %v540, %v1232
        %1235 = vbcast.lane.b32.xlu0 %v1233, 256
        %v1236 = vpop.permute.xlu0 %1235
        %v1237 = vlaneseq
        %v1238 = vshrl.u32 %v1237, 7
        %v1239 = vsub.s32 1, %v1238
        %v1240 = vrot.slane %v540, %v1239
        %1242 = vbcast.lane.b32.xlu0 %v1240, 256
        %v1243 = vpop.permute.xlu0 %1242
        %v1244 = vlaneseq
        %v1245 = vshrl.u32 %v1244, 7
        %v1246 = vsub.s32 2, %v1245
        %v1247 = vrot.slane %v540, %v1246
        %1249 = vbcast.lane.b32.xlu0 %v1247, 256
        %v1250 = vpop.permute.xlu0 %1249
        %v1251 = vlaneseq
        %v1252 = vshrl.u32 %v1251, 7
        %v1253 = vsub.s32 3, %v1252
        %v1254 = vrot.slane %v540, %v1253
        %1256 = vbcast.lane.b32.xlu0 %v1254, 256
        %v1257 = vpop.permute.xlu0 %1256
        %v1258 = vlaneseq
        %v1259 = vshrl.u32 %v1258, 7
        %v1260 = vsub.s32 4, %v1259
        %v1261 = vrot.slane %v540, %v1260
        %1263 = vbcast.lane.b32.xlu0 %v1261, 256
        %v1264 = vpop.permute.xlu0 %1263
        %v1265 = vlaneseq
        %v1266 = vshrl.u32 %v1265, 7
        %v1267 = vsub.s32 5, %v1266
        %v1268 = vrot.slane %v540, %v1267
        %1270 = vbcast.lane.b32.xlu0 %v1268, 256
        %v1271 = vpop.permute.xlu0 %1270
        %v1272 = vlaneseq
        %v1273 = vshrl.u32 %v1272, 7
        %v1274 = vsub.s32 6, %v1273
        %v1275 = vrot.slane %v540, %v1274
        %1277 = vbcast.lane.b32.xlu0 %v1275, 256
        %v1278 = vpop.permute.xlu0 %1277
        %v1279 = vlaneseq
        %v1280 = vshrl.u32 %v1279, 7
        %v1281 = vsub.s32 7, %v1280
        %v1282 = vrot.slane %v540, %v1281
        %1284 = vbcast.lane.b32.xlu0 %v1282, 256
        %v1285 = vpop.permute.xlu0 %1284
        %vm1286 = vcmp.eq.s32.totalorder %v1229, %v1236
        %vm1287 = vcmp.eq.s32.totalorder %v1229, %v1243
        %vm1288 = vcmp.eq.s32.totalorder %v1229, %v1250
        %vm1289 = vcmp.eq.s32.totalorder %v1229, %v1257
        %vm1290 = vcmp.eq.s32.totalorder %v1229, %v1264
        %vm1291 = vcmp.eq.s32.totalorder %v1229, %v1271
        %vm1292 = vcmp.eq.s32.totalorder %v1229, %v1278
        %vm1293 = vcmp.eq.s32.totalorder %v1229, %v1285
        %v1294 = vsel %vm1286, %v787, 0.0
        %v1295 = vsel %vm1287, %v790, 0.0
        %v1296 = vsel %vm1288, %v795, 0.0
        %v1297 = vsel %vm1289, %v798, 0.0
        %v1298 = vsel %vm1290, %v803, 0.0
        %v1299 = vsel %vm1291, %v806, 0.0
        %v1300 = vsel %vm1292, %v811, 0.0
        %v1301 = vsel %vm1293, %v814, 0.0
        %1302 = vadd.xlane.f32.xlu0 %v1294
        %v1303 = vpop.xlane.xlu0 %1302
        %1304 = vadd.xlane.f32.xlu0 %v1295
        %v1305 = vpop.xlane.xlu0 %1304
        %1306 = vadd.xlane.f32.xlu0 %v1296
        %v1307 = vpop.xlane.xlu0 %1306
        %1308 = vadd.xlane.f32.xlu0 %v1297
        %v1309 = vpop.xlane.xlu0 %1308
        %1310 = vadd.xlane.f32.xlu0 %v1298
        %v1311 = vpop.xlane.xlu0 %1310
        %1312 = vadd.xlane.f32.xlu0 %v1299
        %v1313 = vpop.xlane.xlu0 %1312
        %1314 = vadd.xlane.f32.xlu0 %v1300
        %v1315 = vpop.xlane.xlu0 %1314
        %1316 = vadd.xlane.f32.xlu0 %v1301
        %v1317 = vpop.xlane.xlu0 %1316
        %v1318 = vadd.f32 %v1045, 0.0
        %v1319 = vadd.f32 %v1046, 0.0
        %v1320 = vadd.f32 %v1047, 0.0
        %v1321 = vadd.f32 %v1048, 0.0
        %v1322 = vadd.f32 %v1049, 0.0
        %v1323 = vadd.f32 %v1050, 0.0
        %v1324 = vadd.f32 %v1051, 0.0
        %v1325 = vadd.f32 %v1052, 0.0
        %v1326 = vsub.f32 %v1318, %v1303
        %v1327 = vsub.f32 %v1319, %v1305
        %v1328 = vsub.f32 %v1320, %v1307
        %v1329 = vsub.f32 %v1321, %v1309
        %v1330 = vsub.f32 %v1322, %v1311
        %v1331 = vsub.f32 %v1323, %v1313
        %v1332 = vsub.f32 %v1324, %v1315
        %v1333 = vsub.f32 %v1325, %v1317
        %v1335 = vlaneseq
        %v1336 = vshrl.u32 %v1335, 7
        %v1337 = vsub.s32 0, %v1336
        %v1338 = vrot.slane %v538, %v1337
        %1340 = vbcast.lane.b32.xlu0 %v1338, 256
        %v1341 = vpop.permute.xlu0 %1340
        %v1342 = vlaneseq
        %v1343 = vshrl.u32 %v1342, 7
        %v1344 = vsub.s32 1, %v1343
        %v1345 = vrot.slane %v538, %v1344
        %1347 = vbcast.lane.b32.xlu0 %v1345, 256
        %v1348 = vpop.permute.xlu0 %1347
        %v1349 = vlaneseq
        %v1350 = vshrl.u32 %v1349, 7
        %v1351 = vsub.s32 2, %v1350
        %v1352 = vrot.slane %v538, %v1351
        %1354 = vbcast.lane.b32.xlu0 %v1352, 256
        %v1355 = vpop.permute.xlu0 %1354
        %v1356 = vlaneseq
        %v1357 = vshrl.u32 %v1356, 7
        %v1358 = vsub.s32 3, %v1357
        %v1359 = vrot.slane %v538, %v1358
        %1361 = vbcast.lane.b32.xlu0 %v1359, 256
        %v1362 = vpop.permute.xlu0 %1361
        %v1363 = vlaneseq
        %v1364 = vshrl.u32 %v1363, 7
        %v1365 = vsub.s32 4, %v1364
        %v1366 = vrot.slane %v538, %v1365
        %1368 = vbcast.lane.b32.xlu0 %v1366, 256
        %v1369 = vpop.permute.xlu0 %1368
        %v1370 = vlaneseq
        %v1371 = vshrl.u32 %v1370, 7
        %v1372 = vsub.s32 5, %v1371
        %v1373 = vrot.slane %v538, %v1372
        %1375 = vbcast.lane.b32.xlu0 %v1373, 256
        %v1376 = vpop.permute.xlu0 %1375
        %v1377 = vlaneseq
        %v1378 = vshrl.u32 %v1377, 7
        %v1379 = vsub.s32 6, %v1378
        %v1380 = vrot.slane %v538, %v1379
        %1382 = vbcast.lane.b32.xlu0 %v1380, 256
        %v1383 = vpop.permute.xlu0 %1382
        %v1384 = vlaneseq
        %v1385 = vshrl.u32 %v1384, 7
        %v1386 = vsub.s32 7, %v1385
        %v1387 = vrot.slane %v538, %v1386
        %1389 = vbcast.lane.b32.xlu0 %v1387, 256
        %v1390 = vpop.permute.xlu0 %1389
        %v1399 = vmul.f32 %v1326, %v1341
        %v1400 = vmul.f32 %v1327, %v1348
        %v1401 = vmul.f32 %v1328, %v1355
        %v1402 = vmul.f32 %v1329, %v1362
        %v1403 = vmul.f32 %v1330, %v1369
        %v1404 = vmul.f32 %v1331, %v1376
        %v1405 = vmul.f32 %v1332, %v1383
        %v1406 = vmul.f32 %v1333, %v1390
        %v1407 = vlaneseq
        %v1408 = vshrl.u32 %v1407, 7
        %v1409 = vsub.s32 0, %v1408
        %v1410 = vrot.slane %v542, %v1409
        %1412 = vbcast.lane.b32.xlu0 %v1410, 256
        %v1413 = vpop.permute.xlu0 %1412
        %v1414 = vlaneseq
        %v1415 = vshrl.u32 %v1414, 7
        %v1416 = vsub.s32 1, %v1415
        %v1417 = vrot.slane %v542, %v1416
        %1419 = vbcast.lane.b32.xlu0 %v1417, 256
        %v1420 = vpop.permute.xlu0 %1419
        %v1421 = vlaneseq
        %v1422 = vshrl.u32 %v1421, 7
        %v1423 = vsub.s32 2, %v1422
        %v1424 = vrot.slane %v542, %v1423
        %1426 = vbcast.lane.b32.xlu0 %v1424, 256
        %v1427 = vpop.permute.xlu0 %1426
        %v1428 = vlaneseq
        %v1429 = vshrl.u32 %v1428, 7
        %v1430 = vsub.s32 3, %v1429
        %v1431 = vrot.slane %v542, %v1430
        %1433 = vbcast.lane.b32.xlu0 %v1431, 256
        %v1434 = vpop.permute.xlu0 %1433
        %v1435 = vlaneseq
        %v1436 = vshrl.u32 %v1435, 7
        %v1437 = vsub.s32 4, %v1436
        %v1438 = vrot.slane %v542, %v1437
        %1440 = vbcast.lane.b32.xlu0 %v1438, 256
        %v1441 = vpop.permute.xlu0 %1440
        %v1442 = vlaneseq
        %v1443 = vshrl.u32 %v1442, 7
        %v1444 = vsub.s32 5, %v1443
        %v1445 = vrot.slane %v542, %v1444
        %1447 = vbcast.lane.b32.xlu0 %v1445, 256
        %v1448 = vpop.permute.xlu0 %1447
        %v1449 = vlaneseq
        %v1450 = vshrl.u32 %v1449, 7
        %v1451 = vsub.s32 6, %v1450
        %v1452 = vrot.slane %v542, %v1451
        %1454 = vbcast.lane.b32.xlu0 %v1452, 256
        %v1455 = vpop.permute.xlu0 %1454
        %v1456 = vlaneseq
        %v1457 = vshrl.u32 %v1456, 7
        %v1458 = vsub.s32 7, %v1457
        %v1459 = vrot.slane %v542, %v1458
        %1461 = vbcast.lane.b32.xlu0 %v1459, 256
        %v1462 = vpop.permute.xlu0 %1461
        %vm1463 = vcmp.eq.s32.totalorder %v1229, %v1413
        %vm1464 = vcmp.eq.s32.totalorder %v1229, %v1420
        %vm1465 = vcmp.eq.s32.totalorder %v1229, %v1427
        %vm1466 = vcmp.eq.s32.totalorder %v1229, %v1434
        %vm1467 = vcmp.eq.s32.totalorder %v1229, %v1441
        %vm1468 = vcmp.eq.s32.totalorder %v1229, %v1448
        %vm1469 = vcmp.eq.s32.totalorder %v1229, %v1455
        %vm1470 = vcmp.eq.s32.totalorder %v1229, %v1462
        %v1471 = vsel %vm1463, %v927, 0.0
        %v1472 = vsel %vm1464, %v930, 0.0
        %v1473 = vsel %vm1465, %v935, 0.0
        %v1474 = vsel %vm1466, %v938, 0.0
        %v1475 = vsel %vm1467, %v943, 0.0
        %v1476 = vsel %vm1468, %v946, 0.0
        %v1477 = vsel %vm1469, %v951, 0.0
        %v1478 = vsel %vm1470, %v954, 0.0
        %1479 = vadd.xlane.f32.xlu0 %v1471
        %v1480 = vpop.xlane.xlu0 %1479
        %1481 = vadd.xlane.f32.xlu0 %v1472
        %v1482 = vpop.xlane.xlu0 %1481
        %1483 = vadd.xlane.f32.xlu0 %v1473
        %v1484 = vpop.xlane.xlu0 %1483
        %1485 = vadd.xlane.f32.xlu0 %v1474
        %v1486 = vpop.xlane.xlu0 %1485
        %1487 = vadd.xlane.f32.xlu0 %v1475
        %v1488 = vpop.xlane.xlu0 %1487
        %1489 = vadd.xlane.f32.xlu0 %v1476
        %v1490 = vpop.xlane.xlu0 %1489
        %1491 = vadd.xlane.f32.xlu0 %v1477
        %v1492 = vpop.xlane.xlu0 %1491
        %1493 = vadd.xlane.f32.xlu0 %v1478
        %v1494 = vpop.xlane.xlu0 %1493
        %v1495 = vadd.f32 %v1141, 0.0
        %v1496 = vadd.f32 %v1142, 0.0
        %v1497 = vadd.f32 %v1143, 0.0
        %v1498 = vadd.f32 %v1144, 0.0
        %v1499 = vadd.f32 %v1145, 0.0
        %v1500 = vadd.f32 %v1146, 0.0
        %v1501 = vadd.f32 %v1147, 0.0
        %v1502 = vadd.f32 %v1148, 0.0
        %v1503 = vsub.f32 %v1495, %v1480
        %v1504 = vsub.f32 %v1496, %v1482
        %v1505 = vsub.f32 %v1497, %v1484
        %v1506 = vsub.f32 %v1498, %v1486
        %v1507 = vsub.f32 %v1499, %v1488
        %v1508 = vsub.f32 %v1500, %v1490
        %v1509 = vsub.f32 %v1501, %v1492
        %v1510 = vsub.f32 %v1502, %v1494
        %v1511 = vmul.f32 %v1503, %v1341
        %v1512 = vmul.f32 %v1504, %v1348
        %v1513 = vmul.f32 %v1505, %v1355
        %v1514 = vmul.f32 %v1506, %v1362
        %v1515 = vmul.f32 %v1507, %v1369
        %v1516 = vmul.f32 %v1508, %v1376
        %v1517 = vmul.f32 %v1509, %v1383
        %v1518 = vmul.f32 %v1510, %v1390
        %v1519 = vadd.f32 %v1399, %v1511
        %v1520 = vadd.f32 %v1400, %v1512
        %v1521 = vadd.f32 %v1401, %v1513
        %v1522 = vadd.f32 %v1402, %v1514
        %v1523 = vadd.f32 %v1403, %v1515
        %v1524 = vadd.f32 %v1404, %v1516
        %v1525 = vadd.f32 %v1405, %v1517
        %v1526 = vadd.f32 %v1406, %v1518
        %vm1527 = vcmask 64512
        %v1528 = vsel %vm1527, %v538, 0.0
        %1529 = vadd.xlane.f32.xlu0 %v1528
        %v1530 = vpop.xlane.xlu0 %1529
        %1539 = vset.pattern.permute.xlu0 0
        %1540 = vperm.xlu0 %1539, %v1519
        %v1541 = vpop.permute.xlu0 %1540
        %1542 = vset.pattern.permute.xlu0 0
        %1543 = vperm.xlu0 %1542, %v1520
        %v1544 = vpop.permute.xlu0 %1543
        %1545 = vset.pattern.permute.xlu0 0
        %1546 = vperm.xlu0 %1545, %v1521
        %v1547 = vpop.permute.xlu0 %1546
        %1548 = vset.pattern.permute.xlu0 0
        %1549 = vperm.xlu0 %1548, %v1522
        %v1550 = vpop.permute.xlu0 %1549
        %1551 = vset.pattern.permute.xlu0 0
        %1552 = vperm.xlu0 %1551, %v1523
        %v1553 = vpop.permute.xlu0 %1552
        %1554 = vset.pattern.permute.xlu0 0
        %1555 = vperm.xlu0 %1554, %v1524
        %v1556 = vpop.permute.xlu0 %1555
        %1557 = vset.pattern.permute.xlu0 0
        %1558 = vperm.xlu0 %1557, %v1525
        %v1559 = vpop.permute.xlu0 %1558
        %1560 = vset.pattern.permute.xlu0 0
        %1561 = vperm.xlu0 %1560, %v1526
        %v1562 = vpop.permute.xlu0 %1561
        %v1563 = vlaneseq
        %v1564 = vshrl.u32 %v1563, 7
        %v1565 = vsub.s32 %v1229, %v1564
        %v1566 = vrot.slane %v1541, %v1565
        %v1567 = vlaneseq
        %v1568 = vshrl.u32 %v1567, 7
        %v1569 = vsub.s32 %v1229, %v1568
        %v1570 = vrot.slane %v1544, %v1569
        %v1571 = vlaneseq
        %v1572 = vshrl.u32 %v1571, 7
        %v1573 = vsub.s32 %v1229, %v1572
        %v1574 = vrot.slane %v1547, %v1573
        %v1575 = vlaneseq
        %v1576 = vshrl.u32 %v1575, 7
        %v1577 = vsub.s32 %v1229, %v1576
        %v1578 = vrot.slane %v1550, %v1577
        %v1579 = vlaneseq
        %v1580 = vshrl.u32 %v1579, 7
        %v1581 = vsub.s32 %v1229, %v1580
        %v1582 = vrot.slane %v1553, %v1581
        %v1583 = vlaneseq
        %v1584 = vshrl.u32 %v1583, 7
        %v1585 = vsub.s32 %v1229, %v1584
        %v1586 = vrot.slane %v1556, %v1585
        %v1587 = vlaneseq
        %v1588 = vshrl.u32 %v1587, 7
        %v1589 = vsub.s32 %v1229, %v1588
        %v1590 = vrot.slane %v1559, %v1589
        %v1591 = vlaneseq
        %v1592 = vshrl.u32 %v1591, 7
        %v1593 = vsub.s32 %v1229, %v1592
        %v1594 = vrot.slane %v1562, %v1593
        %vm1595 = vcmask 1041409
        %v1596 = vsel %vm1595, %v1570, %v1566
        %vm1597 = vcmask 1042434
        %v1598 = vsel %vm1597, %v1574, %v1596
        %vm1599 = vcmask 1043459
        %v1600 = vsel %vm1599, %v1578, %v1598
        %vm1601 = vcmask 1044484
        %v1602 = vsel %vm1601, %v1582, %v1600
        %vm1603 = vcmask 1045509
        %v1604 = vsel %vm1603, %v1586, %v1602
        %vm1605 = vcmask 1046534
        %v1606 = vsel %vm1605, %v1590, %v1604
        %vm1607 = vcmask 1047559
        %v1608 = vsel %vm1607, %v1594, %v1606
        %v1610 = vsel %vm1527, %v1608, 0.0
        %1611 = vadd.xlane.f32.xlu0 %v1610
        %v1612 = vpop.xlane.xlu0 %1611
        %v1613 = vadd.f32 %v1530, 1e-13
        %v1614 = vrcp.pop %v1613
        %v1615 = vmul.f32 %v1612, %v1614
        %vm1616 = vcmp.gt.f32.partialorder %v1530, 0.0
        %v1617 = vsel %vm1616, 1, 0
        %v1618 = vcvt.s32.f32 %v1617
        %v1619 = vsub.f32 %v927, %v1141
        %v1620 = vsub.f32 %v930, %v1142
        %v1621 = vsub.f32 %v935, %v1143
        %v1622 = vsub.f32 %v938, %v1144
        %v1623 = vsub.f32 %v943, %v1145
        %v1624 = vsub.f32 %v946, %v1146
        %v1625 = vsub.f32 %v951, %v1147
        %v1626 = vsub.f32 %v954, %v1148
        %v1627 = vadd.f32 %v1619, 0.0
        %v1628 = vadd.f32 %v1620, 0.0
        %v1629 = vadd.f32 %v1621, 0.0
        %v1630 = vadd.f32 %v1622, 0.0
        %v1631 = vadd.f32 %v1623, 0.0
        %v1632 = vadd.f32 %v1624, 0.0
        %v1633 = vadd.f32 %v1625, 0.0
        %v1634 = vadd.f32 %v1626, 0.0
        %v1635 = vmul.f32 %v1627, 1.442695
        %v1636 = vpow.pop %v1635
        %v1637 = vmul.f32 %v1628, 1.442695
        %v1638 = vpow.pop %v1637
        %v1639 = vmul.f32 %v1629, 1.442695
        %v1640 = vpow.pop %v1639
        %v1641 = vmul.f32 %v1630, 1.442695
        %v1642 = vpow.pop %v1641
        %v1643 = vmul.f32 %v1631, 1.442695
        %v1644 = vpow.pop %v1643
        %v1645 = vmul.f32 %v1632, 1.442695
        %v1646 = vpow.pop %v1645
        %v1647 = vmul.f32 %v1633, 1.442695
        %v1648 = vpow.pop %v1647
        %v1649 = vmul.f32 %v1634, 1.442695
        %v1650 = vpow.pop %v1649
        %v1651 = vmul.f32 %v1636, %v1341
        %v1652 = vmul.f32 %v1638, %v1348
        %v1653 = vmul.f32 %v1640, %v1355
        %v1654 = vmul.f32 %v1642, %v1362
        %v1655 = vmul.f32 %v1644, %v1369
        %v1656 = vmul.f32 %v1646, %v1376
        %v1657 = vmul.f32 %v1648, %v1383
        %v1658 = vmul.f32 %v1650, %v1390
        %1667 = vset.pattern.permute.xlu0 1
        %1668 = vperm.xlu0 %1667, %v1651
        %v1669 = vpop.permute.xlu0 %1668
        %1670 = vset.pattern.permute.xlu0 1
        %1671 = vperm.xlu0 %1670, %v1652
        %v1672 = vpop.permute.xlu0 %1671
        %1673 = vset.pattern.permute.xlu0 1
        %1674 = vperm.xlu0 %1673, %v1653
        %v1675 = vpop.permute.xlu0 %1674
        %1676 = vset.pattern.permute.xlu0 1
        %1677 = vperm.xlu0 %1676, %v1654
        %v1678 = vpop.permute.xlu0 %1677
        %1679 = vset.pattern.permute.xlu0 1
        %1680 = vperm.xlu0 %1679, %v1655
        %v1681 = vpop.permute.xlu0 %1680
        %1682 = vset.pattern.permute.xlu0 1
        %1683 = vperm.xlu0 %1682, %v1656
        %v1684 = vpop.permute.xlu0 %1683
        %1685 = vset.pattern.permute.xlu0 1
        %1686 = vperm.xlu0 %1685, %v1657
        %v1687 = vpop.permute.xlu0 %1686
        %1688 = vset.pattern.permute.xlu0 1
        %1689 = vperm.xlu0 %1688, %v1658
        %v1690 = vpop.permute.xlu0 %1689
        %v1691 = vlaneseq
        %v1692 = vshrl.u32 %v1691, 7
        %v1693 = vsub.s32 %v1229, %v1692
        %v1694 = vrot.slane %v1669, %v1693
        %v1695 = vlaneseq
        %v1696 = vshrl.u32 %v1695, 7
        %v1697 = vsub.s32 %v1229, %v1696
        %v1698 = vrot.slane %v1672, %v1697
        %v1699 = vlaneseq
        %v1700 = vshrl.u32 %v1699, 7
        %v1701 = vsub.s32 %v1229, %v1700
        %v1702 = vrot.slane %v1675, %v1701
        %v1703 = vlaneseq
        %v1704 = vshrl.u32 %v1703, 7
        %v1705 = vsub.s32 %v1229, %v1704
        %v1706 = vrot.slane %v1678, %v1705
        %v1707 = vlaneseq
        %v1708 = vshrl.u32 %v1707, 7
        %v1709 = vsub.s32 %v1229, %v1708
        %v1710 = vrot.slane %v1681, %v1709
        %v1711 = vlaneseq
        %v1712 = vshrl.u32 %v1711, 7
        %v1713 = vsub.s32 %v1229, %v1712
        %v1714 = vrot.slane %v1684, %v1713
        %v1715 = vlaneseq
        %v1716 = vshrl.u32 %v1715, 7
        %v1717 = vsub.s32 %v1229, %v1716
        %v1718 = vrot.slane %v1687, %v1717
        %v1719 = vlaneseq
        %v1720 = vshrl.u32 %v1719, 7
        %v1721 = vsub.s32 %v1229, %v1720
        %v1722 = vrot.slane %v1690, %v1721
        %v1723 = vsel %vm1595, %v1698, %v1694
        %v1724 = vsel %vm1597, %v1702, %v1723
        %v1725 = vsel %vm1599, %v1706, %v1724
        %v1726 = vsel %vm1601, %v1710, %v1725
        %v1727 = vsel %vm1603, %v1714, %v1726
        %v1728 = vsel %vm1605, %v1718, %v1727
        %v1729 = vsel %vm1607, %v1722, %v1728
        %v1731 = vsel %vm1527, %v1729, -inf
        %1732 = vmax.xlane.f32.xlu0 %v1731
        %v1733 = vpop.xlane.xlu0 %1732
        %vm1734 = vcmp.eq.s32.totalorder %v1229, 0
        %v1736 = vlaneseq
        %v1737 = vshrl.u32 %v1736, 7
        %v1738 = vsub.s32 0, %v1737
        %v1739 = vrot.slane %v1733, %v1738
        %v1740 = vlaneseq
        %v1741 = vshrl.u32 %v1740, 7
        %v1742 = vsub.s32 1, %v1741
        %v1743 = vrot.slane %v1733, %v1742
        %v1744 = vlaneseq
        %v1745 = vshrl.u32 %v1744, 7
        %v1746 = vsub.s32 2, %v1745
        %v1747 = vrot.slane %v1733, %v1746
        %v1748 = vlaneseq
        %v1749 = vshrl.u32 %v1748, 7
        %v1750 = vsub.s32 3, %v1749
        %v1751 = vrot.slane %v1733, %v1750
        %v1752 = vlaneseq
        %v1753 = vshrl.u32 %v1752, 7
        %v1754 = vsub.s32 4, %v1753
        %v1755 = vrot.slane %v1733, %v1754
        %v1756 = vlaneseq
        %v1757 = vshrl.u32 %v1756, 7
        %v1758 = vsub.s32 5, %v1757
        %v1759 = vrot.slane %v1733, %v1758
        %v1760 = vlaneseq
        %v1761 = vshrl.u32 %v1760, 7
        %v1762 = vsub.s32 6, %v1761
        %v1763 = vrot.slane %v1733, %v1762
        %v1764 = vlaneseq
        %v1765 = vshrl.u32 %v1764, 7
        %v1766 = vsub.s32 7, %v1765
        %v1767 = vrot.slane %v1733, %v1766
        %v1776 = vsel %vm1734, %v1739, 0.0
        %v1777 = vsel %vm1734, %v1743, 0.0
        %v1778 = vsel %vm1734, %v1747, 0.0
        %v1779 = vsel %vm1734, %v1751, 0.0
        %v1780 = vsel %vm1734, %v1755, 0.0
        %v1781 = vsel %vm1734, %v1759, 0.0
        %v1782 = vsel %vm1734, %v1763, 0.0
        %v1783 = vsel %vm1734, %v1767, 0.0
        %vm1784 = vcmp.eq.s32.totalorder %v1229, 1
        %v1786 = vlaneseq
        %v1787 = vshrl.u32 %v1786, 7
        %v1788 = vsub.s32 0, %v1787
        %v1789 = vrot.slane %v1615, %v1788
        %v1790 = vlaneseq
        %v1791 = vshrl.u32 %v1790, 7
        %v1792 = vsub.s32 1, %v1791
        %v1793 = vrot.slane %v1615, %v1792
        %v1794 = vlaneseq
        %v1795 = vshrl.u32 %v1794, 7
        %v1796 = vsub.s32 2, %v1795
        %v1797 = vrot.slane %v1615, %v1796
        %v1798 = vlaneseq
        %v1799 = vshrl.u32 %v1798, 7
        %v1800 = vsub.s32 3, %v1799
        %v1801 = vrot.slane %v1615, %v1800
        %v1802 = vlaneseq
        %v1803 = vshrl.u32 %v1802, 7
        %v1804 = vsub.s32 4, %v1803
        %v1805 = vrot.slane %v1615, %v1804
        %v1806 = vlaneseq
        %v1807 = vshrl.u32 %v1806, 7
        %v1808 = vsub.s32 5, %v1807
        %v1809 = vrot.slane %v1615, %v1808
        %v1810 = vlaneseq
        %v1811 = vshrl.u32 %v1810, 7
        %v1812 = vsub.s32 6, %v1811
        %v1813 = vrot.slane %v1615, %v1812
        %v1814 = vlaneseq
        %v1815 = vshrl.u32 %v1814, 7
        %v1816 = vsub.s32 7, %v1815
        %v1817 = vrot.slane %v1615, %v1816
        %v1826 = vsel %vm1784, %v1789, 0.0
        %v1827 = vsel %vm1784, %v1793, 0.0
        %v1828 = vsel %vm1784, %v1797, 0.0
        %v1829 = vsel %vm1784, %v1801, 0.0
        %v1830 = vsel %vm1784, %v1805, 0.0
        %v1831 = vsel %vm1784, %v1809, 0.0
        %v1832 = vsel %vm1784, %v1813, 0.0
        %v1833 = vsel %vm1784, %v1817, 0.0
        %v1834 = vadd.f32 %v1776, %v1826
        %v1835 = vadd.f32 %v1777, %v1827
        %v1836 = vadd.f32 %v1778, %v1828
        %v1837 = vadd.f32 %v1779, %v1829
        %v1838 = vadd.f32 %v1780, %v1830
        %v1839 = vadd.f32 %v1781, %v1831
        %v1840 = vadd.f32 %v1782, %v1832
        %v1841 = vadd.f32 %v1783, %v1833
        %vm1842 = vcmp.eq.s32.totalorder %v1229, 2
        %v1844 = vlaneseq
        %v1845 = vshrl.u32 %v1844, 7
        %v1846 = vsub.s32 0, %v1845
        %v1847 = vrot.slane %v1618, %v1846
        %v1848 = vlaneseq
        %v1849 = vshrl.u32 %v1848, 7
        %v1850 = vsub.s32 1, %v1849
        %v1851 = vrot.slane %v1618, %v1850
        %v1852 = vlaneseq
        %v1853 = vshrl.u32 %v1852, 7
        %v1854 = vsub.s32 2, %v1853
        %v1855 = vrot.slane %v1618, %v1854
        %v1856 = vlaneseq
        %v1857 = vshrl.u32 %v1856, 7
        %v1858 = vsub.s32 3, %v1857
        %v1859 = vrot.slane %v1618, %v1858
        %v1860 = vlaneseq
        %v1861 = vshrl.u32 %v1860, 7
        %v1862 = vsub.s32 4, %v1861
        %v1863 = vrot.slane %v1618, %v1862
        %v1864 = vlaneseq
        %v1865 = vshrl.u32 %v1864, 7
        %v1866 = vsub.s32 5, %v1865
        %v1867 = vrot.slane %v1618, %v1866
        %v1868 = vlaneseq
        %v1869 = vshrl.u32 %v1868, 7
        %v1870 = vsub.s32 6, %v1869
        %v1871 = vrot.slane %v1618, %v1870
        %v1872 = vlaneseq
        %v1873 = vshrl.u32 %v1872, 7
        %v1874 = vsub.s32 7, %v1873
        %v1875 = vrot.slane %v1618, %v1874
        %v1884 = vsel %vm1842, %v1847, 0.0
        %v1885 = vsel %vm1842, %v1851, 0.0
        %v1886 = vsel %vm1842, %v1855, 0.0
        %v1887 = vsel %vm1842, %v1859, 0.0
        %v1888 = vsel %vm1842, %v1863, 0.0
        %v1889 = vsel %vm1842, %v1867, 0.0
        %v1890 = vsel %vm1842, %v1871, 0.0
        %v1891 = vsel %vm1842, %v1875, 0.0
        %v1892 = vadd.f32 %v1834, %v1884
        %v1893 = vadd.f32 %v1835, %v1885
        %v1894 = vadd.f32 %v1836, %v1886
        %v1895 = vadd.f32 %v1837, %v1887
        %v1896 = vadd.f32 %v1838, %v1888
        %v1897 = vadd.f32 %v1839, %v1889
        %v1898 = vadd.f32 %v1840, %v1890
        %v1899 = vadd.f32 %v1841, %v1891
        %1900 = vst [vmem:[%s523] sm:$0x1] %v1892
        %1901 = vst [vmem:[%s523 + $0x1] sm:$0x1] %v1893
        %1902 = vst [vmem:[%s523 + $0x2] sm:$0x1] %v1894
        %1903 = vst [vmem:[%s523 + $0x3] sm:$0x1] %v1895
        %1904 = vst [vmem:[%s523 + $0x4] sm:$0x1] %v1896
        %1905 = vst [vmem:[%s523 + $0x5] sm:$0x1] %v1897
        %1906 = vst [vmem:[%s523 + $0x6] sm:$0x1] %v1898
        %1907 = vst [vmem:[%s523 + $0x7] sm:$0x1] %v1899
        %s1908 = sand.u32 %s280, 1
        %s1909 = scalar_lea.sflag [#allocation3], %s1908
        %s1910 = sand.u32 %s280, 1
        %s1911 = smul.addr %s1910, 32
        %s1912 = scalar_lea.vmem [#allocation2], %s1911
        %s1913 = sand.u32 %s36, 1
        %s1914 = scalar_lea.sflag [#allocation5], %s1913
        %s1915 = sand.u32 %s306, 1
        %s1916 = smul.addr %s1915, 32
        %s1917 = scalar_lea.vmem [#allocation4], %s1916
        %s1918 = sand.u32 %s36, 1
        %s1919 = scalar_lea.sflag [#allocation5], %s1918
        %s1920 = sand.u32 %s332, 1
        %s1921 = smul.addr %s1920, 32
        %s1922 = scalar_lea.vmem [#allocation6], %s1921
        %s1923 = sand.u32 %s36, 1
        %s1924 = scalar_lea.sflag [#allocation8], %s1923
        %s1925 = sand.u32 %s358, 1
        %s1926 = smul.addr %s1925, 32
        %s1927 = scalar_lea.vmem [#allocation7], %s1926
        %s1928 = sand.u32 %s36, 1
        %s1929 = scalar_lea.sflag [#allocation8], %s1928
        %s1930 = sand.u32 %s384, 1
        %s1931 = smul.addr %s1930, 8
        %s1932 = scalar_lea.vmem [#allocation9], %s1931
        // Predicated region
        $region65: #{tpu_custom_call.1} parent=63 // pred_check
          %p1933 = pneg %p290
        $region66: #{tpu_custom_call.1} parent=63 // pred_check_branch
          %1935 = sbr.rel (%p1933) target = $region68
        $region67: #{tpu_custom_call.1} parent=63 // pred_region
          %s1936 = smul.u32 8, %s36
          %s1938 = ssub.s32 512, 512
          %1939 = vsyncadd %s1909, %s1938
          %s1940 = smul.addr %s1936, 64
          %s1941 = scalar_lea.hbm %s11, %s1940
          %s1942 = sshll.u32 %s1912, 4
          %s1943 = int_to_ptr.vmem [resolvable:$true] %s1942
          %1948 = dma.vmem_to_hbm [thread:$0]  %s1943, 512, %s1941, %s1909, 64, 64, 4
        $region68: #{tpu_custom_call.1} parent=63 // pred_fallthru
          _
        // Predicated region
        $region69: #{tpu_custom_call.1} parent=63 // pred_check
          %p1949 = pneg %p316
        $region70: #{tpu_custom_call.1} parent=63 // pred_check_branch
          %1951 = sbr.rel (%p1949) target = $region72
        $region71: #{tpu_custom_call.1} parent=63 // pred_region
          %s1952 = smul.u32 8, %s36
          %s1954 = ssub.s32 512, 512
          %1955 = vsyncadd %s1914, %s1954
          %s1956 = smul.addr %s1952, 64
          %s1957 = scalar_lea.hbm %s12, %s1956
          %s1958 = sshll.u32 %s1917, 4
          %s1959 = int_to_ptr.vmem [resolvable:$true] %s1958
          %1964 = dma.vmem_to_hbm [thread:$0]  %s1959, 512, %s1957, %s1914, 64, 64, 4
        $region72: #{tpu_custom_call.1} parent=63 // pred_fallthru
          _
        // Predicated region
        $region73: #{tpu_custom_call.1} parent=63 // pred_check
          %p1965 = pneg %p342
        $region74: #{tpu_custom_call.1} parent=63 // pred_check_branch
          %1967 = sbr.rel (%p1965) target = $region76
        $region75: #{tpu_custom_call.1} parent=63 // pred_region
          %s1968 = smul.u32 8, %s36
          %s1970 = ssub.s32 512, 512
          %1971 = vsyncadd %s1919, %s1970
          %s1972 = smul.addr %s1968, 64
          %s1973 = scalar_lea.hbm %s13, %s1972
          %s1974 = sshll.u32 %s1922, 4
          %s1975 = int_to_ptr.vmem [resolvable:$true] %s1974
          %1980 = dma.vmem_to_hbm [thread:$0]  %s1975, 512, %s1973, %s1919, 64, 64, 4
        $region76: #{tpu_custom_call.1} parent=63 // pred_fallthru
          _
        // Predicated region
        $region77: #{tpu_custom_call.1} parent=63 // pred_check
          %p1981 = pneg %p368
        $region78: #{tpu_custom_call.1} parent=63 // pred_check_branch
          %1983 = sbr.rel (%p1981) target = $region80
        $region79: #{tpu_custom_call.1} parent=63 // pred_region
          %s1984 = smul.u32 8, %s36
          %s1986 = ssub.s32 512, 512
          %1987 = vsyncadd %s1924, %s1986
          %s1988 = smul.addr %s1984, 64
          %s1989 = scalar_lea.hbm %s14, %s1988
          %s1990 = sshll.u32 %s1927, 4
          %s1991 = int_to_ptr.vmem [resolvable:$true] %s1990
          %1996 = dma.vmem_to_hbm [thread:$0]  %s1991, 512, %s1989, %s1924, 64, 64, 4
        $region80: #{tpu_custom_call.1} parent=63 // pred_fallthru
          _
        // Predicated region
        $region81: #{tpu_custom_call.1} parent=63 // pred_check
          %p1997 = pneg %p394
        $region82: #{tpu_custom_call.1} parent=63 // pred_check_branch
          %1999 = sbr.rel (%p1997) target = $region84
        $region83: #{tpu_custom_call.1} parent=63 // pred_region
          %s2000 = smul.u32 8, %s36
          %s2002 = ssub.s32 128, 128
          %2003 = vsyncadd %s1929, %s2002
          %s2004 = smul.addr %s2000, 16
          %s2005 = scalar_lea.hbm %s15, %s2004
          %s2006 = sshll.u32 %s1932, 4
          %s2007 = int_to_ptr.vmem [resolvable:$true] %s2006
          %2012 = dma.vmem_to_hbm [thread:$0]  %s2007, 128, %s2005, %s1929, 16, 16, 1
        $region84: #{tpu_custom_call.1} parent=63 // pred_fallthru
          _
      $region64: #{tpu_custom_call.1} parent=5 // pred_fallthru
        _
      %p2013 = scmp.le.s32.totalorder 2, %s31
      // Predicated region
      $region85: #{tpu_custom_call.1} parent=5 // pred_check
        %p2014 = pneg %p2013
      $region86: #{tpu_custom_call.1} parent=5 // pred_check_branch
        %2016 = sbr.rel (%p2014) target = $region88
      $region87: #{tpu_custom_call.1} parent=5 // pred_region
        %s2017 = ssub.s32 %s31, 2
        // Predicated region
        $region89: #{tpu_custom_call.1} parent=87 // pred_check
          %p2018 = pneg %p296
        $region90: #{tpu_custom_call.1} parent=87 // pred_check_branch
          %2020 = sbr.rel (%p2018) target = $region92
        $region91: #{tpu_custom_call.1} parent=87 // pred_region
          %s2021 = sand.u32 %s281, 1
          %s2022 = scalar_lea.sflag [#allocation3], %s2021
          %s2023 = sand.u32 %s281, 1
          %s2024 = smul.addr %s2023, 32
          %s2025 = scalar_lea.vmem [#allocation2], %s2024
          %2026 = dma.done %s2022, 512
        $region92: #{tpu_custom_call.1} parent=87 // pred_fallthru
          _
        // Predicated region
        $region93: #{tpu_custom_call.1} parent=87 // pred_check
          %p2027 = pneg %p322
        $region94: #{tpu_custom_call.1} parent=87 // pred_check_branch
          %2029 = sbr.rel (%p2027) target = $region96
        $region95: #{tpu_custom_call.1} parent=87 // pred_region
          %s2030 = sand.u32 %s37, 1
          %s2031 = scalar_lea.sflag [#allocation5], %s2030
          %s2032 = sand.u32 %s307, 1
          %s2033 = smul.addr %s2032, 32
          %s2034 = scalar_lea.vmem [#allocation4], %s2033
          %2035 = dma.done %s2031, 512
        $region96: #{tpu_custom_call.1} parent=87 // pred_fallthru
          _
        // Predicated region
        $region97: #{tpu_custom_call.1} parent=87 // pred_check
          %p2036 = pneg %p348
        $region98: #{tpu_custom_call.1} parent=87 // pred_check_branch
          %2038 = sbr.rel (%p2036) target = $region100
        $region99: #{tpu_custom_call.1} parent=87 // pred_region
          %s2039 = sand.u32 %s37, 1
          %s2040 = scalar_lea.sflag [#allocation5], %s2039
          %s2041 = sand.u32 %s333, 1
          %s2042 = smul.addr %s2041, 32
          %s2043 = scalar_lea.vmem [#allocation6], %s2042
          %2044 = dma.done %s2040, 512
        $region100: #{tpu_custom_call.1} parent=87 // pred_fallthru
          _
        // Predicated region
        $region101: #{tpu_custom_call.1} parent=87 // pred_check
          %p2045 = pneg %p374
        $region102: #{tpu_custom_call.1} parent=87 // pred_check_branch
          %2047 = sbr.rel (%p2045) target = $region104
        $region103: #{tpu_custom_call.1} parent=87 // pred_region
          %s2048 = sand.u32 %s37, 1
          %s2049 = scalar_lea.sflag [#allocation8], %s2048
          %s2050 = sand.u32 %s359, 1
          %s2051 = smul.addr %s2050, 32
          %s2052 = scalar_lea.vmem [#allocation7], %s2051
          %2053 = dma.done %s2049, 512
        $region104: #{tpu_custom_call.1} parent=87 // pred_fallthru
          _
        // Predicated region
        $region105: #{tpu_custom_call.1} parent=87 // pred_check
          %p2054 = pneg %p400
        $region106: #{tpu_custom_call.1} parent=87 // pred_check_branch
          %2056 = sbr.rel (%p2054) target = $region108
        $region107: #{tpu_custom_call.1} parent=87 // pred_region
          %s2057 = sand.u32 %s37, 1
          %s2058 = scalar_lea.sflag [#allocation8], %s2057
          %s2059 = sand.u32 %s385, 1
          %s2060 = smul.addr %s2059, 8
          %s2061 = scalar_lea.vmem [#allocation9], %s2060
          %2062 = dma.done %s2058, 128
        $region108: #{tpu_custom_call.1} parent=87 // pred_fallthru
          _
      $region88: #{tpu_custom_call.1} parent=5 // pred_fallthru
        _
    $region6: #{tpu_custom_call.1} parent=1 // loop_footer
      %s35 = sadd.s32 1, %s31
    $region7: #{tpu_custom_call.1} parent=1 // loop_footer_branch
      %30 = sbr.rel target = $region3
    $region8: #{tpu_custom_call.1} parent=1 // loop_exit
      _
    %2063 = vsyncpa [#allocation3], 1
    %s2064 = scalar_lea.sflag [#allocation3], 1
    %2065 = vsyncpa %s2064, 1
    %2066 = vsyncpa [#allocation5], 1
    %s2067 = scalar_lea.sflag [#allocation5], 1
    %2068 = vsyncpa %s2067, 1
    %2069 = vsyncpa [#allocation8], 1
    %s2070 = scalar_lea.sflag [#allocation8], 1
    %2071 = vsyncpa %s2070, 1

// kernel: tpu_custom_call.1
$region0: #{tpu_custom_call.1}
  #allocation0 [shape = 'u32[]', space=smem, size = 0x4, offset = 0x4, fixed_abs, tag = 'smem constant byte address 0x4 - core index']
  #allocation1 [shape = 'u32[144,128]{1,0:T(1,128)}', space=vmem, size = 0x12000, scoped, tag = 'internal scratch']
  %s0 = inlined_call_operand.vmem [shape: f32[128,32], index: 0, kind: input, shape index: {}]
  %s1 = inlined_call_operand.vmem [shape: f32[16,8], index: 1, kind: input, shape index: {}]
  %s2 = inlined_call_operand.vmem [shape: s32[16,8], index: 2, kind: input, shape index: {}]
  %s3 = inlined_call_operand.vmem [shape: s32[16,8], index: 3, kind: input, shape index: {}]
  %s4 = inlined_call_operand.vmem [shape: f32[1,1,128], index: 4, kind: input, shape index: {}]
  %s5 = inlined_call_operand.vmem [shape: bf16[32,256], index: 5, kind: input, shape index: {}]
  %s6 = inlined_call_operand.vmem [shape: f32[1,256], index: 6, kind: input, shape index: {}]
  %s7 = inlined_call_operand.vmem [shape: bf16[128,128], index: 7, kind: input, shape index: {}]
  %s8 = inlined_call_operand.vmem [shape: f32[1,128], index: 8, kind: input, shape index: {}]
  %s9 = inlined_call_operand.vmem [shape: bf16[128,128], index: 9, kind: input, shape index: {}]
  %s10 = inlined_call_operand.vmem [shape: f32[1,128], index: 10, kind: input, shape index: {}]
  %s11 = inlined_call_operand.hbm [shape: bf16[16,8,128], index: 11, kind: output, shape index: {0}]
  %s12 = inlined_call_operand.hbm [shape: bf16[16,8,128], index: 12, kind: output, shape index: {1}]
  %s13 = inlined_call_operand.hbm [shape: bf16[16,8,128], index: 13, kind: output, shape index: {2}]
  %s14 = inlined_call_operand.hbm [shape: bf16[16,8,128], index: 14, kind: output, shape index: {3}]
  %s15 = inlined_call_operand.hbm [shape: f32[16,1,128], index: 15, kind: output, shape index: {4}]
  %16 = xla_tuple %s11, %s12, %s13, %s14, %s15
  %s17 = sld [smem:[#allocation0]]
  $region109: #{tpu_custom_call.1} parent=0
    _
  %s19 = ssub.s32 1, %s17
  %s20 = scalar_select 0, %s19, %s17
  $region1: #{tpu_custom_call.1} parent=0
    #allocation2 [shape = 'u8[32768]{0}', space=vmem, size = 0x8000, scoped, tag = 'output window, operand 0']
    #allocation3 [shape = 's32[2]{0}', space=sflag, size = 0x8, scoped, tag = 'scoped memory for tpu_custom_call.1']
    #allocation4 [shape = 'u8[32768]{0}', space=vmem, size = 0x8000, scoped, tag = 'output window, operand 1']
    #allocation5 [shape = 's32[2]{0}', space=sflag, size = 0x8, scoped, tag = 'scoped memory for tpu_custom_call.1']
    #allocation6 [shape = 'u8[32768]{0}', space=vmem, size = 0x8000, scoped, tag = 'output window, operand 2']
    #allocation7 [shape = 'u8[32768]{0}', space=vmem, size = 0x8000, scoped, tag = 'output window, operand 3']
    #allocation8 [shape = 's32[2]{0}', space=sflag, size = 0x8, scoped, tag = 'scoped memory for tpu_custom_call.1']
    #allocation9 [shape = 'u8[8192]{0}', space=vmem, size = 0x2000, scoped, tag = 'output window, operand 4']
    %21 = vsyncpa [#allocation3], 0
    %s22 = scalar_lea.sflag [#allocation3], 1
    %23 = vsyncpa %s22, 0
    %24 = vsyncpa [#allocation5], 0
    %s25 = scalar_lea.sflag [#allocation5], 1
    %26 = vsyncpa %s25, 0
    %27 = vsyncpa [#allocation8], 0
    %s28 = scalar_lea.sflag [#allocation8], 1
    %29 = vsyncpa %s28, 0
    loop: start=0, step=1, limit=4
    $region2: #{tpu_custom_call.1} parent=1 // loop_pre_header
      _
    $region3: #{tpu_custom_call.1} parent=1 // loop_header
      %s31 = sphi 0, %s35
      %p32 = scmp.ge.s32.totalorder %s31, 4
      %s41 = sphi 0, %s43
      %s44 = sphi 0, %s41
      %s45 = sphi 0, %s44
      %s61 = sphi 0, %s45
      %s65 = sphi 0, %s65
      %s67 = sphi 0, %s65
      %s68 = sphi 0, %s67
      %s82 = sphi 0, %s68
      %s86 = sphi 0, %s86
      %s88 = sphi 0, %s86
      %s89 = sphi 0, %s88
      %s103 = sphi 0, %s89
      %s107 = sphi 0, %s107
      %s109 = sphi 0, %s107
      %s110 = sphi 0, %s109
      %s124 = sphi 0, %s110
      %s128 = sphi 0, %s128
      %s130 = sphi 0, %s128
      %s131 = sphi 0, %s130
      %s145 = sphi 0, %s131
      %s149 = sphi 0, %s149
      %s151 = sphi 0, %s149
      %s152 = sphi 0, %s151
      %s166 = sphi 0, %s152
      %s170 = sphi 0, %s170
      %s172 = sphi 0, %s170
      %s173 = sphi 0, %s172
      %s187 = sphi 0, %s173
      %s191 = sphi 0, %s191
      %s193 = sphi 0, %s191
      %s194 = sphi 0, %s193
      %s208 = sphi 0, %s194
      %s212 = sphi 0, %s212
      %s214 = sphi 0, %s212
      %s215 = sphi 0, %s214
      %s229 = sphi 0, %s215
      %s233 = sphi 0, %s233
      %s235 = sphi 0, %s233
      %s236 = sphi 0, %s235
      %s250 = sphi 0, %s236
      %s254 = sphi 0, %s254
      %s256 = sphi 0, %s254
      %s257 = sphi 0, %s256
      %s271 = sphi 0, %s257
      %s277 = sphi 0, %s279
      %s280 = sphi 0, %s277
      %s281 = sphi 0, %s280
      %s297 = sphi 0, %s281
      %s303 = sphi 0, %s305
      %s306 = sphi 0, %s303
      %s307 = sphi 0, %s306
      %s323 = sphi 0, %s307
      %s329 = sphi 0, %s331
      %s332 = sphi 0, %s329
      %s333 = sphi 0, %s332
      %s349 = sphi 0, %s333
      %s355 = sphi 0, %s357
      %s358 = sphi 0, %s355
      %s359 = sphi 0, %s358
      %s375 = sphi 0, %s359
      %s381 = sphi 0, %s383
      %s384 = sphi 0, %s381
      %s385 = sphi 0, %s384
      %s401 = sphi 0, %s385
    $region4: #{tpu_custom_call.1} parent=1 // loop_header_branch
      %34 = sbr.rel (%p32) target = $region8
    $region5: #{tpu_custom_call.1} parent=1 // loop_body
      %s36 = ssub.s32 %s31, 1
      %s37 = ssub.s32 %s31, 2
      %s38 = sadd.s32 %s31, 1
      %s39 = ssub.s32 %s31, %s38
      %p40 = scmp.eq.s32.totalorder %s39, 0
      %s42 = sadd.s32 %s41, 1
      %s43 = scalar_select %p40, %s41, %s42
      %p46 = pneg %p40
      %p47 = scmp.eq.s32.totalorder %s31, 1
      %p48 = por %p46, %p47
      %p49 = scmp.ne.s32.totalorder %s41, %s44
      %p50 = scmp.eq.s32.totalorder %s31, 0
      %p51 = por %p49, %p50
      %p52 = scmp.ne.s32.totalorder %s41, %s44
      %p53 = scmp.eq.s32.totalorder %s36, 1
      %p54 = por %p52, %p53
      %p55 = scmp.ne.s32.totalorder %s44, %s45
      %p56 = scmp.eq.s32.totalorder %s36, 0
      %p57 = por %p55, %p56
      %p58 = scmp.ne.s32.totalorder %s44, %s45
      %p59 = scmp.eq.s32.totalorder %s37, 1
      %p60 = por %p58, %p59
      %p62 = scmp.ne.s32.totalorder %s45, %s61
      %p63 = scmp.eq.s32.totalorder %s37, 0
      %p64 = por %p62, %p63
      %s66 = sadd.s32 %s65, 1
      %p69 = scmp.eq.s32.totalorder %s31, 1
      %p70 = scmp.ne.s32.totalorder %s65, %s67
      %p71 = scmp.eq.s32.totalorder %s31, 0
      %p72 = por %p70, %p71
      %p73 = scmp.ne.s32.totalorder %s65, %s67
      %p74 = scmp.eq.s32.totalorder %s36, 1
      %p75 = por %p73, %p74
      %p76 = scmp.ne.s32.totalorder %s67, %s68
      %p77 = scmp.eq.s32.totalorder %s36, 0
      %p78 = por %p76, %p77
      %p79 = scmp.ne.s32.totalorder %s67, %s68
      %p80 = scmp.eq.s32.totalorder %s37, 1
      %p81 = por %p79, %p80
      %p83 = scmp.ne.s32.totalorder %s68, %s82
      %p84 = scmp.eq.s32.totalorder %s37, 0
      %p85 = por %p83, %p84
      %s87 = sadd.s32 %s86, 1
      %p90 = scmp.eq.s32.totalorder %s31, 1
      %p91 = scmp.ne.s32.totalorder %s86, %s88
      %p92 = scmp.eq.s32.totalorder %s31, 0
      %p93 = por %p91, %p92
      %p94 = scmp.ne.s32.totalorder %s86, %s88
      %p95 = scmp.eq.s32.totalorder %s36, 1
      %p96 = por %p94, %p95
      %p97 = scmp.ne.s32.totalorder %s88, %s89
      %p98 = scmp.eq.s32.totalorder %s36, 0
      %p99 = por %p97, %p98
      %p100 = scmp.ne.s32.totalorder %s88, %s89
      %p101 = scmp.eq.s32.totalorder %s37, 1
      %p102 = por %p100, %p101
      %p104 = scmp.ne.s32.totalorder %s89, %s103
      %p105 = scmp.eq.s32.totalorder %s37, 0
      %p106 = por %p104, %p105
      %s108 = sadd.s32 %s107, 1
      %p111 = scmp.eq.s32.totalorder %s31, 1
      %p112 = scmp.ne.s32.totalorder %s107, %s109
      %p113 = scmp.eq.s32.totalorder %s31, 0
      %p114 = por %p112, %p113
      %p115 = scmp.ne.s32.totalorder %s107, %s109
      %p116 = scmp.eq.s32.totalorder %s36, 1
      %p117 = por %p115, %p116
      %p118 = scmp.ne.s32.totalorder %s109, %s110
      %p119 = scmp.eq.s32.totalorder %s36, 0
      %p120 = por %p118, %p119
      %p121 = scmp.ne.s32.totalorder %s109, %s110
      %p122 = scmp.eq.s32.totalorder %s37, 1
      %p123 = por %p121, %p122
      %p125 = scmp.ne.s32.totalorder %s110, %s124
      %p126 = scmp.eq.s32.totalorder %s37, 0
      %p127 = por %p125, %p126
      %s129 = sadd.s32 %s128, 1
      %p132 = scmp.eq.s32.totalorder %s31, 1
      %p133 = scmp.ne.s32.totalorder %s128, %s130
      %p134 = scmp.eq.s32.totalorder %s31, 0
      %p135 = por %p133, %p134
      %p136 = scmp.ne.s32.totalorder %s128, %s130
      %p137 = scmp.eq.s32.totalorder %s36, 1
      %p138 = por %p136, %p137
      %p139 = scmp.ne.s32.totalorder %s130, %s131
      %p140 = scmp.eq.s32.totalorder %s36, 0
      %p141 = por %p139, %p140
      %p142 = scmp.ne.s32.totalorder %s130, %s131
      %p143 = scmp.eq.s32.totalorder %s37, 1
      %p144 = por %p142, %p143
      %p146 = scmp.ne.s32.totalorder %s131, %s145
      %p147 = scmp.eq.s32.totalorder %s37, 0
      %p148 = por %p146, %p147
      %s150 = sadd.s32 %s149, 1
      %p153 = scmp.eq.s32.totalorder %s31, 1
      %p154 = scmp.ne.s32.totalorder %s149, %s151
      %p155 = scmp.eq.s32.totalorder %s31, 0
      %p156 = por %p154, %p155
      %p157 = scmp.ne.s32.totalorder %s149, %s151
      %p158 = scmp.eq.s32.totalorder %s36, 1
      %p159 = por %p157, %p158
      %p160 = scmp.ne.s32.totalorder %s151, %s152
      %p161 = scmp.eq.s32.totalorder %s36, 0
      %p162 = por %p160, %p161
      %p163 = scmp.ne.s32.totalorder %s151, %s152
      %p164 = scmp.eq.s32.totalorder %s37, 1
      %p165 = por %p163, %p164
      %p167 = scmp.ne.s32.totalorder %s152, %s166
      %p168 = scmp.eq.s32.totalorder %s37, 0
      %p169 = por %p167, %p168
      %s171 = sadd.s32 %s170, 1
      %p174 = scmp.eq.s32.totalorder %s31, 1
      %p175 = scmp.ne.s32.totalorder %s170, %s172
      %p176 = scmp.eq.s32.totalorder %s31, 0
      %p177 = por %p175, %p176
      %p178 = scmp.ne.s32.totalorder %s170, %s172
      %p179 = scmp.eq.s32.totalorder %s36, 1
      %p180 = por %p178, %p179
      %p181 = scmp.ne.s32.totalorder %s172, %s173
      %p182 = scmp.eq.s32.totalorder %s36, 0
      %p183 = por %p181, %p182
      %p184 = scmp.ne.s32.totalorder %s172, %s173
      %p185 = scmp.eq.s32.totalorder %s37, 1
      %p186 = por %p184, %p185
      %p188 = scmp.ne.s32.totalorder %s173, %s187
      %p189 = scmp.eq.s32.totalorder %s37, 0
      %p190 = por %p188, %p189
      %s192 = sadd.s32 %s191, 1
      %p195 = scmp.eq.s32.totalorder %s31, 1
      %p196 = scmp.ne.s32.totalorder %s191, %s193
      %p197 = scmp.eq.s32.totalorder %s31, 0
      %p198 = por %p196, %p197
      %p199 = scmp.ne.s32.totalorder %s191, %s193
      %p200 = scmp.eq.s32.totalorder %s36, 1
      %p201 = por %p199, %p200
      %p202 = scmp.ne.s32.totalorder %s193, %s194
      %p203 = scmp.eq.s32.totalorder %s36, 0
      %p204 = por %p202, %p203
      %p205 = scmp.ne.s32.totalorder %s193, %s194
      %p206 = scmp.eq.s32.totalorder %s37, 1
      %p207 = por %p205, %p206
      %p209 = scmp.ne.s32.totalorder %s194, %s208
      %p210 = scmp.eq.s32.totalorder %s37, 0
      %p211 = por %p209, %p210
      %s213 = sadd.s32 %s212, 1
      %p216 = scmp.eq.s32.totalorder %s31, 1
      %p217 = scmp.ne.s32.totalorder %s212, %s214
      %p218 = scmp.eq.s32.totalorder %s31, 0
      %p219 = por %p217, %p218
      %p220 = scmp.ne.s32.totalorder %s212, %s214
      %p221 = scmp.eq.s32.totalorder %s36, 1
      %p222 = por %p220, %p221
      %p223 = scmp.ne.s32.totalorder %s214, %s215
      %p224 = scmp.eq.s32.totalorder %s36, 0
      %p225 = por %p223, %p224
      %p226 = scmp.ne.s32.totalorder %s214, %s215
      %p227 = scmp.eq.s32.totalorder %s37, 1
      %p228 = por %p226, %p227
      %p230 = scmp.ne.s32.totalorder %s215, %s229
      %p231 = scmp.eq.s32.totalorder %s37, 0
      %p232 = por %p230, %p231
      %s234 = sadd.s32 %s233, 1
      %p237 = scmp.eq.s32.totalorder %s31, 1
      %p238 = scmp.ne.s32.totalorder %s233, %s235
      %p239 = scmp.eq.s32.totalorder %s31, 0
      %p240 = por %p238, %p239
      %p241 = scmp.ne.s32.totalorder %s233, %s235
      %p242 = scmp.eq.s32.totalorder %s36, 1
      %p243 = por %p241, %p242
      %p244 = scmp.ne.s32.totalorder %s235, %s236
      %p245 = scmp.eq.s32.totalorder %s36, 0
      %p246 = por %p244, %p245
      %p247 = scmp.ne.s32.totalorder %s235, %s236
      %p248 = scmp.eq.s32.totalorder %s37, 1
      %p249 = por %p247, %p248
      %p251 = scmp.ne.s32.totalorder %s236, %s250
      %p252 = scmp.eq.s32.totalorder %s37, 0
      %p253 = por %p251, %p252
      %s255 = sadd.s32 %s254, 1
      %p258 = scmp.eq.s32.totalorder %s31, 1
      %p259 = scmp.ne.s32.totalorder %s254, %s256
      %p260 = scmp.eq.s32.totalorder %s31, 0
      %p261 = por %p259, %p260
      %p262 = scmp.ne.s32.totalorder %s254, %s256
      %p263 = scmp.eq.s32.totalorder %s36, 1
      %p264 = por %p262, %p263
      %p265 = scmp.ne.s32.totalorder %s256, %s257
      %p266 = scmp.eq.s32.totalorder %s36, 0
      %p267 = por %p265, %p266
      %p268 = scmp.ne.s32.totalorder %s256, %s257
      %p269 = scmp.eq.s32.totalorder %s37, 1
      %p270 = por %p268, %p269
      %p272 = scmp.ne.s32.totalorder %s257, %s271
      %p273 = scmp.eq.s32.totalorder %s37, 0
      %p274 = por %p272, %p273
      %s275 = ssub.s32 %s31, %s38
      %p276 = scmp.eq.s32.totalorder %s275, 0
      %s278 = sadd.s32 %s277, 1
      %s279 = scalar_select %p276, %s277, %s278
      %p282 = pneg %p276
      %p283 = scmp.eq.s32.totalorder %s31, 1
      %p284 = por %p282, %p283
      %p285 = scmp.ne.s32.totalorder %s277, %s280
      %p286 = scmp.eq.s32.totalorder %s31, 0
      %p287 = por %p285, %p286
      %p288 = scmp.ne.s32.totalorder %s277, %s280
      %p289 = scmp.eq.s32.totalorder %s36, 1
      %p290 = por %p288, %p289
      %p291 = scmp.ne.s32.totalorder %s280, %s281
      %p292 = scmp.eq.s32.totalorder %s36, 0
      %p293 = por %p291, %p292
      %p294 = scmp.ne.s32.totalorder %s280, %s281
      %p295 = scmp.eq.s32.totalorder %s37, 1
      %p296 = por %p294, %p295
      %p298 = scmp.ne.s32.totalorder %s281, %s297
      %p299 = scmp.eq.s32.totalorder %s37, 0
      %p300 = por %p298, %p299
      %s301 = ssub.s32 %s31, %s38
      %p302 = scmp.eq.s32.totalorder %s301, 0
      %s304 = sadd.s32 %s303, 1
      %s305 = scalar_select %p302, %s303, %s304
      %p308 = pneg %p302
      %p309 = scmp.eq.s32.totalorder %s31, 1
      %p310 = por %p308, %p309
      %p311 = scmp.ne.s32.totalorder %s303, %s306
      %p312 = scmp.eq.s32.totalorder %s31, 0
      %p313 = por %p311, %p312
      %p314 = scmp.ne.s32.totalorder %s303, %s306
      %p315 = scmp.eq.s32.totalorder %s36, 1
      %p316 = por %p314, %p315
      %p317 = scmp.ne.s32.totalorder %s306, %s307
      %p318 = scmp.eq.s32.totalorder %s36, 0
      %p319 = por %p317, %p318
      %p320 = scmp.ne.s32.totalorder %s306, %s307
      %p321 = scmp.eq.s32.totalorder %s37, 1
      %p322 = por %p320, %p321
      %p324 = scmp.ne.s32.totalorder %s307, %s323
      %p325 = scmp.eq.s32.totalorder %s37, 0
      %p326 = por %p324, %p325
      %s327 = ssub.s32 %s31, %s38
      %p328 = scmp.eq.s32.totalorder %s327, 0
      %s330 = sadd.s32 %s329, 1
      %s331 = scalar_select %p328, %s329, %s330
      %p334 = pneg %p328
      %p335 = scmp.eq.s32.totalorder %s31, 1
      %p336 = por %p334, %p335
      %p337 = scmp.ne.s32.totalorder %s329, %s332
      %p338 = scmp.eq.s32.totalorder %s31, 0
      %p339 = por %p337, %p338
      %p340 = scmp.ne.s32.totalorder %s329, %s332
      %p341 = scmp.eq.s32.totalorder %s36, 1
      %p342 = por %p340, %p341
      %p343 = scmp.ne.s32.totalorder %s332, %s333
      %p344 = scmp.eq.s32.totalorder %s36, 0
      %p345 = por %p343, %p344
      %p346 = scmp.ne.s32.totalorder %s332, %s333
      %p347 = scmp.eq.s32.totalorder %s37, 1
      %p348 = por %p346, %p347
      %p350 = scmp.ne.s32.totalorder %s333, %s349
      %p351 = scmp.eq.s32.totalorder %s37, 0
      %p352 = por %p350, %p351
      %s353 = ssub.s32 %s31, %s38
      %p354 = scmp.eq.s32.totalorder %s353, 0
      %s356 = sadd.s32 %s355, 1
      %s357 = scalar_select %p354, %s355, %s356
      %p360 = pneg %p354
      %p361 = scmp.eq.s32.totalorder %s31, 1
      %p362 = por %p360, %p361
      %p363 = scmp.ne.s32.totalorder %s355, %s358
      %p364 = scmp.eq.s32.totalorder %s31, 0
      %p365 = por %p363, %p364
      %p366 = scmp.ne.s32.totalorder %s355, %s358
      %p367 = scmp.eq.s32.totalorder %s36, 1
      %p368 = por %p366, %p367
      %p369 = scmp.ne.s32.totalorder %s358, %s359
      %p370 = scmp.eq.s32.totalorder %s36, 0
      %p371 = por %p369, %p370
      %p372 = scmp.ne.s32.totalorder %s358, %s359
      %p373 = scmp.eq.s32.totalorder %s37, 1
      %p374 = por %p372, %p373
      %p376 = scmp.ne.s32.totalorder %s359, %s375
      %p377 = scmp.eq.s32.totalorder %s37, 0
      %p378 = por %p376, %p377
      %s379 = ssub.s32 %s31, %s38
      %p380 = scmp.eq.s32.totalorder %s379, 0
      %s382 = sadd.s32 %s381, 1
      %s383 = scalar_select %p380, %s381, %s382
      %p386 = pneg %p380
      %p387 = scmp.eq.s32.totalorder %s31, 1
      %p388 = por %p386, %p387
      %p389 = scmp.ne.s32.totalorder %s381, %s384
      %p390 = scmp.eq.s32.totalorder %s31, 0
      %p391 = por %p389, %p390
      %p392 = scmp.ne.s32.totalorder %s381, %s384
      %p393 = scmp.eq.s32.totalorder %s36, 1
      %p394 = por %p392, %p393
      %p395 = scmp.ne.s32.totalorder %s384, %s385
      %p396 = scmp.eq.s32.totalorder %s36, 0
      %p397 = por %p395, %p396
      %p398 = scmp.ne.s32.totalorder %s384, %s385
      %p399 = scmp.eq.s32.totalorder %s37, 1
      %p400 = por %p398, %p399
      %p402 = scmp.ne.s32.totalorder %s385, %s401
      %p403 = scmp.eq.s32.totalorder %s37, 0
      %p404 = por %p402, %p403
      %p405 = scmp.le.s32.totalorder 1, %s31
      %p406 = scmp.lt.s32.totalorder %s31, 3
      %p407 = pnand %p405, %p406
      %p408 = pneg %p407
      // Predicated region
      $region9: #{tpu_custom_call.1} parent=5 // pred_check
        _
      $region10: #{tpu_custom_call.1} parent=5 // pred_check_branch
        %410 = sbr.rel (%p407) target = $region12
      $region11: #{tpu_custom_call.1} parent=5 // pred_region
        %s411 = ssub.s32 %s31, 1
        // Predicated region
        $region13: #{tpu_custom_call.1} parent=11 // pred_check
          %p412 = pneg %p78
        $region14: #{tpu_custom_call.1} parent=11 // pred_check_branch
          %414 = sbr.rel (%p412) target = $region16
        $region15: #{tpu_custom_call.1} parent=11 // pred_region
          _
        $region16: #{tpu_custom_call.1} parent=11 // pred_fallthru
          _
        // Predicated region
        $region17: #{tpu_custom_call.1} parent=11 // pred_check
          %p415 = pneg %p99
        $region18: #{tpu_custom_call.1} parent=11 // pred_check_branch
          %417 = sbr.rel (%p415) target = $region20
        $region19: #{tpu_custom_call.1} parent=11 // pred_region
          _
        $region20: #{tpu_custom_call.1} parent=11 // pred_fallthru
          _
        // Predicated region
        $region21: #{tpu_custom_call.1} parent=11 // pred_check
          %p418 = pneg %p120
        $region22: #{tpu_custom_call.1} parent=11 // pred_check_branch
          %420 = sbr.rel (%p418) target = $region24
        $region23: #{tpu_custom_call.1} parent=11 // pred_region
          _
        $region24: #{tpu_custom_call.1} parent=11 // pred_fallthru
          _
        // Predicated region
        $region25: #{tpu_custom_call.1} parent=11 // pred_check
          %p421 = pneg %p141
        $region26: #{tpu_custom_call.1} parent=11 // pred_check_branch
          %423 = sbr.rel (%p421) target = $region28
        $region27: #{tpu_custom_call.1} parent=11 // pred_region
          _
        $region28: #{tpu_custom_call.1} parent=11 // pred_fallthru
          _
        // Predicated region
        $region29: #{tpu_custom_call.1} parent=11 // pred_check
          %p424 = pneg %p162
        $region30: #{tpu_custom_call.1} parent=11 // pred_check_branch
          %426 = sbr.rel (%p424) target = $region32
        $region31: #{tpu_custom_call.1} parent=11 // pred_region
          _
        $region32: #{tpu_custom_call.1} parent=11 // pred_fallthru
          _
        // Predicated region
        $region33: #{tpu_custom_call.1} parent=11 // pred_check
          %p427 = pneg %p183
        $region34: #{tpu_custom_call.1} parent=11 // pred_check_branch
          %429 = sbr.rel (%p427) target = $region36
        $region35: #{tpu_custom_call.1} parent=11 // pred_region
          _
        $region36: #{tpu_custom_call.1} parent=11 // pred_fallthru
          _
        // Predicated region
        $region37: #{tpu_custom_call.1} parent=11 // pred_check
          %p430 = pneg %p204
        $region38: #{tpu_custom_call.1} parent=11 // pred_check_branch
          %432 = sbr.rel (%p430) target = $region40
        $region39: #{tpu_custom_call.1} parent=11 // pred_region
          _
        $region40: #{tpu_custom_call.1} parent=11 // pred_fallthru
          _
        // Predicated region
        $region41: #{tpu_custom_call.1} parent=11 // pred_check
          %p433 = pneg %p225
        $region42: #{tpu_custom_call.1} parent=11 // pred_check_branch
          %435 = sbr.rel (%p433) target = $region44
        $region43: #{tpu_custom_call.1} parent=11 // pred_region
          _
        $region44: #{tpu_custom_call.1} parent=11 // pred_fallthru
          _
        // Predicated region
        $region45: #{tpu_custom_call.1} parent=11 // pred_check
          %p436 = pneg %p246
        $region46: #{tpu_custom_call.1} parent=11 // pred_check_branch
          %438 = sbr.rel (%p436) target = $region48
        $region47: #{tpu_custom_call.1} parent=11 // pred_region
          _
        $region48: #{tpu_custom_call.1} parent=11 // pred_fallthru
          _
        // Predicated region
        $region49: #{tpu_custom_call.1} parent=11 // pred_check
          %p439 = pneg %p267
        $region50: #{tpu_custom_call.1} parent=11 // pred_check_branch
          %441 = sbr.rel (%p439) target = $region52
        $region51: #{tpu_custom_call.1} parent=11 // pred_region
          _
        $region52: #{tpu_custom_call.1} parent=11 // pred_fallthru
          _
      $region12: #{tpu_custom_call.1} parent=5 // pred_fallthru
        _
      %p442 = scmp.lt.s32.totalorder %s31, 2
      // Predicated region
      $region53: #{tpu_custom_call.1} parent=5 // pred_check
        %p443 = pneg %p442
      $region54: #{tpu_custom_call.1} parent=5 // pred_check_branch
        %445 = sbr.rel (%p443) target = $region56
      $region55: #{tpu_custom_call.1} parent=5 // pred_region
        // Predicated region
        $region57: #{tpu_custom_call.1} parent=55 // pred_check
          %p446 = pneg %p51
        $region58: #{tpu_custom_call.1} parent=55 // pred_check_branch
          %448 = sbr.rel (%p446) target = $region60
        $region59: #{tpu_custom_call.1} parent=55 // pred_region
          %s449 = smul.u32 8, %s31
          %p450 = scmp.lt.s32.totalorder %s449, 15
          %s451 = scalar_select %p450, %s449, 15
          %s452 = smul.addr %s451, 8
          %s453 = scalar_lea.vmem %s0, %s452
          %s454 = smul.u32 8, %s31
        $region60: #{tpu_custom_call.1} parent=55 // pred_fallthru
          _
      $region56: #{tpu_custom_call.1} parent=5 // pred_fallthru
        _
      %p455 = scmp.le.s32.totalorder 1, %s31
      %p456 = scmp.lt.s32.totalorder %s31, 3
      %p457 = pnand %p455, %p456
      %p458 = pneg %p457
      // Predicated region
      $region61: #{tpu_custom_call.1} parent=5 // pred_check
        _
      $region62: #{tpu_custom_call.1} parent=5 // pred_check_branch
        %460 = sbr.rel (%p457) target = $region64
      $region63: #{tpu_custom_call.1} parent=5 // pred_region
        %s461 = ssub.s32 %s31, 1
        %s462 = smul.u32 8, %s36
        %p463 = scmp.lt.s32.totalorder %s462, 15
        %s464 = scalar_select %p463, %s462, 15
        %s465 = smul.addr %s464, 8
        %s466 = scalar_lea.vmem %s0, %s465
        %p467 = pneg %p57
        %p468 = pneg %p54
        %p469 = pneg %p78
        %p470 = pneg %p75
        %p471 = pneg %p99
        %p472 = pneg %p96
        %p473 = pneg %p120
        %p474 = pneg %p117
        %p475 = pneg %p141
        %p476 = pneg %p138
        %p477 = pneg %p162
        %p478 = pneg %p159
        %p479 = pneg %p183
        %p480 = pneg %p180
        %p481 = pneg %p204
        %p482 = pneg %p201
        %p483 = pneg %p225
        %p484 = pneg %p222
        %p485 = pneg %p246
        %p486 = pneg %p243
        %p487 = pneg %p267
        %p488 = pneg %p264
        %p489 = pneg %p293
        %p490 = pneg %p290
        %s491 = sand.u32 %s280, 1
        %s492 = scalar_lea.sflag [#allocation3], %s491
        %s493 = sand.u32 %s280, 1
        %s494 = smul.addr %s493, 32
        %s495 = scalar_lea.vmem [#allocation2], %s494
        %p496 = pneg %p319
        %p497 = pneg %p316
        %s498 = sand.u32 %s36, 1
        %s499 = scalar_lea.sflag [#allocation5], %s498
        %s500 = sand.u32 %s306, 1
        %s501 = smul.addr %s500, 32
        %s502 = scalar_lea.vmem [#allocation4], %s501
        %p503 = pneg %p345
        %p504 = pneg %p342
        %s505 = sand.u32 %s36, 1
        %s506 = scalar_lea.sflag [#allocation5], %s505
        %s507 = sand.u32 %s332, 1
        %s508 = smul.addr %s507, 32
        %s509 = scalar_lea.vmem [#allocation6], %s508
        %p510 = pneg %p371
        %p511 = pneg %p368
        %s512 = sand.u32 %s36, 1
        %s513 = scalar_lea.sflag [#allocation8], %s512
        %s514 = sand.u32 %s358, 1
        %s515 = smul.addr %s514, 32
        %s516 = scalar_lea.vmem [#allocation7], %s515
        %p517 = pneg %p397
        %p518 = pneg %p394
        %s519 = sand.u32 %s36, 1
        %s520 = scalar_lea.sflag [#allocation8], %s519
        %s521 = sand.u32 %s384, 1
        %s522 = smul.addr %s521, 8
        %s523 = scalar_lea.vmem [#allocation9], %s522
        %s524 = smul.u32 8, %s36
        %p525 = scmp.lt.s32.totalorder %s524, 15
        %s526 = scalar_select %p525, %s524, 15
        %s527 = smul.addr %s526, 8
        %s528 = scalar_lea.vmem %s0, %s527
        %s529 = smul.u32 8, %s36
        %s530 = smul.u32 8, %s36
        %s531 = smul.u32 8, %s36
        %s532 = smul.u32 8, %s36
        %s533 = smul.u32 8, %s36
        %s534 = smul.u32 8, %s36
        %s536 = smul.u32 %s36, 8
        %s537 = scalar_lea.vmem %s1, %s536
        %v538 = vld [vmem:[%s537] sm:$0xff]
        %s539 = scalar_lea.vmem %s2, %s536
        %v540 = vld [vmem:[%s539] sm:$0xff]
        %s541 = scalar_lea.vmem %s3, %s536
        %v542 = vld [vmem:[%s541] sm:$0xff]
        %v543 = vld [vmem:[%s528] sm:$0xff]
        %v544 = vld [vmem:[%s528 + $0x8] sm:$0xff]
        %v545 = vld [vmem:[%s528 + $0x10] sm:$0xff]
        %v546 = vld [vmem:[%s528 + $0x18] sm:$0xff]
        %v547 = vld [vmem:[%s528 + $0x20] sm:$0xff]
        %v548 = vld [vmem:[%s528 + $0x28] sm:$0xff]
        %v549 = vld [vmem:[%s528 + $0x30] sm:$0xff]
        %v550 = vld [vmem:[%s528 + $0x38] sm:$0xff]
        %v551 = vpack.c.bf16 %v544, %v543
        %v552 = vpack.c.bf16 %v546, %v545
        %v553 = vpack.c.bf16 %v548, %v547
        %v554 = vpack.c.bf16 %v550, %v549
        %v555 = vld [vmem:[%s5] sm:$0xff]
        %v556 = vld [vmem:[%s5 + $0x8] sm:$0xff]
        %v557 = vld [vmem:[%s5 + $0x10] sm:$0xff]
        %v558 = vld [vmem:[%s5 + $0x18] sm:$0xff]
        %v559 = vld [vmem:[%s6] sm:$0x3]
        %v561 = vlaneseq
        %v562 = vshrl.u32 %v561, 7
        %v563 = vsub.s32 0, %v562
        %v564 = vrot.slane %v559, %v563
        %v565 = vlaneseq
        %v566 = vshrl.u32 %v565, 7
        %v567 = vsub.s32 1, %v566
        %v568 = vrot.slane %v559, %v567
        %v575 = vunpack.c.l.b16 %v555
        %v576 = vunpack.c.h.b16 %v555
        %v577 = vunpack.c.l.b16 %v556
        %v578 = vunpack.c.h.b16 %v556
        %v579 = vunpack.c.l.b16 %v557
        %v580 = vunpack.c.h.b16 %v557
        %v581 = vunpack.c.l.b16 %v558
        %v582 = vunpack.c.h.b16 %v558
        %v583 = vpack.c.b16 %v577, %v575
        %v584 = vpack.c.b16 %v578, %v576
        %v585 = vpack.c.b16 %v581, %v579
        %v586 = vpack.c.b16 %v582, %v580
        %vm591 = vcmask 261120
        %v593 = vsel %vm591, %v551, 0
        %v596 = vsel %vm591, %v552, 0
        %v599 = vsel %vm591, %v553, 0
        %v602 = vsel %vm591, %v554, 0
        %604 = vmatprep.subr.bf16.mxu0 %v584
        %605 = vmatpush1.bf16.msra.mxu0 %v583
        %606 = vmatprep.subr.bf16.mxu0 %v586
        %607 = vmatpush1.bf16.msra.mxu0 %v585
        %608 = vmatprep.subr.bf16.mxu0 0
        %609 = vmatpush1.bf16.msra.mxu0 0
        %610 = vmatprep.subr.bf16.mxu0 0
        %611 = vmatpush1.bf16.msra.mxu0 0
        %612 = vmatprep.subr.bf16.mxu0 0
        %613 = vmatpush1.bf16.msra.mxu0 0
        %614 = vmatprep.subr.bf16.mxu0 0
        %615 = vmatpush1.bf16.msra.mxu0 0
        %616 = vmatprep.subr.bf16.mxu0 0
        %617 = vmatpush1.bf16.msra.mxu0 0
        %618 = vmatprep.subr.bf16.mxu0 0
        %619 = vmatpush1.bf16.msra.mxu0 0
        %620 = vmatprep.subr.bf16.mxu0 0
        %621 = vmatpush1.bf16.msra.mxu0 0
        %622 = vmatprep.subr.bf16.mxu0 0
        %623 = vmatpush1.bf16.msra.mxu0 0
        %624 = vmatprep.subr.bf16.mxu0 0
        %625 = vmatpush1.bf16.msra.mxu0 0
        %626 = vmatprep.subr.bf16.mxu0 0
        %627 = vmatpush1.bf16.msra.mxu0 0
        %628 = vmatprep.subr.bf16.mxu0 0
        %629 = vmatpush1.bf16.msra.mxu0 0
        %630 = vmatprep.subr.bf16.mxu0 0
        %631 = vmatpush1.bf16.msra.mxu0 0
        %632 = vmatprep.subr.bf16.mxu0 0
        %633 = vmatpush1.bf16.msra.mxu0 0
        %634 = vmatprep.subr.bf16.mxu0 0
        %635 = vmatpush1.bf16.msra.mxu0 0
        %636 = vmatprep.mubr.bf16.mxu0 0
        %637 = vmatmul.mubr.bf16.gmra.mrb[0].mxu0 %v593
        %v638 = vpop.f32.mrb[0].mxu0
        %v639 = vadd.f32 %v564, %v638
        %v640 = vpop.f32.mrb[0].mxu0
        %v641 = vadd.f32 %v568, %v640
        %v642 = vpop.f32.mrb[0].mxu0
        %v643 = vadd.f32 %v564, %v642
        %v644 = vpop.f32.mrb[0].mxu0
        %v645 = vadd.f32 %v568, %v644
        %646 = vmatprep.mubr.bf16.mxu0 0
        %647 = vmatmul.mubr.bf16.gmra.mrb[0].mxu0 %v596
        %v648 = vpop.f32.mrb[0].mxu0
        %v649 = vadd.f32 %v564, %v648
        %v650 = vpop.f32.mrb[0].mxu0
        %v651 = vadd.f32 %v568, %v650
        %v652 = vpop.f32.mrb[0].mxu0
        %v653 = vadd.f32 %v564, %v652
        %v654 = vpop.f32.mrb[0].mxu0
        %v655 = vadd.f32 %v568, %v654
        %656 = vmatprep.mubr.bf16.mxu0 0
        %657 = vmatmul.mubr.bf16.gmra.mrb[0].mxu0 %v599
        %v658 = vpop.f32.mrb[0].mxu0
        %v659 = vadd.f32 %v564, %v658
        %v660 = vpop.f32.mrb[0].mxu0
        %v661 = vadd.f32 %v568, %v660
        %v662 = vpop.f32.mrb[0].mxu0
        %v663 = vadd.f32 %v564, %v662
        %v664 = vpop.f32.mrb[0].mxu0
        %v665 = vadd.f32 %v568, %v664
        %666 = vmatprep.mubr.bf16.mxu0 0
        %667 = vmatmul.mubr.bf16.gmra.mrb[0].mxu0 %v602
        %v668 = vpop.f32.mrb[0].mxu0
        %v669 = vadd.f32 %v564, %v668
        %v670 = vpop.f32.mrb[0].mxu0
        %v671 = vadd.f32 %v568, %v670
        %v672 = vpop.f32.mrb[0].mxu0
        %v673 = vadd.f32 %v564, %v672
        %v674 = vpop.f32.mrb[0].mxu0
        %v675 = vadd.f32 %v568, %v674
        %676 = vdwg.mxu0
        %v677 = vpack.c.bf16 %v643, %v639
        %v678 = vpack.c.bf16 %v653, %v649
        %v679 = vpack.c.bf16 %v663, %v659
        %v680 = vpack.c.bf16 %v673, %v669
        %v681 = vld [vmem:[%s7] sm:$0xf]
        %v682 = vld [vmem:[%s7 + $0x4] sm:$0xf]
        %v683 = vld [vmem:[%s7 + $0x8] sm:$0xf]
        %v684 = vld [vmem:[%s7 + $0xc] sm:$0xf]
        %v685 = vld [vmem:[%s7 + $0x10] sm:$0xf]
        %v686 = vld [vmem:[%s7 + $0x14] sm:$0xf]
        %v687 = vld [vmem:[%s7 + $0x18] sm:$0xf]
        %v688 = vld [vmem:[%s7 + $0x1c] sm:$0xf]
        %v689 = vld [vmem:[%s7 + $0x20] sm:$0xf]
        %v690 = vld [vmem:[%s7 + $0x24] sm:$0xf]
        %v691 = vld [vmem:[%s7 + $0x28] sm:$0xf]
        %v692 = vld [vmem:[%s7 + $0x2c] sm:$0xf]
        %v693 = vld [vmem:[%s7 + $0x30] sm:$0xf]
        %v694 = vld [vmem:[%s7 + $0x34] sm:$0xf]
        %v695 = vld [vmem:[%s7 + $0x38] sm:$0xf]
        %v696 = vld [vmem:[%s7 + $0x3c] sm:$0xf]
        %v697 = vld [vmem:[%s8] sm:$0x1]
        %v699 = vlaneseq
        %v700 = vshrl.u32 %v699, 7
        %v701 = vsub.s32 0, %v700
        %v702 = vrot.slane %v697, %v701
        %v720 = vunpack.c.l.b16 %v681
        %v721 = vunpack.c.l.b16 %v682
        %v722 = vunpack.c.l.b16 %v683
        %v723 = vunpack.c.l.b16 %v684
        %v724 = vunpack.c.l.b16 %v685
        %v725 = vunpack.c.l.b16 %v686
        %v726 = vunpack.c.l.b16 %v687
        %v727 = vunpack.c.l.b16 %v688
        %v728 = vunpack.c.l.b16 %v689
        %v729 = vunpack.c.l.b16 %v690
        %v730 = vunpack.c.l.b16 %v691
        %v731 = vunpack.c.l.b16 %v692
        %v732 = vunpack.c.l.b16 %v693
        %v733 = vunpack.c.l.b16 %v694
        %v734 = vunpack.c.l.b16 %v695
        %v735 = vunpack.c.l.b16 %v696
        %v736 = vpack.c.b16 %v721, %v720
        %v737 = vpack.c.b16 %v723, %v722
        %v738 = vpack.c.b16 %v725, %v724
        %v739 = vpack.c.b16 %v727, %v726
        %v740 = vpack.c.b16 %v729, %v728
        %v741 = vpack.c.b16 %v731, %v730
        %v742 = vpack.c.b16 %v733, %v732
        %v743 = vpack.c.b16 %v735, %v734
        %752 = vmatprep.subr.bf16.mxu0 0
        %753 = vmatpush1.bf16.msra.mxu0 %v736
        %754 = vmatprep.subr.bf16.mxu0 0
        %755 = vmatpush1.bf16.msra.mxu0 %v737
        %756 = vmatprep.subr.bf16.mxu0 0
        %757 = vmatpush1.bf16.msra.mxu0 %v738
        %758 = vmatprep.subr.bf16.mxu0 0
        %759 = vmatpush1.bf16.msra.mxu0 %v739
        %760 = vmatprep.subr.bf16.mxu0 0
        %761 = vmatpush1.bf16.msra.mxu0 %v740
        %762 = vmatprep.subr.bf16.mxu0 0
        %763 = vmatpush1.bf16.msra.mxu0 %v741
        %764 = vmatprep.subr.bf16.mxu0 0
        %765 = vmatpush1.bf16.msra.mxu0 %v742
        %766 = vmatprep.subr.bf16.mxu0 0
        %767 = vmatpush1.bf16.msra.mxu0 %v743
        %768 = vmatprep.subr.bf16.mxu0 0
        %769 = vmatpush1.bf16.msra.mxu0 0
        %770 = vmatprep.subr.bf16.mxu0 0
        %771 = vmatpush1.bf16.msra.mxu0 0
        %772 = vmatprep.subr.bf16.mxu0 0
        %773 = vmatpush1.bf16.msra.mxu0 0
        %774 = vmatprep.subr.bf16.mxu0 0
        %775 = vmatpush1.bf16.msra.mxu0 0
        %776 = vmatprep.subr.bf16.mxu0 0
        %777 = vmatpush1.bf16.msra.mxu0 0
        %778 = vmatprep.subr.bf16.mxu0 0
        %779 = vmatpush1.bf16.msra.mxu0 0
        %780 = vmatprep.subr.bf16.mxu0 0
        %781 = vmatpush1.bf16.msra.mxu0 0
        %782 = vmatprep.subr.bf16.mxu0 0
        %783 = vmatpush1.bf16.msra.mxu0 0
        %784 = vmatprep.mubr.bf16.mxu0 0
        %785 = vmatmul.mubr.bf16.gmra.mrb[0].mxu0 %v677
        %v786 = vpop.f32.mrb[0].mxu0
        %v787 = vadd.f32 %v702, %v786
        %v788 = vpop.f32.mrb[0].mxu0
        %v789 = vpop.f32.mrb[0].mxu0
        %v790 = vadd.f32 %v702, %v789
        %v791 = vpop.f32.mrb[0].mxu0
        %792 = vmatprep.mubr.bf16.mxu0 0
        %793 = vmatmul.mubr.bf16.gmra.mrb[0].mxu0 %v678
        %v794 = vpop.f32.mrb[0].mxu0
        %v795 = vadd.f32 %v702, %v794
        %v796 = vpop.f32.mrb[0].mxu0
        %v797 = vpop.f32.mrb[0].mxu0
        %v798 = vadd.f32 %v702, %v797
        %v799 = vpop.f32.mrb[0].mxu0
        %800 = vmatprep.mubr.bf16.mxu0 0
        %801 = vmatmul.mubr.bf16.gmra.mrb[0].mxu0 %v679
        %v802 = vpop.f32.mrb[0].mxu0
        %v803 = vadd.f32 %v702, %v802
        %v804 = vpop.f32.mrb[0].mxu0
        %v805 = vpop.f32.mrb[0].mxu0
        %v806 = vadd.f32 %v702, %v805
        %v807 = vpop.f32.mrb[0].mxu0
        %808 = vmatprep.mubr.bf16.mxu0 0
        %809 = vmatmul.mubr.bf16.gmra.mrb[0].mxu0 %v680
        %v810 = vpop.f32.mrb[0].mxu0
        %v811 = vadd.f32 %v702, %v810
        %v812 = vpop.f32.mrb[0].mxu0
        %v813 = vpop.f32.mrb[0].mxu0
        %v814 = vadd.f32 %v702, %v813
        %v815 = vpop.f32.mrb[0].mxu0
        %816 = vdwg.mxu0
        %v817 = vpack.c.bf16 %v645, %v641
        %v818 = vpack.c.bf16 %v655, %v651
        %v819 = vpack.c.bf16 %v665, %v661
        %v820 = vpack.c.bf16 %v675, %v671
        %v821 = vld [vmem:[%s9] sm:$0xf]
        %v822 = vld [vmem:[%s9 + $0x4] sm:$0xf]
        %v823 = vld [vmem:[%s9 + $0x8] sm:$0xf]
        %v824 = vld [vmem:[%s9 + $0xc] sm:$0xf]
        %v825 = vld [vmem:[%s9 + $0x10] sm:$0xf]
        %v826 = vld [vmem:[%s9 + $0x14] sm:$0xf]
        %v827 = vld [vmem:[%s9 + $0x18] sm:$0xf]
        %v828 = vld [vmem:[%s9 + $0x1c] sm:$0xf]
        %v829 = vld [vmem:[%s9 + $0x20] sm:$0xf]
        %v830 = vld [vmem:[%s9 + $0x24] sm:$0xf]
        %v831 = vld [vmem:[%s9 + $0x28] sm:$0xf]
        %v832 = vld [vmem:[%s9 + $0x2c] sm:$0xf]
        %v833 = vld [vmem:[%s9 + $0x30] sm:$0xf]
        %v834 = vld [vmem:[%s9 + $0x34] sm:$0xf]
        %v835 = vld [vmem:[%s9 + $0x38] sm:$0xf]
        %v836 = vld [vmem:[%s9 + $0x3c] sm:$0xf]
        %v837 = vld [vmem:[%s10] sm:$0x1]
        %v839 = vlaneseq
        %v840 = vshrl.u32 %v839, 7
        %v841 = vsub.s32 0, %v840
        %v842 = vrot.slane %v837, %v841
        %v860 = vunpack.c.l.b16 %v821
        %v861 = vunpack.c.l.b16 %v822
        %v862 = vunpack.c.l.b16 %v823
        %v863 = vunpack.c.l.b16 %v824
        %v864 = vunpack.c.l.b16 %v825
        %v865 = vunpack.c.l.b16 %v826
        %v866 = vunpack.c.l.b16 %v827
        %v867 = vunpack.c.l.b16 %v828
        %v868 = vunpack.c.l.b16 %v829
        %v869 = vunpack.c.l.b16 %v830
        %v870 = vunpack.c.l.b16 %v831
        %v871 = vunpack.c.l.b16 %v832
        %v872 = vunpack.c.l.b16 %v833
        %v873 = vunpack.c.l.b16 %v834
        %v874 = vunpack.c.l.b16 %v835
        %v875 = vunpack.c.l.b16 %v836
        %v876 = vpack.c.b16 %v861, %v860
        %v877 = vpack.c.b16 %v863, %v862
        %v878 = vpack.c.b16 %v865, %v864
        %v879 = vpack.c.b16 %v867, %v866
        %v880 = vpack.c.b16 %v869, %v868
        %v881 = vpack.c.b16 %v871, %v870
        %v882 = vpack.c.b16 %v873, %v872
        %v883 = vpack.c.b16 %v875, %v874
        %892 = vmatprep.subr.bf16.mxu0 0
        %893 = vmatpush1.bf16.msra.mxu0 %v876
        %894 = vmatprep.subr.bf16.mxu0 0
        %895 = vmatpush1.bf16.msra.mxu0 %v877
        %896 = vmatprep.subr.bf16.mxu0 0
        %897 = vmatpush1.bf16.msra.mxu0 %v878
        %898 = vmatprep.subr.bf16.mxu0 0
        %899 = vmatpush1.bf16.msra.mxu0 %v879
        %900 = vmatprep.subr.bf16.mxu0 0
        %901 = vmatpush1.bf16.msra.mxu0 %v880
        %902 = vmatprep.subr.bf16.mxu0 0
        %903 = vmatpush1.bf16.msra.mxu0 %v881
        %904 = vmatprep.subr.bf16.mxu0 0
        %905 = vmatpush1.bf16.msra.mxu0 %v882
        %906 = vmatprep.subr.bf16.mxu0 0
        %907 = vmatpush1.bf16.msra.mxu0 %v883
        %908 = vmatprep.subr.bf16.mxu0 0
        %909 = vmatpush1.bf16.msra.mxu0 0
        %910 = vmatprep.subr.bf16.mxu0 0
        %911 = vmatpush1.bf16.msra.mxu0 0
        %912 = vmatprep.subr.bf16.mxu0 0
        %913 = vmatpush1.bf16.msra.mxu0 0
        %914 = vmatprep.subr.bf16.mxu0 0
        %915 = vmatpush1.bf16.msra.mxu0 0
        %916 = vmatprep.subr.bf16.mxu0 0
        %917 = vmatpush1.bf16.msra.mxu0 0
        %918 = vmatprep.subr.bf16.mxu0 0
        %919 = vmatpush1.bf16.msra.mxu0 0
        %920 = vmatprep.subr.bf16.mxu0 0
        %921 = vmatpush1.bf16.msra.mxu0 0
        %922 = vmatprep.subr.bf16.mxu0 0
        %923 = vmatpush1.bf16.msra.mxu0 0
        %924 = vmatprep.mubr.bf16.mxu0 0
        %925 = vmatmul.mubr.bf16.gmra.mrb[0].mxu0 %v817
        %v926 = vpop.f32.mrb[0].mxu0
        %v927 = vadd.f32 %v842, %v926
        %v928 = vpop.f32.mrb[0].mxu0
        %v929 = vpop.f32.mrb[0].mxu0
        %v930 = vadd.f32 %v842, %v929
        %v931 = vpop.f32.mrb[0].mxu0
        %932 = vmatprep.mubr.bf16.mxu0 0
        %933 = vmatmul.mubr.bf16.gmra.mrb[0].mxu0 %v818
        %v934 = vpop.f32.mrb[0].mxu0
        %v935 = vadd.f32 %v842, %v934
        %v936 = vpop.f32.mrb[0].mxu0
        %v937 = vpop.f32.mrb[0].mxu0
        %v938 = vadd.f32 %v842, %v937
        %v939 = vpop.f32.mrb[0].mxu0
        %940 = vmatprep.mubr.bf16.mxu0 0
        %941 = vmatmul.mubr.bf16.gmra.mrb[0].mxu0 %v819
        %v942 = vpop.f32.mrb[0].mxu0
        %v943 = vadd.f32 %v842, %v942
        %v944 = vpop.f32.mrb[0].mxu0
        %v945 = vpop.f32.mrb[0].mxu0
        %v946 = vadd.f32 %v842, %v945
        %v947 = vpop.f32.mrb[0].mxu0
        %948 = vmatprep.mubr.bf16.mxu0 0
        %949 = vmatmul.mubr.bf16.gmra.mrb[0].mxu0 %v820
        %v950 = vpop.f32.mrb[0].mxu0
        %v951 = vadd.f32 %v842, %v950
        %v952 = vpop.f32.mrb[0].mxu0
        %v953 = vpop.f32.mrb[0].mxu0
        %v954 = vadd.f32 %v842, %v953
        %v955 = vpop.f32.mrb[0].mxu0
        %956 = vdwg.mxu0
        %957 = vmax.xlane.f32.xlu0 %v787
        %v958 = vpop.xlane.xlu0 %957
        %959 = vmax.xlane.f32.xlu0 %v790
        %v960 = vpop.xlane.xlu0 %959
        %961 = vmax.xlane.f32.xlu0 %v795
        %v962 = vpop.xlane.xlu0 %961
        %963 = vmax.xlane.f32.xlu0 %v798
        %v964 = vpop.xlane.xlu0 %963
        %965 = vmax.xlane.f32.xlu0 %v803
        %v966 = vpop.xlane.xlu0 %965
        %967 = vmax.xlane.f32.xlu0 %v806
        %v968 = vpop.xlane.xlu0 %967
        %969 = vmax.xlane.f32.xlu0 %v811
        %v970 = vpop.xlane.xlu0 %969
        %971 = vmax.xlane.f32.xlu0 %v814
        %v972 = vpop.xlane.xlu0 %971
        %v973 = vsub.f32 %v787, %v958
        %v974 = vsub.f32 %v790, %v960
        %v975 = vsub.f32 %v795, %v962
        %v976 = vsub.f32 %v798, %v964
        %v977 = vsub.f32 %v803, %v966
        %v978 = vsub.f32 %v806, %v968
        %v979 = vsub.f32 %v811, %v970
        %v980 = vsub.f32 %v814, %v972
        %v981 = vmul.f32 %v973, 1.442695
        %v982 = vpow.pop %v981
        %v983 = vmul.f32 %v974, 1.442695
        %v984 = vpow.pop %v983
        %v985 = vmul.f32 %v975, 1.442695
        %v986 = vpow.pop %v985
        %v987 = vmul.f32 %v976, 1.442695
        %v988 = vpow.pop %v987
        %v989 = vmul.f32 %v977, 1.442695
        %v990 = vpow.pop %v989
        %v991 = vmul.f32 %v978, 1.442695
        %v992 = vpow.pop %v991
        %v993 = vmul.f32 %v979, 1.442695
        %v994 = vpow.pop %v993
        %v995 = vmul.f32 %v980, 1.442695
        %v996 = vpow.pop %v995
        %997 = vadd.xlane.f32.xlu0 %v982
        %v998 = vpop.xlane.xlu0 %997
        %999 = vadd.xlane.f32.xlu0 %v984
        %v1000 = vpop.xlane.xlu0 %999
        %1001 = vadd.xlane.f32.xlu0 %v986
        %v1002 = vpop.xlane.xlu0 %1001
        %1003 = vadd.xlane.f32.xlu0 %v988
        %v1004 = vpop.xlane.xlu0 %1003
        %1005 = vadd.xlane.f32.xlu0 %v990
        %v1006 = vpop.xlane.xlu0 %1005
        %1007 = vadd.xlane.f32.xlu0 %v992
        %v1008 = vpop.xlane.xlu0 %1007
        %1009 = vadd.xlane.f32.xlu0 %v994
        %v1010 = vpop.xlane.xlu0 %1009
        %1011 = vadd.xlane.f32.xlu0 %v996
        %v1012 = vpop.xlane.xlu0 %1011
        %v1013 = vrcp.pop %v998
        %v1014 = vrcp.pop %v1000
        %v1015 = vrcp.pop %v1002
        %v1016 = vrcp.pop %v1004
        %v1017 = vrcp.pop %v1006
        %v1018 = vrcp.pop %v1008
        %v1019 = vrcp.pop %v1010
        %v1020 = vrcp.pop %v1012
        %v1021 = vmul.f32 %v982, %v1013
        %v1022 = vmul.f32 %v984, %v1014
        %v1023 = vmul.f32 %v986, %v1015
        %v1024 = vmul.f32 %v988, %v1016
        %v1025 = vmul.f32 %v990, %v1017
        %v1026 = vmul.f32 %v992, %v1018
        %v1027 = vmul.f32 %v994, %v1019
        %v1028 = vmul.f32 %v996, %v1020
        %v1029 = vlog2.pop %v998
        %v1030 = vmul.f32 %v1029, 0.6931472
        %v1031 = vlog2.pop %v1000
        %v1032 = vmul.f32 %v1031, 0.6931472
        %v1033 = vlog2.pop %v1002
        %v1034 = vmul.f32 %v1033, 0.6931472
        %v1035 = vlog2.pop %v1004
        %v1036 = vmul.f32 %v1035, 0.6931472
        %v1037 = vlog2.pop %v1006
        %v1038 = vmul.f32 %v1037, 0.6931472
        %v1039 = vlog2.pop %v1008
        %v1040 = vmul.f32 %v1039, 0.6931472
        %v1041 = vlog2.pop %v1010
        %v1042 = vmul.f32 %v1041, 0.6931472
        %v1043 = vlog2.pop %v1012
        %v1044 = vmul.f32 %v1043, 0.6931472
        %v1045 = vadd.f32 %v1030, %v958
        %v1046 = vadd.f32 %v1032, %v960
        %v1047 = vadd.f32 %v1034, %v962
        %v1048 = vadd.f32 %v1036, %v964
        %v1049 = vadd.f32 %v1038, %v966
        %v1050 = vadd.f32 %v1040, %v968
        %v1051 = vadd.f32 %v1042, %v970
        %v1052 = vadd.f32 %v1044, %v972
        %1053 = vmax.xlane.f32.xlu0 %v927
        %v1054 = vpop.xlane.xlu0 %1053
        %1055 = vmax.xlane.f32.xlu0 %v930
        %v1056 = vpop.xlane.xlu0 %1055
        %1057 = vmax.xlane.f32.xlu0 %v935
        %v1058 = vpop.xlane.xlu0 %1057
        %1059 = vmax.xlane.f32.xlu0 %v938
        %v1060 = vpop.xlane.xlu0 %1059
        %1061 = vmax.xlane.f32.xlu0 %v943
        %v1062 = vpop.xlane.xlu0 %1061
        %1063 = vmax.xlane.f32.xlu0 %v946
        %v1064 = vpop.xlane.xlu0 %1063
        %1065 = vmax.xlane.f32.xlu0 %v951
        %v1066 = vpop.xlane.xlu0 %1065
        %1067 = vmax.xlane.f32.xlu0 %v954
        %v1068 = vpop.xlane.xlu0 %1067
        %v1069 = vsub.f32 %v927, %v1054
        %v1070 = vsub.f32 %v930, %v1056
        %v1071 = vsub.f32 %v935, %v1058
        %v1072 = vsub.f32 %v938, %v1060
        %v1073 = vsub.f32 %v943, %v1062
        %v1074 = vsub.f32 %v946, %v1064
        %v1075 = vsub.f32 %v951, %v1066
        %v1076 = vsub.f32 %v954, %v1068
        %v1077 = vmul.f32 %v1069, 1.442695
        %v1078 = vpow.pop %v1077
        %v1079 = vmul.f32 %v1070, 1.442695
        %v1080 = vpow.pop %v1079
        %v1081 = vmul.f32 %v1071, 1.442695
        %v1082 = vpow.pop %v1081
        %v1083 = vmul.f32 %v1072, 1.442695
        %v1084 = vpow.pop %v1083
        %v1085 = vmul.f32 %v1073, 1.442695
        %v1086 = vpow.pop %v1085
        %v1087 = vmul.f32 %v1074, 1.442695
        %v1088 = vpow.pop %v1087
        %v1089 = vmul.f32 %v1075, 1.442695
        %v1090 = vpow.pop %v1089
        %v1091 = vmul.f32 %v1076, 1.442695
        %v1092 = vpow.pop %v1091
        %1093 = vadd.xlane.f32.xlu0 %v1078
        %v1094 = vpop.xlane.xlu0 %1093
        %1095 = vadd.xlane.f32.xlu0 %v1080
        %v1096 = vpop.xlane.xlu0 %1095
        %1097 = vadd.xlane.f32.xlu0 %v1082
        %v1098 = vpop.xlane.xlu0 %1097
        %1099 = vadd.xlane.f32.xlu0 %v1084
        %v1100 = vpop.xlane.xlu0 %1099
        %1101 = vadd.xlane.f32.xlu0 %v1086
        %v1102 = vpop.xlane.xlu0 %1101
        %1103 = vadd.xlane.f32.xlu0 %v1088
        %v1104 = vpop.xlane.xlu0 %1103
        %1105 = vadd.xlane.f32.xlu0 %v1090
        %v1106 = vpop.xlane.xlu0 %1105
        %1107 = vadd.xlane.f32.xlu0 %v1092
        %v1108 = vpop.xlane.xlu0 %1107
        %v1109 = vrcp.pop %v1094
        %v1110 = vrcp.pop %v1096
        %v1111 = vrcp.pop %v1098
        %v1112 = vrcp.pop %v1100
        %v1113 = vrcp.pop %v1102
        %v1114 = vrcp.pop %v1104
        %v1115 = vrcp.pop %v1106
        %v1116 = vrcp.pop %v1108
        %v1117 = vmul.f32 %v1078, %v1109
        %v1118 = vmul.f32 %v1080, %v1110
        %v1119 = vmul.f32 %v1082, %v1111
        %v1120 = vmul.f32 %v1084, %v1112
        %v1121 = vmul.f32 %v1086, %v1113
        %v1122 = vmul.f32 %v1088, %v1114
        %v1123 = vmul.f32 %v1090, %v1115
        %v1124 = vmul.f32 %v1092, %v1116
        %v1125 = vlog2.pop %v1094
        %v1126 = vmul.f32 %v1125, 0.6931472
        %v1127 = vlog2.pop %v1096
        %v1128 = vmul.f32 %v1127, 0.6931472
        %v1129 = vlog2.pop %v1098
        %v1130 = vmul.f32 %v1129, 0.6931472
        %v1131 = vlog2.pop %v1100
        %v1132 = vmul.f32 %v1131, 0.6931472
        %v1133 = vlog2.pop %v1102
        %v1134 = vmul.f32 %v1133, 0.6931472
        %v1135 = vlog2.pop %v1104
        %v1136 = vmul.f32 %v1135, 0.6931472
        %v1137 = vlog2.pop %v1106
        %v1138 = vmul.f32 %v1137, 0.6931472
        %v1139 = vlog2.pop %v1108
        %v1140 = vmul.f32 %v1139, 0.6931472
        %v1141 = vadd.f32 %v1126, %v1054
        %v1142 = vadd.f32 %v1128, %v1056
        %v1143 = vadd.f32 %v1130, %v1058
        %v1144 = vadd.f32 %v1132, %v1060
        %v1145 = vadd.f32 %v1134, %v1062
        %v1146 = vadd.f32 %v1136, %v1064
        %v1147 = vadd.f32 %v1138, %v1066
        %v1148 = vadd.f32 %v1140, %v1068
        %v1149 = vpack.c.bf16 %v787, %v787
        %v1150 = vpack.c.bf16 %v790, %v790
        %v1151 = vpack.c.bf16 %v795, %v795
        %v1152 = vpack.c.bf16 %v798, %v798
        %v1153 = vpack.c.bf16 %v803, %v803
        %v1154 = vpack.c.bf16 %v806, %v806
        %v1155 = vpack.c.bf16 %v811, %v811
        %v1156 = vpack.c.bf16 %v814, %v814
        %1157 = vst [vmem:[%s495] sm:$0xf] %v1149
        %1158 = vst [vmem:[%s495 + $0x4] sm:$0xf] %v1150
        %1159 = vst [vmem:[%s495 + $0x8] sm:$0xf] %v1151
        %1160 = vst [vmem:[%s495 + $0xc] sm:$0xf] %v1152
        %1161 = vst [vmem:[%s495 + $0x10] sm:$0xf] %v1153
        %1162 = vst [vmem:[%s495 + $0x14] sm:$0xf] %v1154
        %1163 = vst [vmem:[%s495 + $0x18] sm:$0xf] %v1155
        %1164 = vst [vmem:[%s495 + $0x1c] sm:$0xf] %v1156
        %v1165 = vpack.c.bf16 %v927, %v927
        %v1166 = vpack.c.bf16 %v930, %v930
        %v1167 = vpack.c.bf16 %v935, %v935
        %v1168 = vpack.c.bf16 %v938, %v938
        %v1169 = vpack.c.bf16 %v943, %v943
        %v1170 = vpack.c.bf16 %v946, %v946
        %v1171 = vpack.c.bf16 %v951, %v951
        %v1172 = vpack.c.bf16 %v954, %v954
        %1173 = vst [vmem:[%s502] sm:$0xf] %v1165
        %1174 = vst [vmem:[%s502 + $0x4] sm:$0xf] %v1166
        %1175 = vst [vmem:[%s502 + $0x8] sm:$0xf] %v1167
        %1176 = vst [vmem:[%s502 + $0xc] sm:$0xf] %v1168
        %1177 = vst [vmem:[%s502 + $0x10] sm:$0xf] %v1169
        %1178 = vst [vmem:[%s502 + $0x14] sm:$0xf] %v1170
        %1179 = vst [vmem:[%s502 + $0x18] sm:$0xf] %v1171
        %1180 = vst [vmem:[%s502 + $0x1c] sm:$0xf] %v1172
        %v1181 = vld [vmem:[%s4] sm:$0x1]
        %v1183 = vlaneseq
        %v1184 = vshrl.u32 %v1183, 7
        %v1185 = vsub.s32 0, %v1184
        %v1186 = vrot.slane %v1181, %v1185
        %v1188 = vadd.f32 %v1021, %v1186
        %v1189 = vadd.f32 %v1022, %v1186
        %v1190 = vadd.f32 %v1023, %v1186
        %v1191 = vadd.f32 %v1024, %v1186
        %v1192 = vadd.f32 %v1025, %v1186
        %v1193 = vadd.f32 %v1026, %v1186
        %v1194 = vadd.f32 %v1027, %v1186
        %v1195 = vadd.f32 %v1028, %v1186
        %v1196 = vpack.c.bf16 %v1188, %v1188
        %v1197 = vpack.c.bf16 %v1189, %v1189
        %v1198 = vpack.c.bf16 %v1190, %v1190
        %v1199 = vpack.c.bf16 %v1191, %v1191
        %v1200 = vpack.c.bf16 %v1192, %v1192
        %v1201 = vpack.c.bf16 %v1193, %v1193
        %v1202 = vpack.c.bf16 %v1194, %v1194
        %v1203 = vpack.c.bf16 %v1195, %v1195
        %1204 = vst [vmem:[%s509] sm:$0xf] %v1196
        %1205 = vst [vmem:[%s509 + $0x4] sm:$0xf] %v1197
        %1206 = vst [vmem:[%s509 + $0x8] sm:$0xf] %v1198
        %1207 = vst [vmem:[%s509 + $0xc] sm:$0xf] %v1199
        %1208 = vst [vmem:[%s509 + $0x10] sm:$0xf] %v1200
        %1209 = vst [vmem:[%s509 + $0x14] sm:$0xf] %v1201
        %1210 = vst [vmem:[%s509 + $0x18] sm:$0xf] %v1202
        %1211 = vst [vmem:[%s509 + $0x1c] sm:$0xf] %v1203
        %v1212 = vpack.c.bf16 %v1117, %v1117
        %v1213 = vpack.c.bf16 %v1118, %v1118
        %v1214 = vpack.c.bf16 %v1119, %v1119
        %v1215 = vpack.c.bf16 %v1120, %v1120
        %v1216 = vpack.c.bf16 %v1121, %v1121
        %v1217 = vpack.c.bf16 %v1122, %v1122
        %v1218 = vpack.c.bf16 %v1123, %v1123
        %v1219 = vpack.c.bf16 %v1124, %v1124
        %1220 = vst [vmem:[%s516] sm:$0xf] %v1212
        %1221 = vst [vmem:[%s516 + $0x4] sm:$0xf] %v1213
        %1222 = vst [vmem:[%s516 + $0x8] sm:$0xf] %v1214
        %1223 = vst [vmem:[%s516 + $0xc] sm:$0xf] %v1215
        %1224 = vst [vmem:[%s516 + $0x10] sm:$0xf] %v1216
        %1225 = vst [vmem:[%s516 + $0x14] sm:$0xf] %v1217
        %1226 = vst [vmem:[%s516 + $0x18] sm:$0xf] %v1218
        %1227 = vst [vmem:[%s516 + $0x1c] sm:$0xf] %v1219
        %v1228 = vlaneseq
        %v1229 = vand.u32 %v1228, 127
        %v1230 = vlaneseq
        %v1231 = vshrl.u32 %v1230, 7
        %v1232 = vsub.s32 0, %v1231
        %v1233 = vrot.slane %v540, %v1232
        %1235 = vbcast.lane.b32.xlu0 %v1233, 256
        %v1236 = vpop.permute.xlu0 %1235
        %v1237 = vlaneseq
        %v1238 = vshrl.u32 %v1237, 7
        %v1239 = vsub.s32 1, %v1238
        %v1240 = vrot.slane %v540, %v1239
        %1242 = vbcast.lane.b32.xlu0 %v1240, 256
        %v1243 = vpop.permute.xlu0 %1242
        %v1244 = vlaneseq
        %v1245 = vshrl.u32 %v1244, 7
        %v1246 = vsub.s32 2, %v1245
        %v1247 = vrot.slane %v540, %v1246
        %1249 = vbcast.lane.b32.xlu0 %v1247, 256
        %v1250 = vpop.permute.xlu0 %1249
        %v1251 = vlaneseq
        %v1252 = vshrl.u32 %v1251, 7
        %v1253 = vsub.s32 3, %v1252
        %v1254 = vrot.slane %v540, %v1253
        %1256 = vbcast.lane.b32.xlu0 %v1254, 256
        %v1257 = vpop.permute.xlu0 %1256
        %v1258 = vlaneseq
        %v1259 = vshrl.u32 %v1258, 7
        %v1260 = vsub.s32 4, %v1259
        %v1261 = vrot.slane %v540, %v1260
        %1263 = vbcast.lane.b32.xlu0 %v1261, 256
        %v1264 = vpop.permute.xlu0 %1263
        %v1265 = vlaneseq
        %v1266 = vshrl.u32 %v1265, 7
        %v1267 = vsub.s32 5, %v1266
        %v1268 = vrot.slane %v540, %v1267
        %1270 = vbcast.lane.b32.xlu0 %v1268, 256
        %v1271 = vpop.permute.xlu0 %1270
        %v1272 = vlaneseq
        %v1273 = vshrl.u32 %v1272, 7
        %v1274 = vsub.s32 6, %v1273
        %v1275 = vrot.slane %v540, %v1274
        %1277 = vbcast.lane.b32.xlu0 %v1275, 256
        %v1278 = vpop.permute.xlu0 %1277
        %v1279 = vlaneseq
        %v1280 = vshrl.u32 %v1279, 7
        %v1281 = vsub.s32 7, %v1280
        %v1282 = vrot.slane %v540, %v1281
        %1284 = vbcast.lane.b32.xlu0 %v1282, 256
        %v1285 = vpop.permute.xlu0 %1284
        %vm1286 = vcmp.eq.s32.totalorder %v1229, %v1236
        %vm1287 = vcmp.eq.s32.totalorder %v1229, %v1243
        %vm1288 = vcmp.eq.s32.totalorder %v1229, %v1250
        %vm1289 = vcmp.eq.s32.totalorder %v1229, %v1257
        %vm1290 = vcmp.eq.s32.totalorder %v1229, %v1264
        %vm1291 = vcmp.eq.s32.totalorder %v1229, %v1271
        %vm1292 = vcmp.eq.s32.totalorder %v1229, %v1278
        %vm1293 = vcmp.eq.s32.totalorder %v1229, %v1285
        %v1294 = vsel %vm1286, %v787, 0.0
        %v1295 = vsel %vm1287, %v790, 0.0
        %v1296 = vsel %vm1288, %v795, 0.0
        %v1297 = vsel %vm1289, %v798, 0.0
        %v1298 = vsel %vm1290, %v803, 0.0
        %v1299 = vsel %vm1291, %v806, 0.0
        %v1300 = vsel %vm1292, %v811, 0.0
        %v1301 = vsel %vm1293, %v814, 0.0
        %1302 = vadd.xlane.f32.xlu0 %v1294
        %v1303 = vpop.xlane.xlu0 %1302
        %1304 = vadd.xlane.f32.xlu0 %v1295
        %v1305 = vpop.xlane.xlu0 %1304
        %1306 = vadd.xlane.f32.xlu0 %v1296
        %v1307 = vpop.xlane.xlu0 %1306
        %1308 = vadd.xlane.f32.xlu0 %v1297
        %v1309 = vpop.xlane.xlu0 %1308
        %1310 = vadd.xlane.f32.xlu0 %v1298
        %v1311 = vpop.xlane.xlu0 %1310
        %1312 = vadd.xlane.f32.xlu0 %v1299
        %v1313 = vpop.xlane.xlu0 %1312
        %1314 = vadd.xlane.f32.xlu0 %v1300
        %v1315 = vpop.xlane.xlu0 %1314
        %1316 = vadd.xlane.f32.xlu0 %v1301
        %v1317 = vpop.xlane.xlu0 %1316
        %v1318 = vadd.f32 %v1045, 0.0
        %v1319 = vadd.f32 %v1046, 0.0
        %v1320 = vadd.f32 %v1047, 0.0
        %v1321 = vadd.f32 %v1048, 0.0
        %v1322 = vadd.f32 %v1049, 0.0
        %v1323 = vadd.f32 %v1050, 0.0
        %v1324 = vadd.f32 %v1051, 0.0
        %v1325 = vadd.f32 %v1052, 0.0
        %v1326 = vsub.f32 %v1318, %v1303
        %v1327 = vsub.f32 %v1319, %v1305
        %v1328 = vsub.f32 %v1320, %v1307
        %v1329 = vsub.f32 %v1321, %v1309
        %v1330 = vsub.f32 %v1322, %v1311
        %v1331 = vsub.f32 %v1323, %v1313
        %v1332 = vsub.f32 %v1324, %v1315
        %v1333 = vsub.f32 %v1325, %v1317
        %v1335 = vlaneseq
        %v1336 = vshrl.u32 %v1335, 7
        %v1337 = vsub.s32 0, %v1336
        %v1338 = vrot.slane %v538, %v1337
        %1340 = vbcast.lane.b32.xlu0 %v1338, 256
        %v1341 = vpop.permute.xlu0 %1340
        %v1342 = vlaneseq
        %v1343 = vshrl.u32 %v1342, 7
        %v1344 = vsub.s32 1, %v1343
        %v1345 = vrot.slane %v538, %v1344
        %1347 = vbcast.lane.b32.xlu0 %v1345, 256
        %v1348 = vpop.permute.xlu0 %1347
        %v1349 = vlaneseq
        %v1350 = vshrl.u32 %v1349, 7
        %v1351 = vsub.s32 2, %v1350
        %v1352 = vrot.slane %v538, %v1351
        %1354 = vbcast.lane.b32.xlu0 %v1352, 256
        %v1355 = vpop.permute.xlu0 %1354
        %v1356 = vlaneseq
        %v1357 = vshrl.u32 %v1356, 7
        %v1358 = vsub.s32 3, %v1357
        %v1359 = vrot.slane %v538, %v1358
        %1361 = vbcast.lane.b32.xlu0 %v1359, 256
        %v1362 = vpop.permute.xlu0 %1361
        %v1363 = vlaneseq
        %v1364 = vshrl.u32 %v1363, 7
        %v1365 = vsub.s32 4, %v1364
        %v1366 = vrot.slane %v538, %v1365
        %1368 = vbcast.lane.b32.xlu0 %v1366, 256
        %v1369 = vpop.permute.xlu0 %1368
        %v1370 = vlaneseq
        %v1371 = vshrl.u32 %v1370, 7
        %v1372 = vsub.s32 5, %v1371
        %v1373 = vrot.slane %v538, %v1372
        %1375 = vbcast.lane.b32.xlu0 %v1373, 256
        %v1376 = vpop.permute.xlu0 %1375
        %v1377 = vlaneseq
        %v1378 = vshrl.u32 %v1377, 7
        %v1379 = vsub.s32 6, %v1378
        %v1380 = vrot.slane %v538, %v1379
        %1382 = vbcast.lane.b32.xlu0 %v1380, 256
        %v1383 = vpop.permute.xlu0 %1382
        %v1384 = vlaneseq
        %v1385 = vshrl.u32 %v1384, 7
        %v1386 = vsub.s32 7, %v1385
        %v1387 = vrot.slane %v538, %v1386
        %1389 = vbcast.lane.b32.xlu0 %v1387, 256
        %v1390 = vpop.permute.xlu0 %1389
        %v1399 = vmul.f32 %v1326, %v1341
        %v1400 = vmul.f32 %v1327, %v1348
        %v1401 = vmul.f32 %v1328, %v1355
        %v1402 = vmul.f32 %v1329, %v1362
        %v1403 = vmul.f32 %v1330, %v1369
        %v1404 = vmul.f32 %v1331, %v1376
        %v1405 = vmul.f32 %v1332, %v1383
        %v1406 = vmul.f32 %v1333, %v1390
        %v1407 = vlaneseq
        %v1408 = vshrl.u32 %v1407, 7
        %v1409 = vsub.s32 0, %v1408
        %v1410 = vrot.slane %v542, %v1409
        %1412 = vbcast.lane.b32.xlu0 %v1410, 256
        %v1413 = vpop.permute.xlu0 %1412
        %v1414 = vlaneseq
        %v1415 = vshrl.u32 %v1414, 7
        %v1416 = vsub.s32 1, %v1415
        %v1417 = vrot.slane %v542, %v1416
        %1419 = vbcast.lane.b32.xlu0 %v1417, 256
        %v1420 = vpop.permute.xlu0 %1419
        %v1421 = vlaneseq
        %v1422 = vshrl.u32 %v1421, 7
        %v1423 = vsub.s32 2, %v1422
        %v1424 = vrot.slane %v542, %v1423
        %1426 = vbcast.lane.b32.xlu0 %v1424, 256
        %v1427 = vpop.permute.xlu0 %1426
        %v1428 = vlaneseq
        %v1429 = vshrl.u32 %v1428, 7
        %v1430 = vsub.s32 3, %v1429
        %v1431 = vrot.slane %v542, %v1430
        %1433 = vbcast.lane.b32.xlu0 %v1431, 256
        %v1434 = vpop.permute.xlu0 %1433
        %v1435 = vlaneseq
        %v1436 = vshrl.u32 %v1435, 7
        %v1437 = vsub.s32 4, %v1436
        %v1438 = vrot.slane %v542, %v1437
        %1440 = vbcast.lane.b32.xlu0 %v1438, 256
        %v1441 = vpop.permute.xlu0 %1440
        %v1442 = vlaneseq
        %v1443 = vshrl.u32 %v1442, 7
        %v1444 = vsub.s32 5, %v1443
        %v1445 = vrot.slane %v542, %v1444
        %1447 = vbcast.lane.b32.xlu0 %v1445, 256
        %v1448 = vpop.permute.xlu0 %1447
        %v1449 = vlaneseq
        %v1450 = vshrl.u32 %v1449, 7
        %v1451 = vsub.s32 6, %v1450
        %v1452 = vrot.slane %v542, %v1451
        %1454 = vbcast.lane.b32.xlu0 %v1452, 256
        %v1455 = vpop.permute.xlu0 %1454
        %v1456 = vlaneseq
        %v1457 = vshrl.u32 %v1456, 7
        %v1458 = vsub.s32 7, %v1457
        %v1459 = vrot.slane %v542, %v1458
        %1461 = vbcast.lane.b32.xlu0 %v1459, 256
        %v1462 = vpop.permute.xlu0 %1461
        %vm1463 = vcmp.eq.s32.totalorder %v1229, %v1413
        %vm1464 = vcmp.eq.s32.totalorder %v1229, %v1420
        %vm1465 = vcmp.eq.s32.totalorder %v1229, %v1427
        %vm1466 = vcmp.eq.s32.totalorder %v1229, %v1434
        %vm1467 = vcmp.eq.s32.totalorder %v1229, %v1441
        %vm1468 = vcmp.eq.s32.totalorder %v1229, %v1448
        %vm1469 = vcmp.eq.s32.totalorder %v1229, %v1455
        %vm1470 = vcmp.eq.s32.totalorder %v1229, %v1462
        %v1471 = vsel %vm1463, %v927, 0.0
        %v1472 = vsel %vm1464, %v930, 0.0
        %v1473 = vsel %vm1465, %v935, 0.0
        %v1474 = vsel %vm1466, %v938, 0.0
        %v1475 = vsel %vm1467, %v943, 0.0
        %v1476 = vsel %vm1468, %v946, 0.0
        %v1477 = vsel %vm1469, %v951, 0.0
        %v1478 = vsel %vm1470, %v954, 0.0
        %1479 = vadd.xlane.f32.xlu0 %v1471
        %v1480 = vpop.xlane.xlu0 %1479
        %1481 = vadd.xlane.f32.xlu0 %v1472
        %v1482 = vpop.xlane.xlu0 %1481
        %1483 = vadd.xlane.f32.xlu0 %v1473
        %v1484 = vpop.xlane.xlu0 %1483
        %1485 = vadd.xlane.f32.xlu0 %v1474
        %v1486 = vpop.xlane.xlu0 %1485
        %1487 = vadd.xlane.f32.xlu0 %v1475
        %v1488 = vpop.xlane.xlu0 %1487
        %1489 = vadd.xlane.f32.xlu0 %v1476
        %v1490 = vpop.xlane.xlu0 %1489
        %1491 = vadd.xlane.f32.xlu0 %v1477
        %v1492 = vpop.xlane.xlu0 %1491
        %1493 = vadd.xlane.f32.xlu0 %v1478
        %v1494 = vpop.xlane.xlu0 %1493
        %v1495 = vadd.f32 %v1141, 0.0
        %v1496 = vadd.f32 %v1142, 0.0
        %v1497 = vadd.f32 %v1143, 0.0
        %v1498 = vadd.f32 %v1144, 0.0
        %v1499 = vadd.f32 %v1145, 0.0
        %v1500 = vadd.f32 %v1146, 0.0
        %v1501 = vadd.f32 %v1147, 0.0
        %v1502 = vadd.f32 %v1148, 0.0
        %v1503 = vsub.f32 %v1495, %v1480
        %v1504 = vsub.f32 %v1496, %v1482
        %v1505 = vsub.f32 %v1497, %v1484
        %v1506 = vsub.f32 %v1498, %v1486
        %v1507 = vsub.f32 %v1499, %v1488
        %v1508 = vsub.f32 %v1500, %v1490
        %v1509 = vsub.f32 %v1501, %v1492
        %v1510 = vsub.f32 %v1502, %v1494
        %v1511 = vmul.f32 %v1503, %v1341
        %v1512 = vmul.f32 %v1504, %v1348
        %v1513 = vmul.f32 %v1505, %v1355
        %v1514 = vmul.f32 %v1506, %v1362
        %v1515 = vmul.f32 %v1507, %v1369
        %v1516 = vmul.f32 %v1508, %v1376
        %v1517 = vmul.f32 %v1509, %v1383
        %v1518 = vmul.f32 %v1510, %v1390
        %v1519 = vadd.f32 %v1399, %v1511
        %v1520 = vadd.f32 %v1400, %v1512
        %v1521 = vadd.f32 %v1401, %v1513
        %v1522 = vadd.f32 %v1402, %v1514
        %v1523 = vadd.f32 %v1403, %v1515
        %v1524 = vadd.f32 %v1404, %v1516
        %v1525 = vadd.f32 %v1405, %v1517
        %v1526 = vadd.f32 %v1406, %v1518
        %vm1527 = vcmask 64512
        %v1528 = vsel %vm1527, %v538, 0.0
        %1529 = vadd.xlane.f32.xlu0 %v1528
        %v1530 = vpop.xlane.xlu0 %1529
        %1539 = vset.pattern.permute.xlu0 0
        %1540 = vperm.xlu0 %1539, %v1519
        %v1541 = vpop.permute.xlu0 %1540
        %1542 = vset.pattern.permute.xlu0 0
        %1543 = vperm.xlu0 %1542, %v1520
        %v1544 = vpop.permute.xlu0 %1543
        %1545 = vset.pattern.permute.xlu0 0
        %1546 = vperm.xlu0 %1545, %v1521
        %v1547 = vpop.permute.xlu0 %1546
        %1548 = vset.pattern.permute.xlu0 0
        %1549 = vperm.xlu0 %1548, %v1522
        %v1550 = vpop.permute.xlu0 %1549
        %1551 = vset.pattern.permute.xlu0 0
        %1552 = vperm.xlu0 %1551, %v1523
        %v1553 = vpop.permute.xlu0 %1552
        %1554 = vset.pattern.permute.xlu0 0
        %1555 = vperm.xlu0 %1554, %v1524
        %v1556 = vpop.permute.xlu0 %1555
        %1557 = vset.pattern.permute.xlu0 0
        %1558 = vperm.xlu0 %1557, %v1525
        %v1559 = vpop.permute.xlu0 %1558
        %1560 = vset.pattern.permute.xlu0 0
        %1561 = vperm.xlu0 %1560, %v1526
        %v1562 = vpop.permute.xlu0 %1561
        %v1563 = vlaneseq
        %v1564 = vshrl.u32 %v1563, 7
        %v1565 = vsub.s32 %v1229, %v1564
        %v1566 = vrot.slane %v1541, %v1565
        %v1567 = vlaneseq
        %v1568 = vshrl.u32 %v1567, 7
        %v1569 = vsub.s32 %v1229, %v1568
        %v1570 = vrot.slane %v1544, %v1569
        %v1571 = vlaneseq
        %v1572 = vshrl.u32 %v1571, 7
        %v1573 = vsub.s32 %v1229, %v1572
        %v1574 = vrot.slane %v1547, %v1573
        %v1575 = vlaneseq
        %v1576 = vshrl.u32 %v1575, 7
        %v1577 = vsub.s32 %v1229, %v1576
        %v1578 = vrot.slane %v1550, %v1577
        %v1579 = vlaneseq
        %v1580 = vshrl.u32 %v1579, 7
        %v1581 = vsub.s32 %v1229, %v1580
        %v1582 = vrot.slane %v1553, %v1581
        %v1583 = vlaneseq
        %v1584 = vshrl.u32 %v1583, 7
        %v1585 = vsub.s32 %v1229, %v1584
        %v1586 = vrot.slane %v1556, %v1585
        %v1587 = vlaneseq
        %v1588 = vshrl.u32 %v1587, 7
        %v1589 = vsub.s32 %v1229, %v1588
        %v1590 = vrot.slane %v1559, %v1589
        %v1591 = vlaneseq
        %v1592 = vshrl.u32 %v1591, 7
        %v1593 = vsub.s32 %v1229, %v1592
        %v1594 = vrot.slane %v1562, %v1593
        %vm1595 = vcmask 1041409
        %v1596 = vsel %vm1595, %v1570, %v1566
        %vm1597 = vcmask 1042434
        %v1598 = vsel %vm1597, %v1574, %v1596
        %vm1599 = vcmask 1043459
        %v1600 = vsel %vm1599, %v1578, %v1598
        %vm1601 = vcmask 1044484
        %v1602 = vsel %vm1601, %v1582, %v1600
        %vm1603 = vcmask 1045509
        %v1604 = vsel %vm1603, %v1586, %v1602
        %vm1605 = vcmask 1046534
        %v1606 = vsel %vm1605, %v1590, %v1604
        %vm1607 = vcmask 1047559
        %v1608 = vsel %vm1607, %v1594, %v1606
        %v1610 = vsel %vm1527, %v1608, 0.0
        %1611 = vadd.xlane.f32.xlu0 %v1610
        %v1612 = vpop.xlane.xlu0 %1611
        %v1613 = vadd.f32 %v1530, 1e-13
        %v1614 = vrcp.pop %v1613
        %v1615 = vmul.f32 %v1612, %v1614
        %vm1616 = vcmp.gt.f32.partialorder %v1530, 0.0
        %v1617 = vsel %vm1616, 1, 0
        %v1618 = vcvt.s32.f32 %v1617
        %v1619 = vsub.f32 %v927, %v1141
        %v1620 = vsub.f32 %v930, %v1142
        %v1621 = vsub.f32 %v935, %v1143
        %v1622 = vsub.f32 %v938, %v1144
        %v1623 = vsub.f32 %v943, %v1145
        %v1624 = vsub.f32 %v946, %v1146
        %v1625 = vsub.f32 %v951, %v1147
        %v1626 = vsub.f32 %v954, %v1148
        %v1627 = vadd.f32 %v1619, 0.0
        %v1628 = vadd.f32 %v1620, 0.0
        %v1629 = vadd.f32 %v1621, 0.0
        %v1630 = vadd.f32 %v1622, 0.0
        %v1631 = vadd.f32 %v1623, 0.0
        %v1632 = vadd.f32 %v1624, 0.0
        %v1633 = vadd.f32 %v1625, 0.0
        %v1634 = vadd.f32 %v1626, 0.0
        %v1635 = vmul.f32 %v1627, 1.442695
        %v1636 = vpow.pop %v1635
        %v1637 = vmul.f32 %v1628, 1.442695
        %v1638 = vpow.pop %v1637
        %v1639 = vmul.f32 %v1629, 1.442695
        %v1640 = vpow.pop %v1639
        %v1641 = vmul.f32 %v1630, 1.442695
        %v1642 = vpow.pop %v1641
        %v1643 = vmul.f32 %v1631, 1.442695
        %v1644 = vpow.pop %v1643
        %v1645 = vmul.f32 %v1632, 1.442695
        %v1646 = vpow.pop %v1645
        %v1647 = vmul.f32 %v1633, 1.442695
        %v1648 = vpow.pop %v1647
        %v1649 = vmul.f32 %v1634, 1.442695
        %v1650 = vpow.pop %v1649
        %v1651 = vmul.f32 %v1636, %v1341
        %v1652 = vmul.f32 %v1638, %v1348
        %v1653 = vmul.f32 %v1640, %v1355
        %v1654 = vmul.f32 %v1642, %v1362
        %v1655 = vmul.f32 %v1644, %v1369
        %v1656 = vmul.f32 %v1646, %v1376
        %v1657 = vmul.f32 %v1648, %v1383
        %v1658 = vmul.f32 %v1650, %v1390
        %1667 = vset.pattern.permute.xlu0 1
        %1668 = vperm.xlu0 %1667, %v1651
        %v1669 = vpop.permute.xlu0 %1668
        %1670 = vset.pattern.permute.xlu0 1
        %1671 = vperm.xlu0 %1670, %v1652
        %v1672 = vpop.permute.xlu0 %1671
        %1673 = vset.pattern.permute.xlu0 1
        %1674 = vperm.xlu0 %1673, %v1653
        %v1675 = vpop.permute.xlu0 %1674
        %1676 = vset.pattern.permute.xlu0 1
        %1677 = vperm.xlu0 %1676, %v1654
        %v1678 = vpop.permute.xlu0 %1677
        %1679 = vset.pattern.permute.xlu0 1
        %1680 = vperm.xlu0 %1679, %v1655
        %v1681 = vpop.permute.xlu0 %1680
        %1682 = vset.pattern.permute.xlu0 1
        %1683 = vperm.xlu0 %1682, %v1656
        %v1684 = vpop.permute.xlu0 %1683
        %1685 = vset.pattern.permute.xlu0 1
        %1686 = vperm.xlu0 %1685, %v1657
        %v1687 = vpop.permute.xlu0 %1686
        %1688 = vset.pattern.permute.xlu0 1
        %1689 = vperm.xlu0 %1688, %v1658
        %v1690 = vpop.permute.xlu0 %1689
        %v1691 = vlaneseq
        %v1692 = vshrl.u32 %v1691, 7
        %v1693 = vsub.s32 %v1229, %v1692
        %v1694 = vrot.slane %v1669, %v1693
        %v1695 = vlaneseq
        %v1696 = vshrl.u32 %v1695, 7
        %v1697 = vsub.s32 %v1229, %v1696
        %v1698 = vrot.slane %v1672, %v1697
        %v1699 = vlaneseq
        %v1700 = vshrl.u32 %v1699, 7
        %v1701 = vsub.s32 %v1229, %v1700
        %v1702 = vrot.slane %v1675, %v1701
        %v1703 = vlaneseq
        %v1704 = vshrl.u32 %v1703, 7
        %v1705 = vsub.s32 %v1229, %v1704
        %v1706 = vrot.slane %v1678, %v1705
        %v1707 = vlaneseq
        %v1708 = vshrl.u32 %v1707, 7
        %v1709 = vsub.s32 %v1229, %v1708
        %v1710 = vrot.slane %v1681, %v1709
        %v1711 = vlaneseq
        %v1712 = vshrl.u32 %v1711, 7
        %v1713 = vsub.s32 %v1229, %v1712
        %v1714 = vrot.slane %v1684, %v1713
        %v1715 = vlaneseq
        %v1716 = vshrl.u32 %v1715, 7
        %v1717 = vsub.s32 %v1229, %v1716
        %v1718 = vrot.slane %v1687, %v1717
        %v1719 = vlaneseq
        %v1720 = vshrl.u32 %v1719, 7
        %v1721 = vsub.s32 %v1229, %v1720
        %v1722 = vrot.slane %v1690, %v1721
        %v1723 = vsel %vm1595, %v1698, %v1694
        %v1724 = vsel %vm1597, %v1702, %v1723
        %v1725 = vsel %vm1599, %v1706, %v1724
        %v1726 = vsel %vm1601, %v1710, %v1725
        %v1727 = vsel %vm1603, %v1714, %v1726
        %v1728 = vsel %vm1605, %v1718, %v1727
        %v1729 = vsel %vm1607, %v1722, %v1728
        %v1731 = vsel %vm1527, %v1729, -inf
        %1732 = vmax.xlane.f32.xlu0 %v1731
        %v1733 = vpop.xlane.xlu0 %1732
        %vm1734 = vcmp.eq.s32.totalorder %v1229, 0
        %v1736 = vlaneseq
        %v1737 = vshrl.u32 %v1736, 7
        %v1738 = vsub.s32 0, %v1737
        %v1739 = vrot.slane %v1733, %v1738
        %v1740 = vlaneseq
        %v1741 = vshrl.u32 %v1740, 7
        %v1742 = vsub.s32 1, %v1741
        %v1743 = vrot.slane %v1733, %v1742
        %v1744 = vlaneseq
        %v1745 = vshrl.u32 %v1744, 7
        %v1746 = vsub.s32 2, %v1745
        %v1747 = vrot.slane %v1733, %v1746
        %v1748 = vlaneseq
        %v1749 = vshrl.u32 %v1748, 7
        %v1750 = vsub.s32 3, %v1749
        %v1751 = vrot.slane %v1733, %v1750
        %v1752 = vlaneseq
        %v1753 = vshrl.u32 %v1752, 7
        %v1754 = vsub.s32 4, %v1753
        %v1755 = vrot.slane %v1733, %v1754
        %v1756 = vlaneseq
        %v1757 = vshrl.u32 %v1756, 7
        %v1758 = vsub.s32 5, %v1757
        %v1759 = vrot.slane %v1733, %v1758
        %v1760 = vlaneseq
        %v1761 = vshrl.u32 %v1760, 7
        %v1762 = vsub.s32 6, %v1761
        %v1763 = vrot.slane %v1733, %v1762
        %v1764 = vlaneseq
        %v1765 = vshrl.u32 %v1764, 7
        %v1766 = vsub.s32 7, %v1765
        %v1767 = vrot.slane %v1733, %v1766
        %v1776 = vsel %vm1734, %v1739, 0.0
        %v1777 = vsel %vm1734, %v1743, 0.0
        %v1778 = vsel %vm1734, %v1747, 0.0
        %v1779 = vsel %vm1734, %v1751, 0.0
        %v1780 = vsel %vm1734, %v1755, 0.0
        %v1781 = vsel %vm1734, %v1759, 0.0
        %v1782 = vsel %vm1734, %v1763, 0.0
        %v1783 = vsel %vm1734, %v1767, 0.0
        %vm1784 = vcmp.eq.s32.totalorder %v1229, 1
        %v1786 = vlaneseq
        %v1787 = vshrl.u32 %v1786, 7
        %v1788 = vsub.s32 0, %v1787
        %v1789 = vrot.slane %v1615, %v1788
        %v1790 = vlaneseq
        %v1791 = vshrl.u32 %v1790, 7
        %v1792 = vsub.s32 1, %v1791
        %v1793 = vrot.slane %v1615, %v1792
        %v1794 = vlaneseq
        %v1795 = vshrl.u32 %v1794, 7
        %v1796 = vsub.s32 2, %v1795
        %v1797 = vrot.slane %v1615, %v1796
        %v1798 = vlaneseq
        %v1799 = vshrl.u32 %v1798, 7
        %v1800 = vsub.s32 3, %v1799
        %v1801 = vrot.slane %v1615, %v1800
        %v1802 = vlaneseq
        %v1803 = vshrl.u32 %v1802, 7
        %v1804 = vsub.s32 4, %v1803
        %v1805 = vrot.slane %v1615, %v1804
        %v1806 = vlaneseq
        %v1807 = vshrl.u32 %v1806, 7
        %v1808 = vsub.s32 5, %v1807
        %v1809 = vrot.slane %v1615, %v1808
        %v1810 = vlaneseq
        %v1811 = vshrl.u32 %v1810, 7
        %v1812 = vsub.s32 6, %v1811
        %v1813 = vrot.slane %v1615, %v1812
        %v1814 = vlaneseq
        %v1815 = vshrl.u32 %v1814, 7
        %v1816 = vsub.s32 7, %v1815
        %v1817 = vrot.slane %v1615, %v1816
        %v1826 = vsel %vm1784, %v1789, 0.0
        %v1827 = vsel %vm1784, %v1793, 0.0
        %v1828 = vsel %vm1784, %v1797, 0.0
        %v1829 = vsel %vm1784, %v1801, 0.0
        %v1830 = vsel %vm1784, %v1805, 0.0
        %v1831 = vsel %vm1784, %v1809, 0.0
        %v1832 = vsel %vm1784, %v1813, 0.0
        %v1833 = vsel %vm1784, %v1817, 0.0
        %v1834 = vadd.f32 %v1776, %v1826
        %v1835 = vadd.f32 %v1777, %v1827
        %v1836 = vadd.f32 %v1778, %v1828
        %v1837 = vadd.f32 %v1779, %v1829
        %v1838 = vadd.f32 %v1780, %v1830
        %v1839 = vadd.f32 %v1781, %v1831
        %v1840 = vadd.f32 %v1782, %v1832
        %v1841 = vadd.f32 %v1783, %v1833
        %vm1842 = vcmp.eq.s32.totalorder %v1229, 2
        %v1844 = vlaneseq
        %v1845 = vshrl.u32 %v1844, 7
        %v1846 = vsub.s32 0, %v1845
        %v1847 = vrot.slane %v1618, %v1846
        %v1848 = vlaneseq
        %v1849 = vshrl.u32 %v1848, 7
        %v1850 = vsub.s32 1, %v1849
        %v1851 = vrot.slane %v1618, %v1850
        %v1852 = vlaneseq
        %v1853 = vshrl.u32 %v1852, 7
        %v1854 = vsub.s32 2, %v1853
        %v1855 = vrot.slane %v1618, %v1854
        %v1856 = vlaneseq
        %v1857 = vshrl.u32 %v1856, 7
        %v1858 = vsub.s32 3, %v1857
        %v1859 = vrot.slane %v1618, %v1858
        %v1860 = vlaneseq
        %v1861 = vshrl.u32 %v1860, 7
        %v1862 = vsub.s32 4, %v1861
        %v1863 = vrot.slane %v1618, %v1862
        %v1864 = vlaneseq
        %v1865 = vshrl.u32 %v1864, 7
        %v1866 = vsub.s32 5, %v1865
        %v1867 = vrot.slane %v1618, %v1866
        %v1868 = vlaneseq
        %v1869 = vshrl.u32 %v1868, 7
        %v1870 = vsub.s32 6, %v1869
        %v1871 = vrot.slane %v1618, %v1870
        %v1872 = vlaneseq
        %v1873 = vshrl.u32 %v1872, 7
        %v1874 = vsub.s32 7, %v1873
        %v1875 = vrot.slane %v1618, %v1874
        %v1884 = vsel %vm1842, %v1847, 0.0
        %v1885 = vsel %vm1842, %v1851, 0.0
        %v1886 = vsel %vm1842, %v1855, 0.0
        %v1887 = vsel %vm1842, %v1859, 0.0
        %v1888 = vsel %vm1842, %v1863, 0.0
        %v1889 = vsel %vm1842, %v1867, 0.0
        %v1890 = vsel %vm1842, %v1871, 0.0
        %v1891 = vsel %vm1842, %v1875, 0.0
        %v1892 = vadd.f32 %v1834, %v1884
        %v1893 = vadd.f32 %v1835, %v1885
        %v1894 = vadd.f32 %v1836, %v1886
        %v1895 = vadd.f32 %v1837, %v1887
        %v1896 = vadd.f32 %v1838, %v1888
        %v1897 = vadd.f32 %v1839, %v1889
        %v1898 = vadd.f32 %v1840, %v1890
        %v1899 = vadd.f32 %v1841, %v1891
        %1900 = vst [vmem:[%s523] sm:$0x1] %v1892
        %1901 = vst [vmem:[%s523 + $0x1] sm:$0x1] %v1893
        %1902 = vst [vmem:[%s523 + $0x2] sm:$0x1] %v1894
        %1903 = vst [vmem:[%s523 + $0x3] sm:$0x1] %v1895
        %1904 = vst [vmem:[%s523 + $0x4] sm:$0x1] %v1896
        %1905 = vst [vmem:[%s523 + $0x5] sm:$0x1] %v1897
        %1906 = vst [vmem:[%s523 + $0x6] sm:$0x1] %v1898
        %1907 = vst [vmem:[%s523 + $0x7] sm:$0x1] %v1899
        %s1908 = sand.u32 %s280, 1
        %s1909 = scalar_lea.sflag [#allocation3], %s1908
        %s1910 = sand.u32 %s280, 1
        %s1911 = smul.addr %s1910, 32
        %s1912 = scalar_lea.vmem [#allocation2], %s1911
        %s1913 = sand.u32 %s36, 1
        %s1914 = scalar_lea.sflag [#allocation5], %s1913
        %s1915 = sand.u32 %s306, 1
        %s1916 = smul.addr %s1915, 32
        %s1917 = scalar_lea.vmem [#allocation4], %s1916
        %s1918 = sand.u32 %s36, 1
        %s1919 = scalar_lea.sflag [#allocation5], %s1918
        %s1920 = sand.u32 %s332, 1
        %s1921 = smul.addr %s1920, 32
        %s1922 = scalar_lea.vmem [#allocation6], %s1921
        %s1923 = sand.u32 %s36, 1
        %s1924 = scalar_lea.sflag [#allocation8], %s1923
        %s1925 = sand.u32 %s358, 1
        %s1926 = smul.addr %s1925, 32
        %s1927 = scalar_lea.vmem [#allocation7], %s1926
        %s1928 = sand.u32 %s36, 1
        %s1929 = scalar_lea.sflag [#allocation8], %s1928
        %s1930 = sand.u32 %s384, 1
        %s1931 = smul.addr %s1930, 8
        %s1932 = scalar_lea.vmem [#allocation9], %s1931
        // Predicated region
        $region65: #{tpu_custom_call.1} parent=63 // pred_check
          %p1933 = pneg %p290
        $region66: #{tpu_custom_call.1} parent=63 // pred_check_branch
          %1935 = sbr.rel (%p1933) target = $region68
        $region67: #{tpu_custom_call.1} parent=63 // pred_region
          %s1936 = smul.u32 8, %s36
          %s1938 = ssub.s32 512, 512
          %1939 = vsyncadd %s1909, %s1938
          %s1940 = smul.addr %s1936, 64
          %s1941 = scalar_lea.hbm %s11, %s1940
          %s1942 = sshll.u32 %s1912, 4
          %s1943 = int_to_ptr.vmem [resolvable:$true] %s1942
          %1948 = dma.vmem_to_hbm [thread:$0]  %s1943, 512, %s1941, %s1909, 64, 64, 4
        $region68: #{tpu_custom_call.1} parent=63 // pred_fallthru
          _
        // Predicated region
        $region69: #{tpu_custom_call.1} parent=63 // pred_check
          %p1949 = pneg %p316
        $region70: #{tpu_custom_call.1} parent=63 // pred_check_branch
          %1951 = sbr.rel (%p1949) target = $region72
        $region71: #{tpu_custom_call.1} parent=63 // pred_region
          %s1952 = smul.u32 8, %s36
          %s1954 = ssub.s32 512, 512
          %1955 = vsyncadd %s1914, %s1954
          %s1956 = smul.addr %s1952, 64
          %s1957 = scalar_lea.hbm %s12, %s1956
          %s1958 = sshll.u32 %s1917, 4
          %s1959 = int_to_ptr.vmem [resolvable:$true] %s1958
          %1964 = dma.vmem_to_hbm [thread:$0]  %s1959, 512, %s1957, %s1914, 64, 64, 4
        $region72: #{tpu_custom_call.1} parent=63 // pred_fallthru
          _
        // Predicated region
        $region73: #{tpu_custom_call.1} parent=63 // pred_check
          %p1965 = pneg %p342
        $region74: #{tpu_custom_call.1} parent=63 // pred_check_branch
          %1967 = sbr.rel (%p1965) target = $region76
        $region75: #{tpu_custom_call.1} parent=63 // pred_region
          %s1968 = smul.u32 8, %s36
          %s1970 = ssub.s32 512, 512
          %1971 = vsyncadd %s1919, %s1970
          %s1972 = smul.addr %s1968, 64
          %s1973 = scalar_lea.hbm %s13, %s1972
          %s1974 = sshll.u32 %s1922, 4
          %s1975 = int_to_ptr.vmem [resolvable:$true] %s1974
          %1980 = dma.vmem_to_hbm [thread:$0]  %s1975, 512, %s1973, %s1919, 64, 64, 4
        $region76: #{tpu_custom_call.1} parent=63 // pred_fallthru
          _
        // Predicated region
        $region77: #{tpu_custom_call.1} parent=63 // pred_check
          %p1981 = pneg %p368
        $region78: #{tpu_custom_call.1} parent=63 // pred_check_branch
          %1983 = sbr.rel (%p1981) target = $region80
        $region79: #{tpu_custom_call.1} parent=63 // pred_region
          %s1984 = smul.u32 8, %s36
          %s1986 = ssub.s32 512, 512
          %1987 = vsyncadd %s1924, %s1986
          %s1988 = smul.addr %s1984, 64
          %s1989 = scalar_lea.hbm %s14, %s1988
          %s1990 = sshll.u32 %s1927, 4
          %s1991 = int_to_ptr.vmem [resolvable:$true] %s1990
          %1996 = dma.vmem_to_hbm [thread:$0]  %s1991, 512, %s1989, %s1924, 64, 64, 4
        $region80: #{tpu_custom_call.1} parent=63 // pred_fallthru
          _
        // Predicated region
        $region81: #{tpu_custom_call.1} parent=63 // pred_check
          %p1997 = pneg %p394
        $region82: #{tpu_custom_call.1} parent=63 // pred_check_branch
          %1999 = sbr.rel (%p1997) target = $region84
        $region83: #{tpu_custom_call.1} parent=63 // pred_region
          %s2000 = smul.u32 8, %s36
          %s2002 = ssub.s32 128, 128
          %2003 = vsyncadd %s1929, %s2002
          %s2004 = smul.addr %s2000, 16
          %s2005 = scalar_lea.hbm %s15, %s2004
          %s2006 = sshll.u32 %s1932, 4
          %s2007 = int_to_ptr.vmem [resolvable:$true] %s2006
          %2012 = dma.vmem_to_hbm [thread:$0]  %s2007, 128, %s2005, %s1929, 16, 16, 1
        $region84: #{tpu_custom_call.1} parent=63 // pred_fallthru
          _
      $region64: #{tpu_custom_call.1} parent=5 // pred_fallthru
        _
      %p2013 = scmp.le.s32.totalorder 2, %s31
      // Predicated region
      $region85: #{tpu_custom_call.1} parent=5 // pred_check
        %p2014 = pneg %p2013
      $region86: #{tpu_custom_call.1} parent=5 // pred_check_branch
        %2016 = sbr.rel (%p2014) target = $region88
      $region87: #{tpu_custom_call.1} parent=5 // pred_region
        %s2017 = ssub.s32 %s31, 2
        // Predicated region
        $region89: #{tpu_custom_call.1} parent=87 // pred_check
          %p2018 = pneg %p296
        $region90: #{tpu_custom_call.1} parent=87 // pred_check_branch
          %2020 = sbr.rel (%p2018) target = $region92
        $region91: #{tpu_custom_call.1} parent=87 // pred_region
          %s2021 = sand.u32 %s281, 1
          %s2022 = scalar_lea.sflag [#allocation3], %s2021
          %s2023 = sand.u32 %s281, 1
          %s2024 = smul.addr %s2023, 32
          %s2025 = scalar_lea.vmem [#allocation2], %s2024
          %2026 = dma.done %s2022, 512
        $region92: #{tpu_custom_call.1} parent=87 // pred_fallthru
          _
        // Predicated region
        $region93: #{tpu_custom_call.1} parent=87 // pred_check
          %p2027 = pneg %p322
        $region94: #{tpu_custom_call.1} parent=87 // pred_check_branch
          %2029 = sbr.rel (%p2027) target = $region96
        $region95: #{tpu_custom_call.1} parent=87 // pred_region
          %s2030 = sand.u32 %s37, 1
          %s2031 = scalar_lea.sflag [#allocation5], %s2030
          %s2032 = sand.u32 %s307, 1
          %s2033 = smul.addr %s2032, 32
          %s2034 = scalar_lea.vmem [#allocation4], %s2033
          %2035 = dma.done %s2031, 512
        $region96: #{tpu_custom_call.1} parent=87 // pred_fallthru
          _
        // Predicated region
        $region97: #{tpu_custom_call.1} parent=87 // pred_check
          %p2036 = pneg %p348
        $region98: #{tpu_custom_call.1} parent=87 // pred_check_branch
          %2038 = sbr.rel (%p2036) target = $region100
        $region99: #{tpu_custom_call.1} parent=87 // pred_region
          %s2039 = sand.u32 %s37, 1
          %s2040 = scalar_lea.sflag [#allocation5], %s2039
          %s2041 = sand.u32 %s333, 1
          %s2042 = smul.addr %s2041, 32
          %s2043 = scalar_lea.vmem [#allocation6], %s2042
          %2044 = dma.done %s2040, 512
        $region100: #{tpu_custom_call.1} parent=87 // pred_fallthru
          _
        // Predicated region
        $region101: #{tpu_custom_call.1} parent=87 // pred_check
          %p2045 = pneg %p374
        $region102: #{tpu_custom_call.1} parent=87 // pred_check_branch
          %2047 = sbr.rel (%p2045) target = $region104
        $region103: #{tpu_custom_call.1} parent=87 // pred_region
          %s2048 = sand.u32 %s37, 1
          %s2049 = scalar_lea.sflag [#allocation8], %s2048
          %s2050 = sand.u32 %s359, 1
          %s2051 = smul.addr %s2050, 32
          %s2052 = scalar_lea.vmem [#allocation7], %s2051
          %2053 = dma.done %s2049, 512
        $region104: #{tpu_custom_call.1} parent=87 // pred_fallthru
          _
        // Predicated region
        $region105: #{tpu_custom_call.1} parent=87 // pred_check
          %p2054 = pneg %p400
        $region106: #{tpu_custom_call.1} parent=87 // pred_check_branch
          %2056 = sbr.rel (%p2054) target = $region108
        $region107: #{tpu_custom_call.1} parent=87 // pred_region
          %s2057 = sand.u32 %s37, 1
          %s2058 = scalar_lea.sflag [#allocation8], %s2057
          %s2059 = sand.u32 %s385, 1
          %s2060 = smul.addr %s2059, 8
          %s2061 = scalar_lea.vmem [#allocation9], %s2060
          %2062 = dma.done %s2058, 128
        $region108: #{tpu_custom_call.1} parent=87 // pred_fallthru
          _
      $region88: #{tpu_custom_call.1} parent=5 // pred_fallthru
        _
    $region6: #{tpu_custom_call.1} parent=1 // loop_footer
      %s35 = sadd.s32 1, %s31
    $region7: #{tpu_custom_call.1} parent=1 // loop_footer_branch
      %30 = sbr.rel target = $region3
    $region8: #{tpu_custom_call.1} parent=1 // loop_exit
      _
    %2063 = vsyncpa [#allocation3], 1
    %s2064 = scalar_lea.sflag [#allocation3], 1
    %2065 = vsyncpa %s2064, 1
    %2066 = vsyncpa [#allocation5], 1
    %s2067 = scalar_lea.sflag [#allocation5], 1
    %2068 = vsyncpa %s2067, 1
    %2069 = vsyncpa [#allocation8], 1
    %s2070 = scalar_lea.sflag [#allocation8], 1
    %2071 = vsyncpa %s2070, 1

</llo_original>
